<compile_context>
chip_gen: v5e
topology: v5e:2x2
jax: 0.10.0
libtpu: 0.0.40
codegen_flags: <defaults>
</compile_context>

<pallas_src>
import math
from functools import partial

import jax
import jax.numpy as jnp
from jax import lax
from jax.experimental import pallas as pl
from jax.experimental.pallas import tpu as pltpu

NEG_INF = -1e9  # additive mask value (numerically equivalent to -inf here)


# ------------------------------ fused kernel ------------------------------

def _decoder_layer_kernel(x_ref, enc_ref, kpb_ref, wcat_ref, w2_ref, bcat_ref,
                          ln_ref, o_ref, *, num_heads, eps):
    Bt, St, D = x_ref.shape
    Ss = enc_ref.shape[1]
    d_ff = w2_ref.shape[0]
    dh = D // num_heads
    scale = 1.0 / math.sqrt(dh)

    # Column offsets into the packed weight/bias slabs.  All are multiples of
    # 128 when D is, so every slice below is a lane-aligned VMEM load.
    O_QKV, O_OS, O_QC, O_KVC, O_OC, O_W1, O_B2 = (
        0, 3 * D, 4 * D, 5 * D, 7 * D, 8 * D, 8 * D + d_ff)

    M = Bt * St                                   # batch folded into matmul M
    x = x_ref[...].astype(jnp.float32).reshape(M, D)
    enc = enc_ref[...].astype(jnp.float32).reshape(Bt * Ss, D)

    def layer_norm(z, gi, bi):                    # rows of the stacked (6,D) LN slab
        g = ln_ref[gi:gi + 1, :]
        b = ln_ref[bi:bi + 1, :]
        mu = jnp.mean(z, axis=-1, keepdims=True)
        zc = z - mu
        var = jnp.mean(zc * zc, axis=-1, keepdims=True)
        return zc * lax.rsqrt(var + eps) * g + b

    def proj(a_f32, c0, c1):
        # bf16 MXU inputs, f32 accumulate, f32 bias (elementwise math stays f32).
        return jnp.dot(a_f32.astype(jnp.bfloat16), wcat_ref[:, c0:c1],
                       preferred_element_type=jnp.float32) + bcat_ref[:, c0:c1]

    def attention(q_f32, k_f32, v_f32, Sq, Sk, kp_row, wo_c0, causal):
        # q:(Bt*Sq,D) k,v:(Bt*Sk,D).  Per-head ctx tiles are concatenated back
        # to a (Sq,D) tile so the output projection is ONE K=D matmul over all
        # Bt*Sq rows (head-concat folded into a single MXU push).
        qb = q_f32.astype(jnp.bfloat16)
        kb = k_f32.astype(jnp.bfloat16)
        vb = v_f32.astype(jnp.bfloat16)
        if causal:
            ri = lax.broadcasted_iota(jnp.int32, (Sq, Sk), 0)
            ci = lax.broadcasted_iota(jnp.int32, (Sq, Sk), 1)
            causal_bias = jnp.where(ci > ri, NEG_INF, 0.0).astype(jnp.float32)
        ctx_rows = []
        for b in range(Bt):                        # static unroll (Bt is 1 or B)
            q_b = qb[b * Sq:(b + 1) * Sq]
            k_b = kb[b * Sk:(b + 1) * Sk]
            v_b = vb[b * Sk:(b + 1) * Sk]
            kp = kpb_ref[b][kp_row:kp_row + 1, 0:Sk]        # (1, Sk) additive bias
            ctx_heads = []
            for h in range(num_heads):             # static unroll over heads
                lo, hi = h * dh, (h + 1) * dh
                s = lax.dot_general(q_b[:, lo:hi], k_b[:, lo:hi],
                                    (((1,), (1,)), ((), ())),
                                    preferred_element_type=jnp.float32) * scale
                s = s + kp
                if causal:
                    s = s + causal_bias
                s = s - jnp.max(s, axis=-1, keepdims=True)
                p = jnp.exp(s)
                p = p * pl.reciprocal(jnp.sum(p, axis=-1, keepdims=True),
                                      approx=False)
                ctx_heads.append(
                    jnp.dot(p.astype(jnp.bfloat16), v_b[:, lo:hi],
                            preferred_element_type=jnp.float32))
            ctx_rows.append(jnp.concatenate(ctx_heads, axis=-1))   # (Sq, D)
        ctx = ctx_rows[0] if Bt == 1 else jnp.concatenate(ctx_rows, axis=0)
        return jnp.dot(ctx.astype(jnp.bfloat16), wcat_ref[:, wo_c0:wo_c0 + D],
                       preferred_element_type=jnp.float32) \
            + bcat_ref[:, wo_c0:wo_c0 + D]

    # ---- masked causal self-attention (fused QKV projection, M = Bt*St) ----
    qkv = proj(x, O_QKV, O_OS)                                   # (M, 3D)
    sa = attention(qkv[:, :D], qkv[:, D:2 * D], qkv[:, 2 * D:],
                   St, St, 0, O_OS, causal=True)
    x1 = layer_norm(x + sa, 0, 1)

    # ---- cross-attention over encoder memory (fused KV projection) ----
    qc = proj(x1, O_QC, O_KVC)                                   # (M, D)
    kvc = proj(enc, O_KVC, O_OC)                                 # (Bt*Ss, 2D)
    ca = attention(qc, kvc[:, :D], kvc[:, D:], St, Ss, 1, O_OC, causal=False)
    x2 = layer_norm(x1 + ca, 2, 3)

    # ---- feed forward (fc1 + ReLU + fc2; the (M, d_ff) hidden stays in VMEM) ----
    h = jnp.maximum(proj(x2, O_W1, O_W1 + d_ff), 0.0)            # (M, d_ff)
    ff = jnp.dot(h.astype(jnp.bfloat16), w2_ref[...],
                 preferred_element_type=jnp.float32) + bcat_ref[:, O_B2:O_B2 + D]
    x3 = layer_norm(x2 + ff, 4, 5)

    o_ref[...] = x3.reshape(Bt, St, D).astype(o_ref.dtype)


# ------------------------------- wrapper -----------------------------------

def _default_fold_batch():
    """True -> fold the whole batch into one program (best on 1-TC chips)."""
    try:
        kind = jax.devices()[0].device_kind.lower()
    except Exception:
        return True
    # v7x / v4 / v5p have 2 TensorCores per chip -> prefer grid=(B,) "parallel"
    # (keep the parallel axis even so no core idles on a tail step).
    return not any(tag in kind for tag in ("v7", "v4", "v5p"))


def decoder_layer_forward(x, enc_output, params, *, num_heads,
                          tgt_key_padding_mask=None, memory_key_padding_mask=None,
                          eps=1e-5, fold_batch=None):
    """Fused DecoderLayer forward.  x:(B,St,D)  enc_output:(B,Ss,D)."""
    B, St, D = x.shape
    Ss = enc_output.shape[1]
    d_ff = params["fc1"]["w"].shape[1]
    assert D % num_heads == 0

    if fold_batch is None:
        fold_batch = _default_fold_batch()
    num_programs = 1 if (fold_batch or B == 1) else B
    Bt = B // num_programs

    # ---- pack parameters into lane-dense slabs: bf16 weights for the MXU,
    #      f32 biases / LN params for the VPU.  4 constant DMAs instead of 21.
    #      (In production these would be pre-packed once, outside the step.)
    sp, cp = params["self_attn"], params["cross_attn"]
    w_cat = jnp.concatenate(
        [sp["w_qkv"], sp["w_o"], cp["w_q"], cp["w_kv"], cp["w_o"],
         params["fc1"]["w"]], axis=1).astype(jnp.bfloat16)        # (D, 8D+d_ff)
    w2 = params["fc2"]["w"].astype(jnp.bfloat16)                  # (d_ff, D)
    b_cat = jnp.concatenate(
        [sp["b_qkv"], sp["b_o"], cp["b_q"], cp["b_kv"], cp["b_o"],
         params["fc1"]["b"], params["fc2"]["b"]], axis=1).astype(jnp.float32)
    ln_cat = jnp.concatenate(
        [params["norm1"]["g"], params["norm1"]["b"],
         params["norm2"]["g"], params["norm2"]["b"],
         params["norm3"]["g"], params["norm3"]["b"]], axis=0).astype(jnp.float32)

    # ---- key-padding masks as one lane-dense (B, 2, kp_w) additive-bias slab.
    kp_w = max(128, ((max(St, Ss) + 127) // 128) * 128)
    kpb = jnp.zeros((B, 2, kp_w), jnp.float32)
    if tgt_key_padding_mask is not None:
        kpb = kpb.at[:, 0, :St].set(jnp.where(tgt_key_padding_mask, NEG_INF, 0.0))
    if memory_key_padding_mask is not None:
        kpb = kpb.at[:, 1, :Ss].set(jnp.where(memory_key_padding_mask, NEG_INF, 0.0))

    def batched(s1, s2):
        return pl.BlockSpec((Bt, s1, s2), lambda i: (i, 0, 0))

    def const(shape):
        # Weight/bias/LN blocks never change across grid steps: single-buffer
        # them when gridded (no useless double-buffered VMEM or swap bookkeeping).
        if num_programs > 1:
            return pl.BlockSpec(shape, lambda i, _n=len(shape): (0,) * _n,
                                pipeline_mode=pl.Buffered(1))
        return pl.BlockSpec(shape, lambda i, _n=len(shape): (0,) * _n)

    # TODO(synk): at production sizes (D>=1024, d_ff>=4096) tile fc1/fc2 and the
    # weight slab over K (emit_pipeline) and set vmem_limit_bytes for v7x's
    # 64 MiB VMEM; untiled residency is fine at these toy shapes (~2 MB).
    return pl.pallas_call(
        partial(_decoder_layer_kernel, num_heads=num_heads, eps=eps),
        out_shape=jax.ShapeDtypeStruct((B, St, D), x.dtype),
        grid=(num_programs,),
        in_specs=[
            batched(St, D),                  # x
            batched(Ss, D),                  # enc_output
            batched(2, kp_w),                # key-padding additive biases
            const((D, 8 * D + d_ff)),        # packed weight slab (bf16)
            const((d_ff, D)),                # fc2 weight (bf16)
            const((1, 9 * D + d_ff)),        # packed bias slab (f32)
            const((6, D)),                   # packed LayerNorm gamma/beta (f32)
        ],
        out_specs=pl.BlockSpec((Bt, St, D), lambda i: (i, 0, 0)),
        compiler_params=pltpu.CompilerParams(
            dimension_semantics=("parallel",)),
    )(x, enc_output, kpb, w_cat, w2, b_cat, ln_cat)


# --------------------------- pure-JAX reference ---------------------------

def decoder_layer_reference(x, enc, params, *, num_heads,
                            tgt_key_padding_mask=None, memory_key_padding_mask=None,
                            eps=1e-5):
    B, St, D = x.shape
    H, dh = num_heads, D // num_heads

    def ln(z, g, b):
        mu = z.mean(-1, keepdims=True)
        var = ((z - mu) ** 2).mean(-1, keepdims=True)
        return (z - mu) / jnp.sqrt(var + eps) * g + b

    def mha(q_in, kv_in, wq, bq, wk, bk, wv, bv, wo, bo, kp_mask, causal):
        Sq, Sk = q_in.shape[1], kv_in.shape[1]
        q = (q_in @ wq + bq).reshape(B, Sq, H, dh).transpose(0, 2, 1, 3)
        k = (kv_in @ wk + bk).reshape(B, Sk, H, dh).transpose(0, 2, 1, 3)
        v = (kv_in @ wv + bv).reshape(B, Sk, H, dh).transpose(0, 2, 1, 3)
        s = jnp.einsum('bhqd,bhkd->bhqk', q, k) / math.sqrt(dh)
        if kp_mask is not None:
            s = s + jnp.where(kp_mask, NEG_INF, 0.0)[:, None, None, :]
        if causal:
            cm = jnp.triu(jnp.ones((Sq, Sk), bool), 1)
            s = s + jnp.where(cm, NEG_INF, 0.0)
        p = jax.nn.softmax(s, axis=-1)
        ctx = jnp.einsum('bhqk,bhkd->bhqd', p, v).transpose(0, 2, 1, 3).reshape(B, Sq, D)
        return ctx @ wo + bo

    sp, cp = params["self_attn"], params["cross_attn"]
    sa = mha(x, x,
             sp["w_qkv"][:, :D], sp["b_qkv"][:, :D],
             sp["w_qkv"][:, D:2 * D], sp["b_qkv"][:, D:2 * D],
             sp["w_qkv"][:, 2 * D:], sp["b_qkv"][:, 2 * D:],
             sp["w_o"], sp["b_o"], tgt_key_padding_mask, True)
    x1 = ln(x + sa, params["norm1"]["g"], params["norm1"]["b"])
    ca = mha(x1, enc,
             cp["w_q"], cp["b_q"],
             cp["w_kv"][:, :D], cp["b_kv"][:, :D],
             cp["w_kv"][:, D:], cp["b_kv"][:, D:],
             cp["w_o"], cp["b_o"], memory_key_padding_mask, False)
    x2 = ln(x1 + ca, params["norm2"]["g"], params["norm2"]["b"])
    ff = jax.nn.relu(x2 @ params["fc1"]["w"] + params["fc1"]["b"]) \
         @ params["fc2"]["w"] + params["fc2"]["b"]
    return ln(x2 + ff, params["norm3"]["g"], params["norm3"]["b"])


# ------------------------------- parameters -------------------------------

def init_decoder_layer_params(key, d_model, d_ff, scale=0.02):
    ks = jax.random.split(key, 14)

    def w(i, din, dout):
        return jax.random.normal(ks[i], (din, dout), jnp.float32) * scale

    def b(i, dout):
        return jax.random.normal(ks[i], (1, dout), jnp.float32) * scale

    ones = lambda: jnp.ones((1, d_model), jnp.float32)
    zeros = lambda: jnp.zeros((1, d_model), jnp.float32)
    return {
        "self_attn": {"w_qkv": w(0, d_model, 3 * d_model), "b_qkv": b(1, 3 * d_model),
                      "w_o": w(2, d_model, d_model), "b_o": b(3, d_model)},
        "cross_attn": {"w_q": w(4, d_model, d_model), "b_q": b(5, d_model),
                       "w_kv": w(6, d_model, 2 * d_model), "b_kv": b(7, 2 * d_model),
                       "w_o": w(8, d_model, d_model), "b_o": b(9, d_model)},
        "fc1": {"w": w(10, d_model, d_ff), "b": b(11, d_ff)},
        "fc2": {"w": w(12, d_ff, d_model), "b": b(13, d_model)},
        "norm1": {"g": ones(), "b": zeros()},
        "norm2": {"g": ones(), "b": zeros()},
        "norm3": {"g": ones(), "b": zeros()},
    }


# ----------------------------------- main -----------------------------------

if __name__ == "__main__":
    D_MODEL, NUM_HEADS, D_FF = 128, 4, 256
    B, S_TGT, S_SRC = 2, 8, 16

    key = jax.random.PRNGKey(0)
    kparam, kx, ke = jax.random.split(key, 3)

    params = init_decoder_layer_params(kparam, D_MODEL, D_FF)
    x = jax.random.normal(kx, (B, S_TGT, D_MODEL), jnp.float32)
    enc_out = jax.random.normal(ke, (B, S_SRC, D_MODEL), jnp.float32)

    # key padding masks (True = padded position)
    tgt_kpm = jnp.zeros((B, S_TGT), bool).at[:, -1].set(True)
    mem_kpm = jnp.zeros((B, S_SRC), bool).at[:, -3:].set(True)

    fwd = jax.jit(partial(decoder_layer_forward, num_heads=NUM_HEADS))
    out = fwd(x, enc_out, params,
              tgt_key_padding_mask=tgt_kpm,
              memory_key_padding_mask=mem_kpm)
    out = jax.block_until_ready(out)

    assert out.shape == (B, S_TGT, D_MODEL), out.shape
    assert bool(jnp.all(jnp.isfinite(out)))

    ref = decoder_layer_reference(x, enc_out, params, num_heads=NUM_HEADS,
                                  tgt_key_padding_mask=tgt_kpm,
                                  memory_key_padding_mask=mem_kpm)
    err = float(jnp.max(jnp.abs(out - ref)))
    assert bool(jnp.allclose(out, ref, atol=5e-2, rtol=5e-2)), f"max abs err {err}"

    print("KERNEL_OK")
</pallas_src>

<mosaic_0001>
module attributes {stable_mosaic.version = 11 : i64} {
  func.func @_decoder_layer_kernel(%arg0: i32, %arg1: memref<2x8x128xf32, #tpu.memory_space<vmem>>, %arg2: memref<2x16x128xf32, #tpu.memory_space<vmem>>, %arg3: memref<2x2x128xf32, #tpu.memory_space<vmem>>, %arg4: memref<128x1280xbf16, #tpu.memory_space<vmem>>, %arg5: memref<256x128xbf16, #tpu.memory_space<vmem>>, %arg6: memref<1x1408xf32, #tpu.memory_space<vmem>>, %arg7: memref<6x128xf32, #tpu.memory_space<vmem>>, %arg8: memref<2x8x128xf32, #tpu.memory_space<vmem>>) attributes {dimension_semantics = [#tpu.dimension_semantics<parallel>], iteration_bounds = array<i64: 1>, scalar_prefetch = 0 : i64, scratch_operands = 0 : i64, tpu.core_type = #tpu.core_type<tc>, window_params = [{transform_indices = @transform_0, window_bounds = array<i64: 2, 8, 128>}, {transform_indices = @transform_1, window_bounds = array<i64: 2, 16, 128>}, {transform_indices = @transform_2, window_bounds = array<i64: 2, 2, 128>}, {pipeline_mode = #tpu.pipeline_mode<synchronous>, transform_indices = @transform_3, window_bounds = array<i64: 128, 1280>}, {pipeline_mode = #tpu.pipeline_mode<synchronous>, transform_indices = @transform_4, window_bounds = array<i64: 256, 128>}, {pipeline_mode = #tpu.pipeline_mode<synchronous>, transform_indices = @transform_5, window_bounds = array<i64: 1, 1408>}, {pipeline_mode = #tpu.pipeline_mode<synchronous>, transform_indices = @transform_6, window_bounds = array<i64: 6, 128>}, {transform_indices = @transform_7, window_bounds = array<i64: 2, 8, 128>}]} {
    %c0 = arith.constant 0 : index
    %c0_0 = arith.constant 0 : index
    %c0_1 = arith.constant 0 : index
    %0 = vector.load %arg1[%c0, %c0_0, %c0_1] : memref<2x8x128xf32, #tpu.memory_space<vmem>>, vector<2x8x128xf32>
    %1 = vector.shape_cast %0 : vector<2x8x128xf32> to vector<16x128xf32>
    %c0_2 = arith.constant 0 : index
    %c0_3 = arith.constant 0 : index
    %c0_4 = arith.constant 0 : index
    %2 = vector.load %arg2[%c0_2, %c0_3, %c0_4] : memref<2x16x128xf32, #tpu.memory_space<vmem>>, vector<2x16x128xf32>
    %3 = vector.shape_cast %2 : vector<2x16x128xf32> to vector<32x128xf32>
    %4 = arith.truncf %1 : vector<16x128xf32> to vector<16x128xbf16>
    %c0_5 = arith.constant 0 : index
    %c0_6 = arith.constant 0 : index
    %5 = vector.load %arg4[%c0_5, %c0_6] : memref<128x1280xbf16, #tpu.memory_space<vmem>>, vector<128x384xbf16>
    %cst = arith.constant dense<0.000000e+00> : vector<16x384xf32>
    %6 = tpu.matmul %4, %5, %cst {dimension_numbers = #tpu.dot_dimension_numbers<[1], [0], [0], [1], [0, 0, 1, 1], [], []>} : vector<16x128xbf16>, vector<128x384xbf16>, vector<16x384xf32> -> vector<16x384xf32>
    %c0_7 = arith.constant 0 : index
    %c0_8 = arith.constant 0 : index
    %7 = vector.load %arg6[%c0_7, %c0_8] : memref<1x1408xf32, #tpu.memory_space<vmem>>, vector<1x384xf32>
    %8 = vector.broadcast %7 : vector<1x384xf32> to vector<16x384xf32>
    %9 = arith.addf %6, %8 : vector<16x384xf32>
    %10 = vector.extract_strided_slice %9 {offsets = [0, 0], sizes = [16, 128], strides = [1, 1]} : vector<16x384xf32> to vector<16x128xf32>
    %11 = vector.extract_strided_slice %9 {offsets = [0, 128], sizes = [16, 128], strides = [1, 1]} : vector<16x384xf32> to vector<16x128xf32>
    %12 = vector.extract_strided_slice %9 {offsets = [0, 256], sizes = [16, 128], strides = [1, 1]} : vector<16x384xf32> to vector<16x128xf32>
    %13 = arith.truncf %10 : vector<16x128xf32> to vector<16x128xbf16>
    %14 = arith.truncf %11 : vector<16x128xf32> to vector<16x128xbf16>
    %15 = arith.truncf %12 : vector<16x128xf32> to vector<16x128xbf16>
    %16 = tpu.iota {dimensions = array<i32: 0>} : vector<8x8xi32>
    %17 = tpu.iota {dimensions = array<i32: 1>} : vector<8x8xi32>
    %18 = arith.cmpi sgt, %17, %16 : vector<8x8xi32>
    %cst_9 = arith.constant -1.000000e+09 : f32
    %cst_10 = arith.constant 0.000000e+00 : f32
    %19 = vector.broadcast %cst_9 : f32 to vector<8x8xf32>
    %20 = vector.broadcast %cst_10 : f32 to vector<8x8xf32>
    %21 = arith.select %18, %19, %20 : vector<8x8xi1>, vector<8x8xf32>
    %22 = vector.extract_strided_slice %13 {offsets = [0, 0], sizes = [8, 128], strides = [1, 1]} : vector<16x128xbf16> to vector<8x128xbf16>
    %23 = vector.extract_strided_slice %14 {offsets = [0, 0], sizes = [8, 128], strides = [1, 1]} : vector<16x128xbf16> to vector<8x128xbf16>
    %24 = vector.extract_strided_slice %15 {offsets = [0, 0], sizes = [8, 128], strides = [1, 1]} : vector<16x128xbf16> to vector<8x128xbf16>
    %c0_11 = arith.constant 0 : index
    %c0_12 = arith.constant 0 : index
    %c0_13 = arith.constant 0 : index
    %25 = vector.load %arg3[%c0_11, %c0_12, %c0_13] : memref<2x2x128xf32, #tpu.memory_space<vmem>>, vector<1x2x128xf32>
    %26 = vector.shape_cast %25 : vector<1x2x128xf32> to vector<2x128xf32>
    %27 = vector.extract_strided_slice %26 {offsets = [0, 0], sizes = [1, 8], strides = [1, 1]} : vector<2x128xf32> to vector<1x8xf32>
    %28 = vector.extract_strided_slice %22 {offsets = [0, 0], sizes = [8, 32], strides = [1, 1]} : vector<8x128xbf16> to vector<8x32xbf16>
    %29 = vector.extract_strided_slice %23 {offsets = [0, 0], sizes = [8, 32], strides = [1, 1]} : vector<8x128xbf16> to vector<8x32xbf16>
    %cst_14 = arith.constant dense<0.000000e+00> : vector<8x8xf32>
    %30 = tpu.matmul %28, %29, %cst_14 {dimension_numbers = #tpu.dot_dimension_numbers<[1], [1], [0], [0], [0, 0, 1, 0], [], []>} : vector<8x32xbf16>, vector<8x32xbf16>, vector<8x8xf32> -> vector<8x8xf32>
    %cst_15 = arith.constant 0.176776692 : f32
    %31 = vector.broadcast %cst_15 : f32 to vector<8x8xf32>
    %32 = arith.mulf %30, %31 : vector<8x8xf32>
    %33 = vector.broadcast %27 : vector<1x8xf32> to vector<8x8xf32>
    %34 = arith.addf %32, %33 : vector<8x8xf32>
    %35 = arith.addf %34, %21 : vector<8x8xf32>
    %cst_16 = arith.constant dense<0xFF800000> : vector<8xf32>
    %36 = vector.multi_reduction <maximumf>, %35, %cst_16 [1] : vector<8x8xf32> to vector<8xf32>
    %37 = vector.shape_cast %36 : vector<8xf32> to vector<8x1xf32>
    %38 = vector.broadcast %37 : vector<8x1xf32> to vector<8x8xf32>
    %39 = arith.subf %35, %38 : vector<8x8xf32>
    %40 = math.exp %39 : vector<8x8xf32>
    %cst_17 = arith.constant dense<0.000000e+00> : vector<8xf32>
    %41 = vector.multi_reduction <add>, %40, %cst_17 [1] : vector<8x8xf32> to vector<8xf32>
    %42 = vector.shape_cast %41 : vector<8xf32> to vector<8x1xf32>
    %43 = tpu.reciprocal %42 : vector<8x1xf32> -> vector<8x1xf32>
    %44 = vector.broadcast %43 : vector<8x1xf32> to vector<8x8xf32>
    %45 = arith.mulf %40, %44 : vector<8x8xf32>
    %46 = arith.truncf %45 : vector<8x8xf32> to vector<8x8xbf16>
    %47 = vector.extract_strided_slice %24 {offsets = [0, 0], sizes = [8, 32], strides = [1, 1]} : vector<8x128xbf16> to vector<8x32xbf16>
    %cst_18 = arith.constant dense<0.000000e+00> : vector<8x32xf32>
    %48 = tpu.matmul %46, %47, %cst_18 {dimension_numbers = #tpu.dot_dimension_numbers<[1], [0], [0], [1], [0, 0, 1, 1], [], []>} : vector<8x8xbf16>, vector<8x32xbf16>, vector<8x32xf32> -> vector<8x32xf32>
    %49 = vector.extract_strided_slice %22 {offsets = [0, 32], sizes = [8, 32], strides = [1, 1]} : vector<8x128xbf16> to vector<8x32xbf16>
    %50 = vector.extract_strided_slice %23 {offsets = [0, 32], sizes = [8, 32], strides = [1, 1]} : vector<8x128xbf16> to vector<8x32xbf16>
    %cst_19 = arith.constant dense<0.000000e+00> : vector<8x8xf32>
    %51 = tpu.matmul %49, %50, %cst_19 {dimension_numbers = #tpu.dot_dimension_numbers<[1], [1], [0], [0], [0, 0, 1, 0], [], []>} : vector<8x32xbf16>, vector<8x32xbf16>, vector<8x8xf32> -> vector<8x8xf32>
    %cst_20 = arith.constant 0.176776692 : f32
    %52 = vector.broadcast %cst_20 : f32 to vector<8x8xf32>
    %53 = arith.mulf %51, %52 : vector<8x8xf32>
    %54 = vector.broadcast %27 : vector<1x8xf32> to vector<8x8xf32>
    %55 = arith.addf %53, %54 : vector<8x8xf32>
    %56 = arith.addf %55, %21 : vector<8x8xf32>
    %cst_21 = arith.constant dense<0xFF800000> : vector<8xf32>
    %57 = vector.multi_reduction <maximumf>, %56, %cst_21 [1] : vector<8x8xf32> to vector<8xf32>
    %58 = vector.shape_cast %57 : vector<8xf32> to vector<8x1xf32>
    %59 = vector.broadcast %58 : vector<8x1xf32> to vector<8x8xf32>
    %60 = arith.subf %56, %59 : vector<8x8xf32>
    %61 = math.exp %60 : vector<8x8xf32>
    %cst_22 = arith.constant dense<0.000000e+00> : vector<8xf32>
    %62 = vector.multi_reduction <add>, %61, %cst_22 [1] : vector<8x8xf32> to vector<8xf32>
    %63 = vector.shape_cast %62 : vector<8xf32> to vector<8x1xf32>
    %64 = tpu.reciprocal %63 : vector<8x1xf32> -> vector<8x1xf32>
    %65 = vector.broadcast %64 : vector<8x1xf32> to vector<8x8xf32>
    %66 = arith.mulf %61, %65 : vector<8x8xf32>
    %67 = arith.truncf %66 : vector<8x8xf32> to vector<8x8xbf16>
    %68 = vector.extract_strided_slice %24 {offsets = [0, 32], sizes = [8, 32], strides = [1, 1]} : vector<8x128xbf16> to vector<8x32xbf16>
    %cst_23 = arith.constant dense<0.000000e+00> : vector<8x32xf32>
    %69 = tpu.matmul %67, %68, %cst_23 {dimension_numbers = #tpu.dot_dimension_numbers<[1], [0], [0], [1], [0, 0, 1, 1], [], []>} : vector<8x8xbf16>, vector<8x32xbf16>, vector<8x32xf32> -> vector<8x32xf32>
    %70 = vector.extract_strided_slice %22 {offsets = [0, 64], sizes = [8, 32], strides = [1, 1]} : vector<8x128xbf16> to vector<8x32xbf16>
    %71 = vector.extract_strided_slice %23 {offsets = [0, 64], sizes = [8, 32], strides = [1, 1]} : vector<8x128xbf16> to vector<8x32xbf16>
    %cst_24 = arith.constant dense<0.000000e+00> : vector<8x8xf32>
    %72 = tpu.matmul %70, %71, %cst_24 {dimension_numbers = #tpu.dot_dimension_numbers<[1], [1], [0], [0], [0, 0, 1, 0], [], []>} : vector<8x32xbf16>, vector<8x32xbf16>, vector<8x8xf32> -> vector<8x8xf32>
    %cst_25 = arith.constant 0.176776692 : f32
    %73 = vector.broadcast %cst_25 : f32 to vector<8x8xf32>
    %74 = arith.mulf %72, %73 : vector<8x8xf32>
    %75 = vector.broadcast %27 : vector<1x8xf32> to vector<8x8xf32>
    %76 = arith.addf %74, %75 : vector<8x8xf32>
    %77 = arith.addf %76, %21 : vector<8x8xf32>
    %cst_26 = arith.constant dense<0xFF800000> : vector<8xf32>
    %78 = vector.multi_reduction <maximumf>, %77, %cst_26 [1] : vector<8x8xf32> to vector<8xf32>
    %79 = vector.shape_cast %78 : vector<8xf32> to vector<8x1xf32>
    %80 = vector.broadcast %79 : vector<8x1xf32> to vector<8x8xf32>
    %81 = arith.subf %77, %80 : vector<8x8xf32>
    %82 = math.exp %81 : vector<8x8xf32>
    %cst_27 = arith.constant dense<0.000000e+00> : vector<8xf32>
    %83 = vector.multi_reduction <add>, %82, %cst_27 [1] : vector<8x8xf32> to vector<8xf32>
    %84 = vector.shape_cast %83 : vector<8xf32> to vector<8x1xf32>
    %85 = tpu.reciprocal %84 : vector<8x1xf32> -> vector<8x1xf32>
    %86 = vector.broadcast %85 : vector<8x1xf32> to vector<8x8xf32>
    %87 = arith.mulf %82, %86 : vector<8x8xf32>
    %88 = arith.truncf %87 : vector<8x8xf32> to vector<8x8xbf16>
    %89 = vector.extract_strided_slice %24 {offsets = [0, 64], sizes = [8, 32], strides = [1, 1]} : vector<8x128xbf16> to vector<8x32xbf16>
    %cst_28 = arith.constant dense<0.000000e+00> : vector<8x32xf32>
    %90 = tpu.matmul %88, %89, %cst_28 {dimension_numbers = #tpu.dot_dimension_numbers<[1], [0], [0], [1], [0, 0, 1, 1], [], []>} : vector<8x8xbf16>, vector<8x32xbf16>, vector<8x32xf32> -> vector<8x32xf32>
    %91 = vector.extract_strided_slice %22 {offsets = [0, 96], sizes = [8, 32], strides = [1, 1]} : vector<8x128xbf16> to vector<8x32xbf16>
    %92 = vector.extract_strided_slice %23 {offsets = [0, 96], sizes = [8, 32], strides = [1, 1]} : vector<8x128xbf16> to vector<8x32xbf16>
    %cst_29 = arith.constant dense<0.000000e+00> : vector<8x8xf32>
    %93 = tpu.matmul %91, %92, %cst_29 {dimension_numbers = #tpu.dot_dimension_numbers<[1], [1], [0], [0], [0, 0, 1, 0], [], []>} : vector<8x32xbf16>, vector<8x32xbf16>, vector<8x8xf32> -> vector<8x8xf32>
    %cst_30 = arith.constant 0.176776692 : f32
    %94 = vector.broadcast %cst_30 : f32 to vector<8x8xf32>
    %95 = arith.mulf %93, %94 : vector<8x8xf32>
    %96 = vector.broadcast %27 : vector<1x8xf32> to vector<8x8xf32>
    %97 = arith.addf %95, %96 : vector<8x8xf32>
    %98 = arith.addf %97, %21 : vector<8x8xf32>
    %cst_31 = arith.constant dense<0xFF800000> : vector<8xf32>
    %99 = vector.multi_reduction <maximumf>, %98, %cst_31 [1] : vector<8x8xf32> to vector<8xf32>
    %100 = vector.shape_cast %99 : vector<8xf32> to vector<8x1xf32>
    %101 = vector.broadcast %100 : vector<8x1xf32> to vector<8x8xf32>
    %102 = arith.subf %98, %101 : vector<8x8xf32>
    %103 = math.exp %102 : vector<8x8xf32>
    %cst_32 = arith.constant dense<0.000000e+00> : vector<8xf32>
    %104 = vector.multi_reduction <add>, %103, %cst_32 [1] : vector<8x8xf32> to vector<8xf32>
    %105 = vector.shape_cast %104 : vector<8xf32> to vector<8x1xf32>
    %106 = tpu.reciprocal %105 : vector<8x1xf32> -> vector<8x1xf32>
    %107 = vector.broadcast %106 : vector<8x1xf32> to vector<8x8xf32>
    %108 = arith.mulf %103, %107 : vector<8x8xf32>
    %109 = arith.truncf %108 : vector<8x8xf32> to vector<8x8xbf16>
    %110 = vector.extract_strided_slice %24 {offsets = [0, 96], sizes = [8, 32], strides = [1, 1]} : vector<8x128xbf16> to vector<8x32xbf16>
    %cst_33 = arith.constant dense<0.000000e+00> : vector<8x32xf32>
    %111 = tpu.matmul %109, %110, %cst_33 {dimension_numbers = #tpu.dot_dimension_numbers<[1], [0], [0], [1], [0, 0, 1, 1], [], []>} : vector<8x8xbf16>, vector<8x32xbf16>, vector<8x32xf32> -> vector<8x32xf32>
    %112 = tpu.concatenate %48, %69, %90, %111 in 1 : vector<8x32xf32>, vector<8x32xf32>, vector<8x32xf32>, vector<8x32xf32> -> vector<8x128xf32>
    %113 = vector.extract_strided_slice %13 {offsets = [8, 0], sizes = [8, 128], strides = [1, 1]} : vector<16x128xbf16> to vector<8x128xbf16>
    %114 = vector.extract_strided_slice %14 {offsets = [8, 0], sizes = [8, 128], strides = [1, 1]} : vector<16x128xbf16> to vector<8x128xbf16>
    %115 = vector.extract_strided_slice %15 {offsets = [8, 0], sizes = [8, 128], strides = [1, 1]} : vector<16x128xbf16> to vector<8x128xbf16>
    %c1 = arith.constant 1 : index
    %c0_34 = arith.constant 0 : index
    %c0_35 = arith.constant 0 : index
    %116 = vector.load %arg3[%c1, %c0_34, %c0_35] : memref<2x2x128xf32, #tpu.memory_space<vmem>>, vector<1x2x128xf32>
    %117 = vector.shape_cast %116 : vector<1x2x128xf32> to vector<2x128xf32>
    %118 = vector.extract_strided_slice %117 {offsets = [0, 0], sizes = [1, 8], strides = [1, 1]} : vector<2x128xf32> to vector<1x8xf32>
    %119 = vector.extract_strided_slice %113 {offsets = [0, 0], sizes = [8, 32], strides = [1, 1]} : vector<8x128xbf16> to vector<8x32xbf16>
    %120 = vector.extract_strided_slice %114 {offsets = [0, 0], sizes = [8, 32], strides = [1, 1]} : vector<8x128xbf16> to vector<8x32xbf16>
    %cst_36 = arith.constant dense<0.000000e+00> : vector<8x8xf32>
    %121 = tpu.matmul %119, %120, %cst_36 {dimension_numbers = #tpu.dot_dimension_numbers<[1], [1], [0], [0], [0, 0, 1, 0], [], []>} : vector<8x32xbf16>, vector<8x32xbf16>, vector<8x8xf32> -> vector<8x8xf32>
    %cst_37 = arith.constant 0.176776692 : f32
    %122 = vector.broadcast %cst_37 : f32 to vector<8x8xf32>
    %123 = arith.mulf %121, %122 : vector<8x8xf32>
    %124 = vector.broadcast %118 : vector<1x8xf32> to vector<8x8xf32>
    %125 = arith.addf %123, %124 : vector<8x8xf32>
    %126 = arith.addf %125, %21 : vector<8x8xf32>
    %cst_38 = arith.constant dense<0xFF800000> : vector<8xf32>
    %127 = vector.multi_reduction <maximumf>, %126, %cst_38 [1] : vector<8x8xf32> to vector<8xf32>
    %128 = vector.shape_cast %127 : vector<8xf32> to vector<8x1xf32>
    %129 = vector.broadcast %128 : vector<8x1xf32> to vector<8x8xf32>
    %130 = arith.subf %126, %129 : vector<8x8xf32>
    %131 = math.exp %130 : vector<8x8xf32>
    %cst_39 = arith.constant dense<0.000000e+00> : vector<8xf32>
    %132 = vector.multi_reduction <add>, %131, %cst_39 [1] : vector<8x8xf32> to vector<8xf32>
    %133 = vector.shape_cast %132 : vector<8xf32> to vector<8x1xf32>
    %134 = tpu.reciprocal %133 : vector<8x1xf32> -> vector<8x1xf32>
    %135 = vector.broadcast %134 : vector<8x1xf32> to vector<8x8xf32>
    %136 = arith.mulf %131, %135 : vector<8x8xf32>
    %137 = arith.truncf %136 : vector<8x8xf32> to vector<8x8xbf16>
    %138 = vector.extract_strided_slice %115 {offsets = [0, 0], sizes = [8, 32], strides = [1, 1]} : vector<8x128xbf16> to vector<8x32xbf16>
    %cst_40 = arith.constant dense<0.000000e+00> : vector<8x32xf32>
    %139 = tpu.matmul %137, %138, %cst_40 {dimension_numbers = #tpu.dot_dimension_numbers<[1], [0], [0], [1], [0, 0, 1, 1], [], []>} : vector<8x8xbf16>, vector<8x32xbf16>, vector<8x32xf32> -> vector<8x32xf32>
    %140 = vector.extract_strided_slice %113 {offsets = [0, 32], sizes = [8, 32], strides = [1, 1]} : vector<8x128xbf16> to vector<8x32xbf16>
    %141 = vector.extract_strided_slice %114 {offsets = [0, 32], sizes = [8, 32], strides = [1, 1]} : vector<8x128xbf16> to vector<8x32xbf16>
    %cst_41 = arith.constant dense<0.000000e+00> : vector<8x8xf32>
    %142 = tpu.matmul %140, %141, %cst_41 {dimension_numbers = #tpu.dot_dimension_numbers<[1], [1], [0], [0], [0, 0, 1, 0], [], []>} : vector<8x32xbf16>, vector<8x32xbf16>, vector<8x8xf32> -> vector<8x8xf32>
    %cst_42 = arith.constant 0.176776692 : f32
    %143 = vector.broadcast %cst_42 : f32 to vector<8x8xf32>
    %144 = arith.mulf %142, %143 : vector<8x8xf32>
    %145 = vector.broadcast %118 : vector<1x8xf32> to vector<8x8xf32>
    %146 = arith.addf %144, %145 : vector<8x8xf32>
    %147 = arith.addf %146, %21 : vector<8x8xf32>
    %cst_43 = arith.constant dense<0xFF800000> : vector<8xf32>
    %148 = vector.multi_reduction <maximumf>, %147, %cst_43 [1] : vector<8x8xf32> to vector<8xf32>
    %149 = vector.shape_cast %148 : vector<8xf32> to vector<8x1xf32>
    %150 = vector.broadcast %149 : vector<8x1xf32> to vector<8x8xf32>
    %151 = arith.subf %147, %150 : vector<8x8xf32>
    %152 = math.exp %151 : vector<8x8xf32>
    %cst_44 = arith.constant dense<0.000000e+00> : vector<8xf32>
    %153 = vector.multi_reduction <add>, %152, %cst_44 [1] : vector<8x8xf32> to vector<8xf32>
    %154 = vector.shape_cast %153 : vector<8xf32> to vector<8x1xf32>
    %155 = tpu.reciprocal %154 : vector<8x1xf32> -> vector<8x1xf32>
    %156 = vector.broadcast %155 : vector<8x1xf32> to vector<8x8xf32>
    %157 = arith.mulf %152, %156 : vector<8x8xf32>
    %158 = arith.truncf %157 : vector<8x8xf32> to vector<8x8xbf16>
    %159 = vector.extract_strided_slice %115 {offsets = [0, 32], sizes = [8, 32], strides = [1, 1]} : vector<8x128xbf16> to vector<8x32xbf16>
    %cst_45 = arith.constant dense<0.000000e+00> : vector<8x32xf32>
    %160 = tpu.matmul %158, %159, %cst_45 {dimension_numbers = #tpu.dot_dimension_numbers<[1], [0], [0], [1], [0, 0, 1, 1], [], []>} : vector<8x8xbf16>, vector<8x32xbf16>, vector<8x32xf32> -> vector<8x32xf32>
    %161 = vector.extract_strided_slice %113 {offsets = [0, 64], sizes = [8, 32], strides = [1, 1]} : vector<8x128xbf16> to vector<8x32xbf16>
    %162 = vector.extract_strided_slice %114 {offsets = [0, 64], sizes = [8, 32], strides = [1, 1]} : vector<8x128xbf16> to vector<8x32xbf16>
    %cst_46 = arith.constant dense<0.000000e+00> : vector<8x8xf32>
    %163 = tpu.matmul %161, %162, %cst_46 {dimension_numbers = #tpu.dot_dimension_numbers<[1], [1], [0], [0], [0, 0, 1, 0], [], []>} : vector<8x32xbf16>, vector<8x32xbf16>, vector<8x8xf32> -> vector<8x8xf32>
    %cst_47 = arith.constant 0.176776692 : f32
    %164 = vector.broadcast %cst_47 : f32 to vector<8x8xf32>
    %165 = arith.mulf %163, %164 : vector<8x8xf32>
    %166 = vector.broadcast %118 : vector<1x8xf32> to vector<8x8xf32>
    %167 = arith.addf %165, %166 : vector<8x8xf32>
    %168 = arith.addf %167, %21 : vector<8x8xf32>
    %cst_48 = arith.constant dense<0xFF800000> : vector<8xf32>
    %169 = vector.multi_reduction <maximumf>, %168, %cst_48 [1] : vector<8x8xf32> to vector<8xf32>
    %170 = vector.shape_cast %169 : vector<8xf32> to vector<8x1xf32>
    %171 = vector.broadcast %170 : vector<8x1xf32> to vector<8x8xf32>
    %172 = arith.subf %168, %171 : vector<8x8xf32>
    %173 = math.exp %172 : vector<8x8xf32>
    %cst_49 = arith.constant dense<0.000000e+00> : vector<8xf32>
    %174 = vector.multi_reduction <add>, %173, %cst_49 [1] : vector<8x8xf32> to vector<8xf32>
    %175 = vector.shape_cast %174 : vector<8xf32> to vector<8x1xf32>
    %176 = tpu.reciprocal %175 : vector<8x1xf32> -> vector<8x1xf32>
    %177 = vector.broadcast %176 : vector<8x1xf32> to vector<8x8xf32>
    %178 = arith.mulf %173, %177 : vector<8x8xf32>
    %179 = arith.truncf %178 : vector<8x8xf32> to vector<8x8xbf16>
    %180 = vector.extract_strided_slice %115 {offsets = [0, 64], sizes = [8, 32], strides = [1, 1]} : vector<8x128xbf16> to vector<8x32xbf16>
    %cst_50 = arith.constant dense<0.000000e+00> : vector<8x32xf32>
    %181 = tpu.matmul %179, %180, %cst_50 {dimension_numbers = #tpu.dot_dimension_numbers<[1], [0], [0], [1], [0, 0, 1, 1], [], []>} : vector<8x8xbf16>, vector<8x32xbf16>, vector<8x32xf32> -> vector<8x32xf32>
    %182 = vector.extract_strided_slice %113 {offsets = [0, 96], sizes = [8, 32], strides = [1, 1]} : vector<8x128xbf16> to vector<8x32xbf16>
    %183 = vector.extract_strided_slice %114 {offsets = [0, 96], sizes = [8, 32], strides = [1, 1]} : vector<8x128xbf16> to vector<8x32xbf16>
    %cst_51 = arith.constant dense<0.000000e+00> : vector<8x8xf32>
    %184 = tpu.matmul %182, %183, %cst_51 {dimension_numbers = #tpu.dot_dimension_numbers<[1], [1], [0], [0], [0, 0, 1, 0], [], []>} : vector<8x32xbf16>, vector<8x32xbf16>, vector<8x8xf32> -> vector<8x8xf32>
    %cst_52 = arith.constant 0.176776692 : f32
    %185 = vector.broadcast %cst_52 : f32 to vector<8x8xf32>
    %186 = arith.mulf %184, %185 : vector<8x8xf32>
    %187 = vector.broadcast %118 : vector<1x8xf32> to vector<8x8xf32>
    %188 = arith.addf %186, %187 : vector<8x8xf32>
    %189 = arith.addf %188, %21 : vector<8x8xf32>
    %cst_53 = arith.constant dense<0xFF800000> : vector<8xf32>
    %190 = vector.multi_reduction <maximumf>, %189, %cst_53 [1] : vector<8x8xf32> to vector<8xf32>
    %191 = vector.shape_cast %190 : vector<8xf32> to vector<8x1xf32>
    %192 = vector.broadcast %191 : vector<8x1xf32> to vector<8x8xf32>
    %193 = arith.subf %189, %192 : vector<8x8xf32>
    %194 = math.exp %193 : vector<8x8xf32>
    %cst_54 = arith.constant dense<0.000000e+00> : vector<8xf32>
    %195 = vector.multi_reduction <add>, %194, %cst_54 [1] : vector<8x8xf32> to vector<8xf32>
    %196 = vector.shape_cast %195 : vector<8xf32> to vector<8x1xf32>
    %197 = tpu.reciprocal %196 : vector<8x1xf32> -> vector<8x1xf32>
    %198 = vector.broadcast %197 : vector<8x1xf32> to vector<8x8xf32>
    %199 = arith.mulf %194, %198 : vector<8x8xf32>
    %200 = arith.truncf %199 : vector<8x8xf32> to vector<8x8xbf16>
    %201 = vector.extract_strided_slice %115 {offsets = [0, 96], sizes = [8, 32], strides = [1, 1]} : vector<8x128xbf16> to vector<8x32xbf16>
    %cst_55 = arith.constant dense<0.000000e+00> : vector<8x32xf32>
    %202 = tpu.matmul %200, %201, %cst_55 {dimension_numbers = #tpu.dot_dimension_numbers<[1], [0], [0], [1], [0, 0, 1, 1], [], []>} : vector<8x8xbf16>, vector<8x32xbf16>, vector<8x32xf32> -> vector<8x32xf32>
    %203 = tpu.concatenate %139, %160, %181, %202 in 1 : vector<8x32xf32>, vector<8x32xf32>, vector<8x32xf32>, vector<8x32xf32> -> vector<8x128xf32>
    %204 = tpu.concatenate %112, %203 in 0 : vector<8x128xf32>, vector<8x128xf32> -> vector<16x128xf32>
    %205 = arith.truncf %204 : vector<16x128xf32> to vector<16x128xbf16>
    %c0_56 = arith.constant 0 : index
    %c384 = arith.constant 384 : index
    %206 = vector.load %arg4[%c0_56, %c384] : memref<128x1280xbf16, #tpu.memory_space<vmem>>, vector<128x128xbf16>
    %cst_57 = arith.constant dense<0.000000e+00> : vector<16x128xf32>
    %207 = tpu.matmul %205, %206, %cst_57 {dimension_numbers = #tpu.dot_dimension_numbers<[1], [0], [0], [1], [0, 0, 1, 1], [], []>} : vector<16x128xbf16>, vector<128x128xbf16>, vector<16x128xf32> -> vector<16x128xf32>
    %c0_58 = arith.constant 0 : index
    %c384_59 = arith.constant 384 : index
    %208 = vector.load %arg6[%c0_58, %c384_59] : memref<1x1408xf32, #tpu.memory_space<vmem>>, vector<1x128xf32>
    %209 = vector.broadcast %208 : vector<1x128xf32> to vector<16x128xf32>
    %210 = arith.addf %207, %209 : vector<16x128xf32>
    %211 = arith.addf %1, %210 : vector<16x128xf32>
    %c0_60 = arith.constant 0 : index
    %c0_61 = arith.constant 0 : index
    %212 = vector.load %arg7[%c0_60, %c0_61] : memref<6x128xf32, #tpu.memory_space<vmem>>, vector<1x128xf32>
    %c1_62 = arith.constant 1 : index
    %c0_63 = arith.constant 0 : index
    %213 = vector.load %arg7[%c1_62, %c0_63] : memref<6x128xf32, #tpu.memory_space<vmem>>, vector<1x128xf32>
    %cst_64 = arith.constant dense<0.000000e+00> : vector<16xf32>
    %214 = vector.multi_reduction <add>, %211, %cst_64 [1] : vector<16x128xf32> to vector<16xf32>
    %215 = vector.shape_cast %214 : vector<16xf32> to vector<16x1xf32>
    %cst_65 = arith.constant 1.280000e+02 : f32
    %216 = vector.broadcast %cst_65 : f32 to vector<16x1xf32>
    %217 = arith.divf %215, %216 : vector<16x1xf32>
    %218 = vector.broadcast %217 : vector<16x1xf32> to vector<16x128xf32>
    %219 = arith.subf %211, %218 : vector<16x128xf32>
    %220 = arith.mulf %219, %219 : vector<16x128xf32>
    %cst_66 = arith.constant dense<0.000000e+00> : vector<16xf32>
    %221 = vector.multi_reduction <add>, %220, %cst_66 [1] : vector<16x128xf32> to vector<16xf32>
    %222 = vector.shape_cast %221 : vector<16xf32> to vector<16x1xf32>
    %cst_67 = arith.constant 1.280000e+02 : f32
    %223 = vector.broadcast %cst_67 : f32 to vector<16x1xf32>
    %224 = arith.divf %222, %223 : vector<16x1xf32>
    %cst_68 = arith.constant 9.99999974E-6 : f32
    %225 = vector.broadcast %cst_68 : f32 to vector<16x1xf32>
    %226 = arith.addf %224, %225 : vector<16x1xf32>
    %227 = math.rsqrt %226 : vector<16x1xf32>
    %228 = vector.broadcast %227 : vector<16x1xf32> to vector<16x128xf32>
    %229 = arith.mulf %219, %228 : vector<16x128xf32>
    %230 = vector.broadcast %212 : vector<1x128xf32> to vector<16x128xf32>
    %231 = arith.mulf %229, %230 : vector<16x128xf32>
    %232 = vector.broadcast %213 : vector<1x128xf32> to vector<16x128xf32>
    %233 = arith.addf %231, %232 : vector<16x128xf32>
    %234 = arith.truncf %233 : vector<16x128xf32> to vector<16x128xbf16>
    %c0_69 = arith.constant 0 : index
    %c512 = arith.constant 512 : index
    %235 = vector.load %arg4[%c0_69, %c512] : memref<128x1280xbf16, #tpu.memory_space<vmem>>, vector<128x128xbf16>
    %cst_70 = arith.constant dense<0.000000e+00> : vector<16x128xf32>
    %236 = tpu.matmul %234, %235, %cst_70 {dimension_numbers = #tpu.dot_dimension_numbers<[1], [0], [0], [1], [0, 0, 1, 1], [], []>} : vector<16x128xbf16>, vector<128x128xbf16>, vector<16x128xf32> -> vector<16x128xf32>
    %c0_71 = arith.constant 0 : index
    %c512_72 = arith.constant 512 : index
    %237 = vector.load %arg6[%c0_71, %c512_72] : memref<1x1408xf32, #tpu.memory_space<vmem>>, vector<1x128xf32>
    %238 = vector.broadcast %237 : vector<1x128xf32> to vector<16x128xf32>
    %239 = arith.addf %236, %238 : vector<16x128xf32>
    %240 = arith.truncf %3 : vector<32x128xf32> to vector<32x128xbf16>
    %c0_73 = arith.constant 0 : index
    %c640 = arith.constant 640 : index
    %241 = vector.load %arg4[%c0_73, %c640] : memref<128x1280xbf16, #tpu.memory_space<vmem>>, vector<128x256xbf16>
    %cst_74 = arith.constant dense<0.000000e+00> : vector<32x256xf32>
    %242 = tpu.matmul %240, %241, %cst_74 {dimension_numbers = #tpu.dot_dimension_numbers<[1], [0], [0], [1], [0, 0, 1, 1], [], []>} : vector<32x128xbf16>, vector<128x256xbf16>, vector<32x256xf32> -> vector<32x256xf32>
    %c0_75 = arith.constant 0 : index
    %c640_76 = arith.constant 640 : index
    %243 = vector.load %arg6[%c0_75, %c640_76] : memref<1x1408xf32, #tpu.memory_space<vmem>>, vector<1x256xf32>
    %244 = vector.broadcast %243 : vector<1x256xf32> to vector<32x256xf32>
    %245 = arith.addf %242, %244 : vector<32x256xf32>
    %246 = vector.extract_strided_slice %245 {offsets = [0, 0], sizes = [32, 128], strides = [1, 1]} : vector<32x256xf32> to vector<32x128xf32>
    %247 = vector.extract_strided_slice %245 {offsets = [0, 128], sizes = [32, 128], strides = [1, 1]} : vector<32x256xf32> to vector<32x128xf32>
    %248 = arith.truncf %239 : vector<16x128xf32> to vector<16x128xbf16>
    %249 = arith.truncf %246 : vector<32x128xf32> to vector<32x128xbf16>
    %250 = arith.truncf %247 : vector<32x128xf32> to vector<32x128xbf16>
    %251 = vector.extract_strided_slice %248 {offsets = [0, 0], sizes = [8, 128], strides = [1, 1]} : vector<16x128xbf16> to vector<8x128xbf16>
    %252 = vector.extract_strided_slice %249 {offsets = [0, 0], sizes = [16, 128], strides = [1, 1]} : vector<32x128xbf16> to vector<16x128xbf16>
    %253 = vector.extract_strided_slice %250 {offsets = [0, 0], sizes = [16, 128], strides = [1, 1]} : vector<32x128xbf16> to vector<16x128xbf16>
    %c0_77 = arith.constant 0 : index
    %c0_78 = arith.constant 0 : index
    %c0_79 = arith.constant 0 : index
    %254 = vector.load %arg3[%c0_77, %c0_78, %c0_79] : memref<2x2x128xf32, #tpu.memory_space<vmem>>, vector<1x2x128xf32>
    %255 = vector.shape_cast %254 : vector<1x2x128xf32> to vector<2x128xf32>
    %256 = vector.extract_strided_slice %255 {offsets = [1, 0], sizes = [1, 16], strides = [1, 1]} : vector<2x128xf32> to vector<1x16xf32>
    %257 = vector.extract_strided_slice %251 {offsets = [0, 0], sizes = [8, 32], strides = [1, 1]} : vector<8x128xbf16> to vector<8x32xbf16>
    %258 = vector.extract_strided_slice %252 {offsets = [0, 0], sizes = [16, 32], strides = [1, 1]} : vector<16x128xbf16> to vector<16x32xbf16>
    %cst_80 = arith.constant dense<0.000000e+00> : vector<8x16xf32>
    %259 = tpu.matmul %257, %258, %cst_80 {dimension_numbers = #tpu.dot_dimension_numbers<[1], [1], [0], [0], [0, 0, 1, 0], [], []>} : vector<8x32xbf16>, vector<16x32xbf16>, vector<8x16xf32> -> vector<8x16xf32>
    %cst_81 = arith.constant 0.176776692 : f32
    %260 = vector.broadcast %cst_81 : f32 to vector<8x16xf32>
    %261 = arith.mulf %259, %260 : vector<8x16xf32>
    %262 = vector.broadcast %256 : vector<1x16xf32> to vector<8x16xf32>
    %263 = arith.addf %261, %262 : vector<8x16xf32>
    %cst_82 = arith.constant dense<0xFF800000> : vector<8xf32>
    %264 = vector.multi_reduction <maximumf>, %263, %cst_82 [1] : vector<8x16xf32> to vector<8xf32>
    %265 = vector.shape_cast %264 : vector<8xf32> to vector<8x1xf32>
    %266 = vector.broadcast %265 : vector<8x1xf32> to vector<8x16xf32>
    %267 = arith.subf %263, %266 : vector<8x16xf32>
    %268 = math.exp %267 : vector<8x16xf32>
    %cst_83 = arith.constant dense<0.000000e+00> : vector<8xf32>
    %269 = vector.multi_reduction <add>, %268, %cst_83 [1] : vector<8x16xf32> to vector<8xf32>
    %270 = vector.shape_cast %269 : vector<8xf32> to vector<8x1xf32>
    %271 = tpu.reciprocal %270 : vector<8x1xf32> -> vector<8x1xf32>
    %272 = vector.broadcast %271 : vector<8x1xf32> to vector<8x16xf32>
    %273 = arith.mulf %268, %272 : vector<8x16xf32>
    %274 = arith.truncf %273 : vector<8x16xf32> to vector<8x16xbf16>
    %275 = vector.extract_strided_slice %253 {offsets = [0, 0], sizes = [16, 32], strides = [1, 1]} : vector<16x128xbf16> to vector<16x32xbf16>
    %cst_84 = arith.constant dense<0.000000e+00> : vector<8x32xf32>
    %276 = tpu.matmul %274, %275, %cst_84 {dimension_numbers = #tpu.dot_dimension_numbers<[1], [0], [0], [1], [0, 0, 1, 1], [], []>} : vector<8x16xbf16>, vector<16x32xbf16>, vector<8x32xf32> -> vector<8x32xf32>
    %277 = vector.extract_strided_slice %251 {offsets = [0, 32], sizes = [8, 32], strides = [1, 1]} : vector<8x128xbf16> to vector<8x32xbf16>
    %278 = vector.extract_strided_slice %252 {offsets = [0, 32], sizes = [16, 32], strides = [1, 1]} : vector<16x128xbf16> to vector<16x32xbf16>
    %cst_85 = arith.constant dense<0.000000e+00> : vector<8x16xf32>
    %279 = tpu.matmul %277, %278, %cst_85 {dimension_numbers = #tpu.dot_dimension_numbers<[1], [1], [0], [0], [0, 0, 1, 0], [], []>} : vector<8x32xbf16>, vector<16x32xbf16>, vector<8x16xf32> -> vector<8x16xf32>
    %cst_86 = arith.constant 0.176776692 : f32
    %280 = vector.broadcast %cst_86 : f32 to vector<8x16xf32>
    %281 = arith.mulf %279, %280 : vector<8x16xf32>
    %282 = vector.broadcast %256 : vector<1x16xf32> to vector<8x16xf32>
    %283 = arith.addf %281, %282 : vector<8x16xf32>
    %cst_87 = arith.constant dense<0xFF800000> : vector<8xf32>
    %284 = vector.multi_reduction <maximumf>, %283, %cst_87 [1] : vector<8x16xf32> to vector<8xf32>
    %285 = vector.shape_cast %284 : vector<8xf32> to vector<8x1xf32>
    %286 = vector.broadcast %285 : vector<8x1xf32> to vector<8x16xf32>
    %287 = arith.subf %283, %286 : vector<8x16xf32>
    %288 = math.exp %287 : vector<8x16xf32>
    %cst_88 = arith.constant dense<0.000000e+00> : vector<8xf32>
    %289 = vector.multi_reduction <add>, %288, %cst_88 [1] : vector<8x16xf32> to vector<8xf32>
    %290 = vector.shape_cast %289 : vector<8xf32> to vector<8x1xf32>
    %291 = tpu.reciprocal %290 : vector<8x1xf32> -> vector<8x1xf32>
    %292 = vector.broadcast %291 : vector<8x1xf32> to vector<8x16xf32>
    %293 = arith.mulf %288, %292 : vector<8x16xf32>
    %294 = arith.truncf %293 : vector<8x16xf32> to vector<8x16xbf16>
    %295 = vector.extract_strided_slice %253 {offsets = [0, 32], sizes = [16, 32], strides = [1, 1]} : vector<16x128xbf16> to vector<16x32xbf16>
    %cst_89 = arith.constant dense<0.000000e+00> : vector<8x32xf32>
    %296 = tpu.matmul %294, %295, %cst_89 {dimension_numbers = #tpu.dot_dimension_numbers<[1], [0], [0], [1], [0, 0, 1, 1], [], []>} : vector<8x16xbf16>, vector<16x32xbf16>, vector<8x32xf32> -> vector<8x32xf32>
    %297 = vector.extract_strided_slice %251 {offsets = [0, 64], sizes = [8, 32], strides = [1, 1]} : vector<8x128xbf16> to vector<8x32xbf16>
    %298 = vector.extract_strided_slice %252 {offsets = [0, 64], sizes = [16, 32], strides = [1, 1]} : vector<16x128xbf16> to vector<16x32xbf16>
    %cst_90 = arith.constant dense<0.000000e+00> : vector<8x16xf32>
    %299 = tpu.matmul %297, %298, %cst_90 {dimension_numbers = #tpu.dot_dimension_numbers<[1], [1], [0], [0], [0, 0, 1, 0], [], []>} : vector<8x32xbf16>, vector<16x32xbf16>, vector<8x16xf32> -> vector<8x16xf32>
    %cst_91 = arith.constant 0.176776692 : f32
    %300 = vector.broadcast %cst_91 : f32 to vector<8x16xf32>
    %301 = arith.mulf %299, %300 : vector<8x16xf32>
    %302 = vector.broadcast %256 : vector<1x16xf32> to vector<8x16xf32>
    %303 = arith.addf %301, %302 : vector<8x16xf32>
    %cst_92 = arith.constant dense<0xFF800000> : vector<8xf32>
    %304 = vector.multi_reduction <maximumf>, %303, %cst_92 [1] : vector<8x16xf32> to vector<8xf32>
    %305 = vector.shape_cast %304 : vector<8xf32> to vector<8x1xf32>
    %306 = vector.broadcast %305 : vector<8x1xf32> to vector<8x16xf32>
    %307 = arith.subf %303, %306 : vector<8x16xf32>
    %308 = math.exp %307 : vector<8x16xf32>
    %cst_93 = arith.constant dense<0.000000e+00> : vector<8xf32>
    %309 = vector.multi_reduction <add>, %308, %cst_93 [1] : vector<8x16xf32> to vector<8xf32>
    %310 = vector.shape_cast %309 : vector<8xf32> to vector<8x1xf32>
    %311 = tpu.reciprocal %310 : vector<8x1xf32> -> vector<8x1xf32>
    %312 = vector.broadcast %311 : vector<8x1xf32> to vector<8x16xf32>
    %313 = arith.mulf %308, %312 : vector<8x16xf32>
    %314 = arith.truncf %313 : vector<8x16xf32> to vector<8x16xbf16>
    %315 = vector.extract_strided_slice %253 {offsets = [0, 64], sizes = [16, 32], strides = [1, 1]} : vector<16x128xbf16> to vector<16x32xbf16>
    %cst_94 = arith.constant dense<0.000000e+00> : vector<8x32xf32>
    %316 = tpu.matmul %314, %315, %cst_94 {dimension_numbers = #tpu.dot_dimension_numbers<[1], [0], [0], [1], [0, 0, 1, 1], [], []>} : vector<8x16xbf16>, vector<16x32xbf16>, vector<8x32xf32> -> vector<8x32xf32>
    %317 = vector.extract_strided_slice %251 {offsets = [0, 96], sizes = [8, 32], strides = [1, 1]} : vector<8x128xbf16> to vector<8x32xbf16>
    %318 = vector.extract_strided_slice %252 {offsets = [0, 96], sizes = [16, 32], strides = [1, 1]} : vector<16x128xbf16> to vector<16x32xbf16>
    %cst_95 = arith.constant dense<0.000000e+00> : vector<8x16xf32>
    %319 = tpu.matmul %317, %318, %cst_95 {dimension_numbers = #tpu.dot_dimension_numbers<[1], [1], [0], [0], [0, 0, 1, 0], [], []>} : vector<8x32xbf16>, vector<16x32xbf16>, vector<8x16xf32> -> vector<8x16xf32>
    %cst_96 = arith.constant 0.176776692 : f32
    %320 = vector.broadcast %cst_96 : f32 to vector<8x16xf32>
    %321 = arith.mulf %319, %320 : vector<8x16xf32>
    %322 = vector.broadcast %256 : vector<1x16xf32> to vector<8x16xf32>
    %323 = arith.addf %321, %322 : vector<8x16xf32>
    %cst_97 = arith.constant dense<0xFF800000> : vector<8xf32>
    %324 = vector.multi_reduction <maximumf>, %323, %cst_97 [1] : vector<8x16xf32> to vector<8xf32>
    %325 = vector.shape_cast %324 : vector<8xf32> to vector<8x1xf32>
    %326 = vector.broadcast %325 : vector<8x1xf32> to vector<8x16xf32>
    %327 = arith.subf %323, %326 : vector<8x16xf32>
    %328 = math.exp %327 : vector<8x16xf32>
    %cst_98 = arith.constant dense<0.000000e+00> : vector<8xf32>
    %329 = vector.multi_reduction <add>, %328, %cst_98 [1] : vector<8x16xf32> to vector<8xf32>
    %330 = vector.shape_cast %329 : vector<8xf32> to vector<8x1xf32>
    %331 = tpu.reciprocal %330 : vector<8x1xf32> -> vector<8x1xf32>
    %332 = vector.broadcast %331 : vector<8x1xf32> to vector<8x16xf32>
    %333 = arith.mulf %328, %332 : vector<8x16xf32>
    %334 = arith.truncf %333 : vector<8x16xf32> to vector<8x16xbf16>
    %335 = vector.extract_strided_slice %253 {offsets = [0, 96], sizes = [16, 32], strides = [1, 1]} : vector<16x128xbf16> to vector<16x32xbf16>
    %cst_99 = arith.constant dense<0.000000e+00> : vector<8x32xf32>
    %336 = tpu.matmul %334, %335, %cst_99 {dimension_numbers = #tpu.dot_dimension_numbers<[1], [0], [0], [1], [0, 0, 1, 1], [], []>} : vector<8x16xbf16>, vector<16x32xbf16>, vector<8x32xf32> -> vector<8x32xf32>
    %337 = tpu.concatenate %276, %296, %316, %336 in 1 : vector<8x32xf32>, vector<8x32xf32>, vector<8x32xf32>, vector<8x32xf32> -> vector<8x128xf32>
    %338 = vector.extract_strided_slice %248 {offsets = [8, 0], sizes = [8, 128], strides = [1, 1]} : vector<16x128xbf16> to vector<8x128xbf16>
    %339 = vector.extract_strided_slice %249 {offsets = [16, 0], sizes = [16, 128], strides = [1, 1]} : vector<32x128xbf16> to vector<16x128xbf16>
    %340 = vector.extract_strided_slice %250 {offsets = [16, 0], sizes = [16, 128], strides = [1, 1]} : vector<32x128xbf16> to vector<16x128xbf16>
    %c1_100 = arith.constant 1 : index
    %c0_101 = arith.constant 0 : index
    %c0_102 = arith.constant 0 : index
    %341 = vector.load %arg3[%c1_100, %c0_101, %c0_102] : memref<2x2x128xf32, #tpu.memory_space<vmem>>, vector<1x2x128xf32>
    %342 = vector.shape_cast %341 : vector<1x2x128xf32> to vector<2x128xf32>
    %343 = vector.extract_strided_slice %342 {offsets = [1, 0], sizes = [1, 16], strides = [1, 1]} : vector<2x128xf32> to vector<1x16xf32>
    %344 = vector.extract_strided_slice %338 {offsets = [0, 0], sizes = [8, 32], strides = [1, 1]} : vector<8x128xbf16> to vector<8x32xbf16>
    %345 = vector.extract_strided_slice %339 {offsets = [0, 0], sizes = [16, 32], strides = [1, 1]} : vector<16x128xbf16> to vector<16x32xbf16>
    %cst_103 = arith.constant dense<0.000000e+00> : vector<8x16xf32>
    %346 = tpu.matmul %344, %345, %cst_103 {dimension_numbers = #tpu.dot_dimension_numbers<[1], [1], [0], [0], [0, 0, 1, 0], [], []>} : vector<8x32xbf16>, vector<16x32xbf16>, vector<8x16xf32> -> vector<8x16xf32>
    %cst_104 = arith.constant 0.176776692 : f32
    %347 = vector.broadcast %cst_104 : f32 to vector<8x16xf32>
    %348 = arith.mulf %346, %347 : vector<8x16xf32>
    %349 = vector.broadcast %343 : vector<1x16xf32> to vector<8x16xf32>
    %350 = arith.addf %348, %349 : vector<8x16xf32>
    %cst_105 = arith.constant dense<0xFF800000> : vector<8xf32>
    %351 = vector.multi_reduction <maximumf>, %350, %cst_105 [1] : vector<8x16xf32> to vector<8xf32>
    %352 = vector.shape_cast %351 : vector<8xf32> to vector<8x1xf32>
    %353 = vector.broadcast %352 : vector<8x1xf32> to vector<8x16xf32>
    %354 = arith.subf %350, %353 : vector<8x16xf32>
    %355 = math.exp %354 : vector<8x16xf32>
    %cst_106 = arith.constant dense<0.000000e+00> : vector<8xf32>
    %356 = vector.multi_reduction <add>, %355, %cst_106 [1] : vector<8x16xf32> to vector<8xf32>
    %357 = vector.shape_cast %356 : vector<8xf32> to vector<8x1xf32>
    %358 = tpu.reciprocal %357 : vector<8x1xf32> -> vector<8x1xf32>
    %359 = vector.broadcast %358 : vector<8x1xf32> to vector<8x16xf32>
    %360 = arith.mulf %355, %359 : vector<8x16xf32>
    %361 = arith.truncf %360 : vector<8x16xf32> to vector<8x16xbf16>
    %362 = vector.extract_strided_slice %340 {offsets = [0, 0], sizes = [16, 32], strides = [1, 1]} : vector<16x128xbf16> to vector<16x32xbf16>
    %cst_107 = arith.constant dense<0.000000e+00> : vector<8x32xf32>
    %363 = tpu.matmul %361, %362, %cst_107 {dimension_numbers = #tpu.dot_dimension_numbers<[1], [0], [0], [1], [0, 0, 1, 1], [], []>} : vector<8x16xbf16>, vector<16x32xbf16>, vector<8x32xf32> -> vector<8x32xf32>
    %364 = vector.extract_strided_slice %338 {offsets = [0, 32], sizes = [8, 32], strides = [1, 1]} : vector<8x128xbf16> to vector<8x32xbf16>
    %365 = vector.extract_strided_slice %339 {offsets = [0, 32], sizes = [16, 32], strides = [1, 1]} : vector<16x128xbf16> to vector<16x32xbf16>
    %cst_108 = arith.constant dense<0.000000e+00> : vector<8x16xf32>
    %366 = tpu.matmul %364, %365, %cst_108 {dimension_numbers = #tpu.dot_dimension_numbers<[1], [1], [0], [0], [0, 0, 1, 0], [], []>} : vector<8x32xbf16>, vector<16x32xbf16>, vector<8x16xf32> -> vector<8x16xf32>
    %cst_109 = arith.constant 0.176776692 : f32
    %367 = vector.broadcast %cst_109 : f32 to vector<8x16xf32>
    %368 = arith.mulf %366, %367 : vector<8x16xf32>
    %369 = vector.broadcast %343 : vector<1x16xf32> to vector<8x16xf32>
    %370 = arith.addf %368, %369 : vector<8x16xf32>
    %cst_110 = arith.constant dense<0xFF800000> : vector<8xf32>
    %371 = vector.multi_reduction <maximumf>, %370, %cst_110 [1] : vector<8x16xf32> to vector<8xf32>
    %372 = vector.shape_cast %371 : vector<8xf32> to vector<8x1xf32>
    %373 = vector.broadcast %372 : vector<8x1xf32> to vector<8x16xf32>
    %374 = arith.subf %370, %373 : vector<8x16xf32>
    %375 = math.exp %374 : vector<8x16xf32>
    %cst_111 = arith.constant dense<0.000000e+00> : vector<8xf32>
    %376 = vector.multi_reduction <add>, %375, %cst_111 [1] : vector<8x16xf32> to vector<8xf32>
    %377 = vector.shape_cast %376 : vector<8xf32> to vector<8x1xf32>
    %378 = tpu.reciprocal %377 : vector<8x1xf32> -> vector<8x1xf32>
    %379 = vector.broadcast %378 : vector<8x1xf32> to vector<8x16xf32>
    %380 = arith.mulf %375, %379 : vector<8x16xf32>
    %381 = arith.truncf %380 : vector<8x16xf32> to vector<8x16xbf16>
    %382 = vector.extract_strided_slice %340 {offsets = [0, 32], sizes = [16, 32], strides = [1, 1]} : vector<16x128xbf16> to vector<16x32xbf16>
    %cst_112 = arith.constant dense<0.000000e+00> : vector<8x32xf32>
    %383 = tpu.matmul %381, %382, %cst_112 {dimension_numbers = #tpu.dot_dimension_numbers<[1], [0], [0], [1], [0, 0, 1, 1], [], []>} : vector<8x16xbf16>, vector<16x32xbf16>, vector<8x32xf32> -> vector<8x32xf32>
    %384 = vector.extract_strided_slice %338 {offsets = [0, 64], sizes = [8, 32], strides = [1, 1]} : vector<8x128xbf16> to vector<8x32xbf16>
    %385 = vector.extract_strided_slice %339 {offsets = [0, 64], sizes = [16, 32], strides = [1, 1]} : vector<16x128xbf16> to vector<16x32xbf16>
    %cst_113 = arith.constant dense<0.000000e+00> : vector<8x16xf32>
    %386 = tpu.matmul %384, %385, %cst_113 {dimension_numbers = #tpu.dot_dimension_numbers<[1], [1], [0], [0], [0, 0, 1, 0], [], []>} : vector<8x32xbf16>, vector<16x32xbf16>, vector<8x16xf32> -> vector<8x16xf32>
    %cst_114 = arith.constant 0.176776692 : f32
    %387 = vector.broadcast %cst_114 : f32 to vector<8x16xf32>
    %388 = arith.mulf %386, %387 : vector<8x16xf32>
    %389 = vector.broadcast %343 : vector<1x16xf32> to vector<8x16xf32>
    %390 = arith.addf %388, %389 : vector<8x16xf32>
    %cst_115 = arith.constant dense<0xFF800000> : vector<8xf32>
    %391 = vector.multi_reduction <maximumf>, %390, %cst_115 [1] : vector<8x16xf32> to vector<8xf32>
    %392 = vector.shape_cast %391 : vector<8xf32> to vector<8x1xf32>
    %393 = vector.broadcast %392 : vector<8x1xf32> to vector<8x16xf32>
    %394 = arith.subf %390, %393 : vector<8x16xf32>
    %395 = math.exp %394 : vector<8x16xf32>
    %cst_116 = arith.constant dense<0.000000e+00> : vector<8xf32>
    %396 = vector.multi_reduction <add>, %395, %cst_116 [1] : vector<8x16xf32> to vector<8xf32>
    %397 = vector.shape_cast %396 : vector<8xf32> to vector<8x1xf32>
    %398 = tpu.reciprocal %397 : vector<8x1xf32> -> vector<8x1xf32>
    %399 = vector.broadcast %398 : vector<8x1xf32> to vector<8x16xf32>
    %400 = arith.mulf %395, %399 : vector<8x16xf32>
    %401 = arith.truncf %400 : vector<8x16xf32> to vector<8x16xbf16>
    %402 = vector.extract_strided_slice %340 {offsets = [0, 64], sizes = [16, 32], strides = [1, 1]} : vector<16x128xbf16> to vector<16x32xbf16>
    %cst_117 = arith.constant dense<0.000000e+00> : vector<8x32xf32>
    %403 = tpu.matmul %401, %402, %cst_117 {dimension_numbers = #tpu.dot_dimension_numbers<[1], [0], [0], [1], [0, 0, 1, 1], [], []>} : vector<8x16xbf16>, vector<16x32xbf16>, vector<8x32xf32> -> vector<8x32xf32>
    %404 = vector.extract_strided_slice %338 {offsets = [0, 96], sizes = [8, 32], strides = [1, 1]} : vector<8x128xbf16> to vector<8x32xbf16>
    %405 = vector.extract_strided_slice %339 {offsets = [0, 96], sizes = [16, 32], strides = [1, 1]} : vector<16x128xbf16> to vector<16x32xbf16>
    %cst_118 = arith.constant dense<0.000000e+00> : vector<8x16xf32>
    %406 = tpu.matmul %404, %405, %cst_118 {dimension_numbers = #tpu.dot_dimension_numbers<[1], [1], [0], [0], [0, 0, 1, 0], [], []>} : vector<8x32xbf16>, vector<16x32xbf16>, vector<8x16xf32> -> vector<8x16xf32>
    %cst_119 = arith.constant 0.176776692 : f32
    %407 = vector.broadcast %cst_119 : f32 to vector<8x16xf32>
    %408 = arith.mulf %406, %407 : vector<8x16xf32>
    %409 = vector.broadcast %343 : vector<1x16xf32> to vector<8x16xf32>
    %410 = arith.addf %408, %409 : vector<8x16xf32>
    %cst_120 = arith.constant dense<0xFF800000> : vector<8xf32>
    %411 = vector.multi_reduction <maximumf>, %410, %cst_120 [1] : vector<8x16xf32> to vector<8xf32>
    %412 = vector.shape_cast %411 : vector<8xf32> to vector<8x1xf32>
    %413 = vector.broadcast %412 : vector<8x1xf32> to vector<8x16xf32>
    %414 = arith.subf %410, %413 : vector<8x16xf32>
    %415 = math.exp %414 : vector<8x16xf32>
    %cst_121 = arith.constant dense<0.000000e+00> : vector<8xf32>
    %416 = vector.multi_reduction <add>, %415, %cst_121 [1] : vector<8x16xf32> to vector<8xf32>
    %417 = vector.shape_cast %416 : vector<8xf32> to vector<8x1xf32>
    %418 = tpu.reciprocal %417 : vector<8x1xf32> -> vector<8x1xf32>
    %419 = vector.broadcast %418 : vector<8x1xf32> to vector<8x16xf32>
    %420 = arith.mulf %415, %419 : vector<8x16xf32>
    %421 = arith.truncf %420 : vector<8x16xf32> to vector<8x16xbf16>
    %422 = vector.extract_strided_slice %340 {offsets = [0, 96], sizes = [16, 32], strides = [1, 1]} : vector<16x128xbf16> to vector<16x32xbf16>
    %cst_122 = arith.constant dense<0.000000e+00> : vector<8x32xf32>
    %423 = tpu.matmul %421, %422, %cst_122 {dimension_numbers = #tpu.dot_dimension_numbers<[1], [0], [0], [1], [0, 0, 1, 1], [], []>} : vector<8x16xbf16>, vector<16x32xbf16>, vector<8x32xf32> -> vector<8x32xf32>
    %424 = tpu.concatenate %363, %383, %403, %423 in 1 : vector<8x32xf32>, vector<8x32xf32>, vector<8x32xf32>, vector<8x32xf32> -> vector<8x128xf32>
    %425 = tpu.concatenate %337, %424 in 0 : vector<8x128xf32>, vector<8x128xf32> -> vector<16x128xf32>
    %426 = arith.truncf %425 : vector<16x128xf32> to vector<16x128xbf16>
    %c0_123 = arith.constant 0 : index
    %c896 = arith.constant 896 : index
    %427 = vector.load %arg4[%c0_123, %c896] : memref<128x1280xbf16, #tpu.memory_space<vmem>>, vector<128x128xbf16>
    %cst_124 = arith.constant dense<0.000000e+00> : vector<16x128xf32>
    %428 = tpu.matmul %426, %427, %cst_124 {dimension_numbers = #tpu.dot_dimension_numbers<[1], [0], [0], [1], [0, 0, 1, 1], [], []>} : vector<16x128xbf16>, vector<128x128xbf16>, vector<16x128xf32> -> vector<16x128xf32>
    %c0_125 = arith.constant 0 : index
    %c896_126 = arith.constant 896 : index
    %429 = vector.load %arg6[%c0_125, %c896_126] : memref<1x1408xf32, #tpu.memory_space<vmem>>, vector<1x128xf32>
    %430 = vector.broadcast %429 : vector<1x128xf32> to vector<16x128xf32>
    %431 = arith.addf %428, %430 : vector<16x128xf32>
    %432 = arith.addf %233, %431 : vector<16x128xf32>
    %c2 = arith.constant 2 : index
    %c0_127 = arith.constant 0 : index
    %433 = vector.load %arg7[%c2, %c0_127] : memref<6x128xf32, #tpu.memory_space<vmem>>, vector<1x128xf32>
    %c3 = arith.constant 3 : index
    %c0_128 = arith.constant 0 : index
    %434 = vector.load %arg7[%c3, %c0_128] : memref<6x128xf32, #tpu.memory_space<vmem>>, vector<1x128xf32>
    %cst_129 = arith.constant dense<0.000000e+00> : vector<16xf32>
    %435 = vector.multi_reduction <add>, %432, %cst_129 [1] : vector<16x128xf32> to vector<16xf32>
    %436 = vector.shape_cast %435 : vector<16xf32> to vector<16x1xf32>
    %cst_130 = arith.constant 1.280000e+02 : f32
    %437 = vector.broadcast %cst_130 : f32 to vector<16x1xf32>
    %438 = arith.divf %436, %437 : vector<16x1xf32>
    %439 = vector.broadcast %438 : vector<16x1xf32> to vector<16x128xf32>
    %440 = arith.subf %432, %439 : vector<16x128xf32>
    %441 = arith.mulf %440, %440 : vector<16x128xf32>
    %cst_131 = arith.constant dense<0.000000e+00> : vector<16xf32>
    %442 = vector.multi_reduction <add>, %441, %cst_131 [1] : vector<16x128xf32> to vector<16xf32>
    %443 = vector.shape_cast %442 : vector<16xf32> to vector<16x1xf32>
    %cst_132 = arith.constant 1.280000e+02 : f32
    %444 = vector.broadcast %cst_132 : f32 to vector<16x1xf32>
    %445 = arith.divf %443, %444 : vector<16x1xf32>
    %cst_133 = arith.constant 9.99999974E-6 : f32
    %446 = vector.broadcast %cst_133 : f32 to vector<16x1xf32>
    %447 = arith.addf %445, %446 : vector<16x1xf32>
    %448 = math.rsqrt %447 : vector<16x1xf32>
    %449 = vector.broadcast %448 : vector<16x1xf32> to vector<16x128xf32>
    %450 = arith.mulf %440, %449 : vector<16x128xf32>
    %451 = vector.broadcast %433 : vector<1x128xf32> to vector<16x128xf32>
    %452 = arith.mulf %450, %451 : vector<16x128xf32>
    %453 = vector.broadcast %434 : vector<1x128xf32> to vector<16x128xf32>
    %454 = arith.addf %452, %453 : vector<16x128xf32>
    %455 = arith.truncf %454 : vector<16x128xf32> to vector<16x128xbf16>
    %c0_134 = arith.constant 0 : index
    %c1024 = arith.constant 1024 : index
    %456 = vector.load %arg4[%c0_134, %c1024] : memref<128x1280xbf16, #tpu.memory_space<vmem>>, vector<128x256xbf16>
    %cst_135 = arith.constant dense<0.000000e+00> : vector<16x256xf32>
    %457 = tpu.matmul %455, %456, %cst_135 {dimension_numbers = #tpu.dot_dimension_numbers<[1], [0], [0], [1], [0, 0, 1, 1], [], []>} : vector<16x128xbf16>, vector<128x256xbf16>, vector<16x256xf32> -> vector<16x256xf32>
    %c0_136 = arith.constant 0 : index
    %c1024_137 = arith.constant 1024 : index
    %458 = vector.load %arg6[%c0_136, %c1024_137] : memref<1x1408xf32, #tpu.memory_space<vmem>>, vector<1x256xf32>
    %459 = vector.broadcast %458 : vector<1x256xf32> to vector<16x256xf32>
    %460 = arith.addf %457, %459 : vector<16x256xf32>
    %cst_138 = arith.constant 0.000000e+00 : f32
    %461 = vector.broadcast %cst_138 : f32 to vector<16x256xf32>
    %462 = arith.maximumf %460, %461 : vector<16x256xf32>
    %463 = arith.truncf %462 : vector<16x256xf32> to vector<16x256xbf16>
    %c0_139 = arith.constant 0 : index
    %c0_140 = arith.constant 0 : index
    %464 = vector.load %arg5[%c0_139, %c0_140] : memref<256x128xbf16, #tpu.memory_space<vmem>>, vector<256x128xbf16>
    %cst_141 = arith.constant dense<0.000000e+00> : vector<16x128xf32>
    %465 = tpu.matmul %463, %464, %cst_141 {dimension_numbers = #tpu.dot_dimension_numbers<[1], [0], [0], [1], [0, 0, 1, 1], [], []>} : vector<16x256xbf16>, vector<256x128xbf16>, vector<16x128xf32> -> vector<16x128xf32>
    %c0_142 = arith.constant 0 : index
    %c1280 = arith.constant 1280 : index
    %466 = vector.load %arg6[%c0_142, %c1280] : memref<1x1408xf32, #tpu.memory_space<vmem>>, vector<1x128xf32>
    %467 = vector.broadcast %466 : vector<1x128xf32> to vector<16x128xf32>
    %468 = arith.addf %465, %467 : vector<16x128xf32>
    %469 = arith.addf %454, %468 : vector<16x128xf32>
    %c4 = arith.constant 4 : index
    %c0_143 = arith.constant 0 : index
    %470 = vector.load %arg7[%c4, %c0_143] : memref<6x128xf32, #tpu.memory_space<vmem>>, vector<1x128xf32>
    %c5 = arith.constant 5 : index
    %c0_144 = arith.constant 0 : index
    %471 = vector.load %arg7[%c5, %c0_144] : memref<6x128xf32, #tpu.memory_space<vmem>>, vector<1x128xf32>
    %cst_145 = arith.constant dense<0.000000e+00> : vector<16xf32>
    %472 = vector.multi_reduction <add>, %469, %cst_145 [1] : vector<16x128xf32> to vector<16xf32>
    %473 = vector.shape_cast %472 : vector<16xf32> to vector<16x1xf32>
    %cst_146 = arith.constant 1.280000e+02 : f32
    %474 = vector.broadcast %cst_146 : f32 to vector<16x1xf32>
    %475 = arith.divf %473, %474 : vector<16x1xf32>
    %476 = vector.broadcast %475 : vector<16x1xf32> to vector<16x128xf32>
    %477 = arith.subf %469, %476 : vector<16x128xf32>
    %478 = arith.mulf %477, %477 : vector<16x128xf32>
    %cst_147 = arith.constant dense<0.000000e+00> : vector<16xf32>
    %479 = vector.multi_reduction <add>, %478, %cst_147 [1] : vector<16x128xf32> to vector<16xf32>
    %480 = vector.shape_cast %479 : vector<16xf32> to vector<16x1xf32>
    %cst_148 = arith.constant 1.280000e+02 : f32
    %481 = vector.broadcast %cst_148 : f32 to vector<16x1xf32>
    %482 = arith.divf %480, %481 : vector<16x1xf32>
    %cst_149 = arith.constant 9.99999974E-6 : f32
    %483 = vector.broadcast %cst_149 : f32 to vector<16x1xf32>
    %484 = arith.addf %482, %483 : vector<16x1xf32>
    %485 = math.rsqrt %484 : vector<16x1xf32>
    %486 = vector.broadcast %485 : vector<16x1xf32> to vector<16x128xf32>
    %487 = arith.mulf %477, %486 : vector<16x128xf32>
    %488 = vector.broadcast %470 : vector<1x128xf32> to vector<16x128xf32>
    %489 = arith.mulf %487, %488 : vector<16x128xf32>
    %490 = vector.broadcast %471 : vector<1x128xf32> to vector<16x128xf32>
    %491 = arith.addf %489, %490 : vector<16x128xf32>
    %492 = vector.shape_cast %491 : vector<16x128xf32> to vector<2x8x128xf32>
    %c0_150 = arith.constant 0 : index
    %c0_151 = arith.constant 0 : index
    %c0_152 = arith.constant 0 : index
    %493 = vector.load %arg8[%c0_150, %c0_151, %c0_152] : memref<2x8x128xf32, #tpu.memory_space<vmem>>, vector<2x8x128xf32>
    tpu.vector_store %arg8[%c0_150, %c0_151, %c0_152], %492 {strides = array<i32>} : memref<2x8x128xf32, #tpu.memory_space<vmem>>, vector<2x8x128xf32>,
    return
  }
  func.func @transform_0(%arg0: i32) -> (i32, i32, i32) {
    %c0_i32 = arith.constant 0 : i32
    %c0_i32_0 = arith.constant 0 : i32
    %c0_i32_1 = arith.constant 0 : i32
    return %arg0, %c0_i32, %c0_i32_0 : i32, i32, i32
  }
  func.func @transform_1(%arg0: i32) -> (i32, i32, i32) {
    %c0_i32 = arith.constant 0 : i32
    %c0_i32_0 = arith.constant 0 : i32
    %c0_i32_1 = arith.constant 0 : i32
    return %arg0, %c0_i32, %c0_i32_0 : i32, i32, i32
  }
  func.func @transform_2(%arg0: i32) -> (i32, i32, i32) {
    %c0_i32 = arith.constant 0 : i32
    %c0_i32_0 = arith.constant 0 : i32
    %c0_i32_1 = arith.constant 0 : i32
    return %arg0, %c0_i32, %c0_i32_0 : i32, i32, i32
  }
  func.func @transform_3(%arg0: i32) -> (i32, i32) {
    %c0_i32 = arith.constant 0 : i32
    %c0_i32_0 = arith.constant 0 : i32
    %c0_i32_1 = arith.constant 0 : i32
    return %c0_i32, %c0_i32_0 : i32, i32
  }
  func.func @transform_4(%arg0: i32) -> (i32, i32) {
    %c0_i32 = arith.constant 0 : i32
    %c0_i32_0 = arith.constant 0 : i32
    %c0_i32_1 = arith.constant 0 : i32
    return %c0_i32, %c0_i32_0 : i32, i32
  }
  func.func @transform_5(%arg0: i32) -> (i32, i32) {
    %c0_i32 = arith.constant 0 : i32
    %c0_i32_0 = arith.constant 0 : i32
    %c0_i32_1 = arith.constant 0 : i32
    return %c0_i32, %c0_i32_0 : i32, i32
  }
  func.func @transform_6(%arg0: i32) -> (i32, i32) {
    %c0_i32 = arith.constant 0 : i32
    %c0_i32_0 = arith.constant 0 : i32
    %c0_i32_1 = arith.constant 0 : i32
    return %c0_i32, %c0_i32_0 : i32, i32
  }
  func.func @transform_7(%arg0: i32) -> (i32, i32, i32) {
    %c0_i32 = arith.constant 0 : i32
    %c0_i32_0 = arith.constant 0 : i32
    %c0_i32_1 = arith.constant 0 : i32
    return %arg0, %c0_i32, %c0_i32_0 : i32, i32, i32
  }
}

</mosaic_0001>

<llo_original>
// kernel: decoder_layer_forward.1
$region0: #{decoder_layer_forward.1}
  #allocation0 [shape = 'u32[]', space=smem, size = 0x4, offset = 0x4, fixed_abs, tag = 'smem constant byte address 0x4 - core index']
  #allocation1 [shape = 'u32[72,128]{1,0:T(1,128)}', space=vmem, size = 0x9000, scoped, tag = 'internal scratch']
  %s0 = inlined_call_operand.vmem [shape: f32[2,8,128], index: 0, kind: input, shape index: {}]
  %s1 = inlined_call_operand.vmem [shape: f32[2,16,128], index: 1, kind: input, shape index: {}]
  %s2 = inlined_call_operand.vmem [shape: f32[2,2,128], index: 2, kind: input, shape index: {}]
  %s3 = inlined_call_operand.vmem [shape: bf16[128,1280], index: 3, kind: input, shape index: {}]
  %s4 = inlined_call_operand.vmem [shape: bf16[256,128], index: 4, kind: input, shape index: {}]
  %s5 = inlined_call_operand.vmem [shape: f32[1,1408], index: 5, kind: input, shape index: {}]
  %s6 = inlined_call_operand.vmem [shape: f32[6,128], index: 6, kind: input, shape index: {}]
  %s7 = inlined_call_operand.hbm [shape: f32[2,8,128], index: 7, kind: output, shape index: {}]
  %s8 = sld [smem:[#allocation0]]
  $region38: #{decoder_layer_forward.1} parent=0
    _
  %s10 = ssub.s32 1, %s8
  %s11 = scalar_select 0, %s10, %s8
  $region1: #{decoder_layer_forward.1} parent=0
    #allocation2 [shape = 'u8[8192]{0}', space=vmem, size = 0x2000, scoped, tag = 'output window, operand 0, single buffered']
    #allocation3 [shape = 's32[1]{0}', space=sflag, size = 0x4, scoped, tag = 'scoped memory for decoder_layer_forward.1']
    %12 = vsyncpa [#allocation3], 0
    // Predicated region
    $region2: #{decoder_layer_forward.1} parent=1 // pred_check
      _
    $region3: #{decoder_layer_forward.1} parent=1 // pred_check_branch
      %14 = sbr.rel (0) target = $region5
    $region4: #{decoder_layer_forward.1} parent=1 // pred_region
      _
    $region5: #{decoder_layer_forward.1} parent=1 // pred_fallthru
      _
    // Predicated region
    $region6: #{decoder_layer_forward.1} parent=1 // pred_check
      _
    $region7: #{decoder_layer_forward.1} parent=1 // pred_check_branch
      %16 = sbr.rel (0) target = $region9
    $region8: #{decoder_layer_forward.1} parent=1 // pred_region
      _
    $region9: #{decoder_layer_forward.1} parent=1 // pred_fallthru
      _
    // Predicated region
    $region10: #{decoder_layer_forward.1} parent=1 // pred_check
      _
    $region11: #{decoder_layer_forward.1} parent=1 // pred_check_branch
      %18 = sbr.rel (0) target = $region13
    $region12: #{decoder_layer_forward.1} parent=1 // pred_region
      _
    $region13: #{decoder_layer_forward.1} parent=1 // pred_fallthru
      _
    // Predicated region
    $region14: #{decoder_layer_forward.1} parent=1 // pred_check
      _
    $region15: #{decoder_layer_forward.1} parent=1 // pred_check_branch
      %20 = sbr.rel (0) target = $region17
    $region16: #{decoder_layer_forward.1} parent=1 // pred_region
      _
    $region17: #{decoder_layer_forward.1} parent=1 // pred_fallthru
      _
    // Predicated region
    $region18: #{decoder_layer_forward.1} parent=1 // pred_check
      _
    $region19: #{decoder_layer_forward.1} parent=1 // pred_check_branch
      %22 = sbr.rel (0) target = $region21
    $region20: #{decoder_layer_forward.1} parent=1 // pred_region
      _
    $region21: #{decoder_layer_forward.1} parent=1 // pred_fallthru
      _
    // Predicated region
    $region22: #{decoder_layer_forward.1} parent=1 // pred_check
      _
    $region23: #{decoder_layer_forward.1} parent=1 // pred_check_branch
      %24 = sbr.rel (0) target = $region25
    $region24: #{decoder_layer_forward.1} parent=1 // pred_region
      _
    $region25: #{decoder_layer_forward.1} parent=1 // pred_fallthru
      _
    // Predicated region
    $region26: #{decoder_layer_forward.1} parent=1 // pred_check
      _
    $region27: #{decoder_layer_forward.1} parent=1 // pred_check_branch
      %26 = sbr.rel (0) target = $region29
    $region28: #{decoder_layer_forward.1} parent=1 // pred_region
      _
    $region29: #{decoder_layer_forward.1} parent=1 // pred_fallthru
      _
    %v28 = vld [vmem:[%s0] sm:$0xff]
    %v29 = vld [vmem:[%s0 + $0x8] sm:$0xff]
    %v30 = vld [vmem:[%s1] sm:$0xff]
    %v31 = vld [vmem:[%s1 + $0x8] sm:$0xff]
    %v32 = vld [vmem:[%s1 + $0x10] sm:$0xff]
    %v33 = vld [vmem:[%s1 + $0x18] sm:$0xff]
    %v34 = vpack.c.bf16 %v29, %v28
    %v35 = vld [vmem:[%s3] sm:$0xff]
    %v36 = vld [vmem:[%s3 + $0x8] sm:$0xf]
    %v37 = vld [vmem:[%s3 + $0x28] sm:$0xff]
    %v38 = vld [vmem:[%s3 + $0x30] sm:$0xf]
    %v39 = vld [vmem:[%s3 + $0x50] sm:$0xff]
    %v40 = vld [vmem:[%s3 + $0x58] sm:$0xf]
    %v41 = vld [vmem:[%s3 + $0x78] sm:$0xff]
    %v42 = vld [vmem:[%s3 + $0x80] sm:$0xf]
    %v43 = vld [vmem:[%s3 + $0xa0] sm:$0xff]
    %v44 = vld [vmem:[%s3 + $0xa8] sm:$0xf]
    %v45 = vld [vmem:[%s3 + $0xc8] sm:$0xff]
    %v46 = vld [vmem:[%s3 + $0xd0] sm:$0xf]
    %v47 = vld [vmem:[%s3 + $0xf0] sm:$0xff]
    %v48 = vld [vmem:[%s3 + $0xf8] sm:$0xf]
    %v49 = vld [vmem:[%s3 + $0x118] sm:$0xff]
    %v50 = vld [vmem:[%s3 + $0x120] sm:$0xf]
    %v51 = vld [vmem:[%s3 + $0x140] sm:$0xff]
    %v52 = vld [vmem:[%s3 + $0x148] sm:$0xf]
    %v53 = vld [vmem:[%s3 + $0x168] sm:$0xff]
    %v54 = vld [vmem:[%s3 + $0x170] sm:$0xf]
    %v55 = vld [vmem:[%s3 + $0x190] sm:$0xff]
    %v56 = vld [vmem:[%s3 + $0x198] sm:$0xf]
    %v57 = vld [vmem:[%s3 + $0x1b8] sm:$0xff]
    %v58 = vld [vmem:[%s3 + $0x1c0] sm:$0xf]
    %v59 = vld [vmem:[%s3 + $0x1e0] sm:$0xff]
    %v60 = vld [vmem:[%s3 + $0x1e8] sm:$0xf]
    %v61 = vld [vmem:[%s3 + $0x208] sm:$0xff]
    %v62 = vld [vmem:[%s3 + $0x210] sm:$0xf]
    %v63 = vld [vmem:[%s3 + $0x230] sm:$0xff]
    %v64 = vld [vmem:[%s3 + $0x238] sm:$0xf]
    %v65 = vld [vmem:[%s3 + $0x258] sm:$0xff]
    %v66 = vld [vmem:[%s3 + $0x260] sm:$0xf]
    %v67 = vld [vmem:[%s5] sm:$0x7]
    %v69 = vperm.slane %v67, 0
    %v70 = vperm.slane %v67, 1
    %v71 = vperm.slane %v67, 2
    %v107 = vunpack.c.l.b16 %v35
    %v108 = vunpack.c.h.b16 %v35
    %v109 = vunpack.c.l.b16 %v36
    %v110 = vunpack.c.l.b16 %v37
    %v111 = vunpack.c.h.b16 %v37
    %v112 = vunpack.c.l.b16 %v38
    %v113 = vunpack.c.l.b16 %v39
    %v114 = vunpack.c.h.b16 %v39
    %v115 = vunpack.c.l.b16 %v40
    %v116 = vunpack.c.l.b16 %v41
    %v117 = vunpack.c.h.b16 %v41
    %v118 = vunpack.c.l.b16 %v42
    %v119 = vunpack.c.l.b16 %v43
    %v120 = vunpack.c.h.b16 %v43
    %v121 = vunpack.c.l.b16 %v44
    %v122 = vunpack.c.l.b16 %v45
    %v123 = vunpack.c.h.b16 %v45
    %v124 = vunpack.c.l.b16 %v46
    %v125 = vunpack.c.l.b16 %v47
    %v126 = vunpack.c.h.b16 %v47
    %v127 = vunpack.c.l.b16 %v48
    %v128 = vunpack.c.l.b16 %v49
    %v129 = vunpack.c.h.b16 %v49
    %v130 = vunpack.c.l.b16 %v50
    %v131 = vunpack.c.l.b16 %v51
    %v132 = vunpack.c.h.b16 %v51
    %v133 = vunpack.c.l.b16 %v52
    %v134 = vunpack.c.l.b16 %v53
    %v135 = vunpack.c.h.b16 %v53
    %v136 = vunpack.c.l.b16 %v54
    %v137 = vunpack.c.l.b16 %v55
    %v138 = vunpack.c.h.b16 %v55
    %v139 = vunpack.c.l.b16 %v56
    %v140 = vunpack.c.l.b16 %v57
    %v141 = vunpack.c.h.b16 %v57
    %v142 = vunpack.c.l.b16 %v58
    %v143 = vunpack.c.l.b16 %v59
    %v144 = vunpack.c.h.b16 %v59
    %v145 = vunpack.c.l.b16 %v60
    %v146 = vunpack.c.l.b16 %v61
    %v147 = vunpack.c.h.b16 %v61
    %v148 = vunpack.c.l.b16 %v62
    %v149 = vunpack.c.l.b16 %v63
    %v150 = vunpack.c.h.b16 %v63
    %v151 = vunpack.c.l.b16 %v64
    %v152 = vunpack.c.l.b16 %v65
    %v153 = vunpack.c.h.b16 %v65
    %v154 = vunpack.c.l.b16 %v66
    %v155 = vpack.c.b16 %v110, %v107
    %v156 = vpack.c.b16 %v111, %v108
    %v157 = vpack.c.b16 %v112, %v109
    %v158 = vpack.c.b16 %v116, %v113
    %v159 = vpack.c.b16 %v117, %v114
    %v160 = vpack.c.b16 %v118, %v115
    %v161 = vpack.c.b16 %v122, %v119
    %v162 = vpack.c.b16 %v123, %v120
    %v163 = vpack.c.b16 %v124, %v121
    %v164 = vpack.c.b16 %v128, %v125
    %v165 = vpack.c.b16 %v129, %v126
    %v166 = vpack.c.b16 %v130, %v127
    %v167 = vpack.c.b16 %v134, %v131
    %v168 = vpack.c.b16 %v135, %v132
    %v169 = vpack.c.b16 %v136, %v133
    %v170 = vpack.c.b16 %v140, %v137
    %v171 = vpack.c.b16 %v141, %v138
    %v172 = vpack.c.b16 %v142, %v139
    %v173 = vpack.c.b16 %v146, %v143
    %v174 = vpack.c.b16 %v147, %v144
    %v175 = vpack.c.b16 %v148, %v145
    %v176 = vpack.c.b16 %v152, %v149
    %v177 = vpack.c.b16 %v153, %v150
    %v178 = vpack.c.b16 %v154, %v151
    %203 = vmatpush.bf16.msra.mxu0 %v176
    %204 = vmatpush.bf16.msra.mxu0 %v173
    %205 = vmatpush.bf16.msra.mxu0 %v170
    %206 = vmatpush.bf16.msra.mxu0 %v167
    %207 = vmatpush.bf16.msra.mxu0 %v164
    %208 = vmatpush.bf16.msra.mxu0 %v161
    %209 = vmatpush.bf16.msra.mxu0 %v158
    %210 = vmatpush.bf16.msra.mxu0 %v155
    %211 = vmatmul.bf16.gmra.mxu0 %v34
    %v212 = vpop.f32.mrf.mxu0
    %v213 = vadd.f32 %v69, %v212
    %v214 = vpop.f32.mrf.mxu0
    %v215 = vadd.f32 %v69, %v214
    %216 = vdwg.mxu0
    %217 = vmatpush.bf16.msra.mxu0 %v177
    %218 = vmatpush.bf16.msra.mxu0 %v174
    %219 = vmatpush.bf16.msra.mxu0 %v171
    %220 = vmatpush.bf16.msra.mxu0 %v168
    %221 = vmatpush.bf16.msra.mxu0 %v165
    %222 = vmatpush.bf16.msra.mxu0 %v162
    %223 = vmatpush.bf16.msra.mxu0 %v159
    %224 = vmatpush.bf16.msra.mxu0 %v156
    %225 = vmatmul.bf16.gmra.mxu0 %v34
    %v226 = vpop.f32.mrf.mxu0
    %v227 = vadd.f32 %v70, %v226
    %v228 = vpop.f32.mrf.mxu0
    %v229 = vadd.f32 %v70, %v228
    %230 = vdwg.mxu0
    %231 = vmatpush.bf16.msra.mxu0 %v178
    %232 = vmatpush.bf16.msra.mxu0 %v175
    %233 = vmatpush.bf16.msra.mxu0 %v172
    %234 = vmatpush.bf16.msra.mxu0 %v169
    %235 = vmatpush.bf16.msra.mxu0 %v166
    %236 = vmatpush.bf16.msra.mxu0 %v163
    %237 = vmatpush.bf16.msra.mxu0 %v160
    %238 = vmatpush.bf16.msra.mxu0 %v157
    %239 = vmatmul.bf16.gmra.mxu0 %v34
    %v240 = vpop.f32.mrf.mxu0
    %v241 = vadd.f32 %v71, %v240
    %v242 = vpop.f32.mrf.mxu0
    %v243 = vadd.f32 %v71, %v242
    %244 = vdwg.mxu0
    %v245 = vpack.c.bf16 %v213, %v213
    %v246 = vpack.c.bf16 %v215, %v215
    %v247 = vpack.c.bf16 %v227, %v227
    %v248 = vpack.c.bf16 %v229, %v229
    %v249 = vpack.c.bf16 %v241, %v241
    %v250 = vpack.c.bf16 %v243, %v243
    %v251 = vlaneseq
    %v252 = vshrl.u32 %v251, 7
    %v253 = vlaneseq
    %v254 = vand.u32 %v253, 127
    %vm255 = vcmp.gt.s32.totalorder %v254, %v252
    %v256 = vsel %vm255, -1e+09, 0.0
    %v257 = vld [vmem:[%s2] sm:$0x3]
    %vm258 = vcmask 261120
    %v260 = vsel %vm258, %v245, 0
    %v263 = vsel %vm258, %v247, 0
    %265 = vmatpush.bf16.xpose.msra.mxu0 0
    %266 = vmatpush.bf16.xpose.msra.mxu0 0
    %267 = vmatpush.bf16.xpose.msra.mxu0 0
    %268 = vmatpush.bf16.xpose.msra.mxu0 0
    %269 = vmatpush.bf16.xpose.msra.mxu0 0
    %270 = vmatpush.bf16.xpose.msra.mxu0 0
    %271 = vmatpush.bf16.xpose.msra.mxu0 0
    %272 = vmatpush.bf16.xpose.msra.mxu0 %v263
    %273 = vmatmul.bf16.gmra.mxu0 %v260
    %v274 = vpop.f32.mrf.mxu0
    %v275 = vadd.f32 0.0, %v274
    %v276 = vpop.f32.mrf.mxu0
    %277 = vdwg.mxu0
    %v278 = vmul.f32 %v275, 0.17677669
    %v279 = vperm.slane %v257, 0
    %v280 = vadd.f32 %v278, %v279
    %v281 = vadd.f32 %v280, %v256
    %vm282 = vcmask 64512
    %v283 = vsel %vm282, %v281, -inf
    %284 = vmax.xlane.f32.xlu0 %v283
    %v285 = vpop.xlane.xlu0 %284
    %v286 = vsub.f32 %v281, %v285
    %v287 = vmul.f32 %v286, 1.442695
    %v288 = vpow.pop %v287
    %v289 = vsel %vm282, %v288, 0.0
    %290 = vadd.xlane.f32.xlu0 %v289
    %v291 = vpop.xlane.xlu0 %290
    %v292 = vrcp.pop %v291
    %v293 = vmul.f32 %v291, %v292
    %v294 = vsub.f32 1.0, %v293
    %v295 = vmul.f32 %v292, %v294
    %v296 = vadd.f32 %v292, %v295
    %vm297 = vweird.f32 %v291
    %vm298 = vweird.f32 %v292
    %vm299 = vmor %vm297, %vm298
    %v300 = vsel %vm299, %v292, %v296
    %v301 = vand.u32 2147483647, %v291
    %vm302 = vcmp.eq.f32.partialorder %v301, 8.507059e+37
    %v303 = vand.u32 %v291, 2147483648
    %v304 = vor.u32 1.1754944e-38, %v303
    %v305 = vsel %vm302, %v304, %v300
    %v306 = vmul.f32 %v288, %v305
    %v307 = vpack.c.bf16 %v306, %v306
    %v309 = vsel %vm282, %v307, 0
    %vm311 = vcmask 1043456
    %v313 = vsel %vm311, %v249, 0
    %315 = vmatpush.bf16.msra.mxu0 0
    %316 = vmatpush.bf16.msra.mxu0 0
    %317 = vmatpush.bf16.msra.mxu0 0
    %318 = vmatpush.bf16.msra.mxu0 0
    %319 = vmatpush.bf16.msra.mxu0 0
    %320 = vmatpush.bf16.msra.mxu0 0
    %321 = vmatpush.bf16.msra.mxu0 0
    %322 = vmatpush.bf16.msra.mxu0 %v313
    %323 = vmatmul.bf16.gmra.mxu0 %v309
    %v324 = vpop.f32.mrf.mxu0
    %v325 = vadd.f32 0.0, %v324
    %v326 = vpop.f32.mrf.mxu0
    %327 = vdwg.mxu0
    %v329 = vunpack.c.l.b16 %v245
    %v330 = vpack.c.b16 %v329, %v329
    %331 = vrot.lane.b32.xlu0 %v330, 96
    %v332 = vpop.permute.xlu0 %331
    %v334 = vunpack.c.l.b16 %v247
    %v335 = vpack.c.b16 %v334, %v334
    %336 = vrot.lane.b32.xlu0 %v335, 96
    %v337 = vpop.permute.xlu0 %336
    %v339 = vsel %vm258, %v332, 0
    %v342 = vsel %vm258, %v337, 0
    %344 = vmatpush.bf16.xpose.msra.mxu0 0
    %345 = vmatpush.bf16.xpose.msra.mxu0 0
    %346 = vmatpush.bf16.xpose.msra.mxu0 0
    %347 = vmatpush.bf16.xpose.msra.mxu0 0
    %348 = vmatpush.bf16.xpose.msra.mxu0 0
    %349 = vmatpush.bf16.xpose.msra.mxu0 0
    %350 = vmatpush.bf16.xpose.msra.mxu0 0
    %351 = vmatpush.bf16.xpose.msra.mxu0 %v342
    %352 = vmatmul.bf16.gmra.mxu0 %v339
    %v353 = vpop.f32.mrf.mxu0
    %v354 = vadd.f32 0.0, %v353
    %v355 = vpop.f32.mrf.mxu0
    %356 = vdwg.mxu0
    %v357 = vmul.f32 %v354, 0.17677669
    %v358 = vadd.f32 %v357, %v279
    %v359 = vadd.f32 %v358, %v256
    %v360 = vsel %vm282, %v359, -inf
    %361 = vmax.xlane.f32.xlu0 %v360
    %v362 = vpop.xlane.xlu0 %361
    %v363 = vsub.f32 %v359, %v362
    %v364 = vmul.f32 %v363, 1.442695
    %v365 = vpow.pop %v364
    %v366 = vsel %vm282, %v365, 0.0
    %367 = vadd.xlane.f32.xlu0 %v366
    %v368 = vpop.xlane.xlu0 %367
    %v369 = vrcp.pop %v368
    %v370 = vmul.f32 %v368, %v369
    %v371 = vsub.f32 1.0, %v370
    %v372 = vmul.f32 %v369, %v371
    %v373 = vadd.f32 %v369, %v372
    %vm374 = vweird.f32 %v368
    %vm375 = vweird.f32 %v369
    %vm376 = vmor %vm374, %vm375
    %v377 = vsel %vm376, %v369, %v373
    %v378 = vand.u32 2147483647, %v368
    %vm379 = vcmp.eq.f32.partialorder %v378, 8.507059e+37
    %v380 = vand.u32 %v368, 2147483648
    %v381 = vor.u32 1.1754944e-38, %v380
    %v382 = vsel %vm379, %v381, %v377
    %v383 = vmul.f32 %v365, %v382
    %v384 = vpack.c.bf16 %v383, %v383
    %v386 = vunpack.c.l.b16 %v249
    %v387 = vpack.c.b16 %v386, %v386
    %388 = vrot.lane.b32.xlu0 %v387, 96
    %v389 = vpop.permute.xlu0 %388
    %v391 = vsel %vm282, %v384, 0
    %v394 = vsel %vm311, %v389, 0
    %396 = vmatpush.bf16.msra.mxu0 0
    %397 = vmatpush.bf16.msra.mxu0 0
    %398 = vmatpush.bf16.msra.mxu0 0
    %399 = vmatpush.bf16.msra.mxu0 0
    %400 = vmatpush.bf16.msra.mxu0 0
    %401 = vmatpush.bf16.msra.mxu0 0
    %402 = vmatpush.bf16.msra.mxu0 0
    %403 = vmatpush.bf16.msra.mxu0 %v394
    %404 = vmatmul.bf16.gmra.mxu0 %v391
    %v405 = vpop.f32.mrf.mxu0
    %v406 = vadd.f32 0.0, %v405
    %v407 = vpop.f32.mrf.mxu0
    %408 = vdwg.mxu0
    %409 = vrot.lane.b32.xlu0 %v330, 64
    %v410 = vpop.permute.xlu0 %409
    %411 = vrot.lane.b32.xlu0 %v335, 64
    %v412 = vpop.permute.xlu0 %411
    %v414 = vsel %vm258, %v410, 0
    %v417 = vsel %vm258, %v412, 0
    %419 = vmatpush.bf16.xpose.msra.mxu0 0
    %420 = vmatpush.bf16.xpose.msra.mxu0 0
    %421 = vmatpush.bf16.xpose.msra.mxu0 0
    %422 = vmatpush.bf16.xpose.msra.mxu0 0
    %423 = vmatpush.bf16.xpose.msra.mxu0 0
    %424 = vmatpush.bf16.xpose.msra.mxu0 0
    %425 = vmatpush.bf16.xpose.msra.mxu0 0
    %426 = vmatpush.bf16.xpose.msra.mxu0 %v417
    %427 = vmatmul.bf16.gmra.mxu0 %v414
    %v428 = vpop.f32.mrf.mxu0
    %v429 = vadd.f32 0.0, %v428
    %v430 = vpop.f32.mrf.mxu0
    %431 = vdwg.mxu0
    %v432 = vmul.f32 %v429, 0.17677669
    %v433 = vadd.f32 %v432, %v279
    %v434 = vadd.f32 %v433, %v256
    %v435 = vsel %vm282, %v434, -inf
    %436 = vmax.xlane.f32.xlu0 %v435
    %v437 = vpop.xlane.xlu0 %436
    %v438 = vsub.f32 %v434, %v437
    %v439 = vmul.f32 %v438, 1.442695
    %v440 = vpow.pop %v439
    %v441 = vsel %vm282, %v440, 0.0
    %442 = vadd.xlane.f32.xlu0 %v441
    %v443 = vpop.xlane.xlu0 %442
    %v444 = vrcp.pop %v443
    %v445 = vmul.f32 %v443, %v444
    %v446 = vsub.f32 1.0, %v445
    %v447 = vmul.f32 %v444, %v446
    %v448 = vadd.f32 %v444, %v447
    %vm449 = vweird.f32 %v443
    %vm450 = vweird.f32 %v444
    %vm451 = vmor %vm449, %vm450
    %v452 = vsel %vm451, %v444, %v448
    %v453 = vand.u32 2147483647, %v443
    %vm454 = vcmp.eq.f32.partialorder %v453, 8.507059e+37
    %v455 = vand.u32 %v443, 2147483648
    %v456 = vor.u32 1.1754944e-38, %v455
    %v457 = vsel %vm454, %v456, %v452
    %v458 = vmul.f32 %v440, %v457
    %v459 = vpack.c.bf16 %v458, %v458
    %460 = vrot.lane.b32.xlu0 %v387, 64
    %v461 = vpop.permute.xlu0 %460
    %v463 = vsel %vm282, %v459, 0
    %v466 = vsel %vm311, %v461, 0
    %468 = vmatpush.bf16.msra.mxu0 0
    %469 = vmatpush.bf16.msra.mxu0 0
    %470 = vmatpush.bf16.msra.mxu0 0
    %471 = vmatpush.bf16.msra.mxu0 0
    %472 = vmatpush.bf16.msra.mxu0 0
    %473 = vmatpush.bf16.msra.mxu0 0
    %474 = vmatpush.bf16.msra.mxu0 0
    %475 = vmatpush.bf16.msra.mxu0 %v466
    %476 = vmatmul.bf16.gmra.mxu0 %v463
    %v477 = vpop.f32.mrf.mxu0
    %v478 = vadd.f32 0.0, %v477
    %v479 = vpop.f32.mrf.mxu0
    %480 = vdwg.mxu0
    %481 = vrot.lane.b32.xlu0 %v330, 32
    %v482 = vpop.permute.xlu0 %481
    %483 = vrot.lane.b32.xlu0 %v335, 32
    %v484 = vpop.permute.xlu0 %483
    %v486 = vsel %vm258, %v482, 0
    %v489 = vsel %vm258, %v484, 0
    %491 = vmatpush.bf16.xpose.msra.mxu0 0
    %492 = vmatpush.bf16.xpose.msra.mxu0 0
    %493 = vmatpush.bf16.xpose.msra.mxu0 0
    %494 = vmatpush.bf16.xpose.msra.mxu0 0
    %495 = vmatpush.bf16.xpose.msra.mxu0 0
    %496 = vmatpush.bf16.xpose.msra.mxu0 0
    %497 = vmatpush.bf16.xpose.msra.mxu0 0
    %498 = vmatpush.bf16.xpose.msra.mxu0 %v489
    %499 = vmatmul.bf16.gmra.mxu0 %v486
    %v500 = vpop.f32.mrf.mxu0
    %v501 = vadd.f32 0.0, %v500
    %v502 = vpop.f32.mrf.mxu0
    %503 = vdwg.mxu0
    %v504 = vmul.f32 %v501, 0.17677669
    %v505 = vadd.f32 %v504, %v279
    %v506 = vadd.f32 %v505, %v256
    %v507 = vsel %vm282, %v506, -inf
    %508 = vmax.xlane.f32.xlu0 %v507
    %v509 = vpop.xlane.xlu0 %508
    %v510 = vsub.f32 %v506, %v509
    %v511 = vmul.f32 %v510, 1.442695
    %v512 = vpow.pop %v511
    %v513 = vsel %vm282, %v512, 0.0
    %514 = vadd.xlane.f32.xlu0 %v513
    %v515 = vpop.xlane.xlu0 %514
    %v516 = vrcp.pop %v515
    %v517 = vmul.f32 %v515, %v516
    %v518 = vsub.f32 1.0, %v517
    %v519 = vmul.f32 %v516, %v518
    %v520 = vadd.f32 %v516, %v519
    %vm521 = vweird.f32 %v515
    %vm522 = vweird.f32 %v516
    %vm523 = vmor %vm521, %vm522
    %v524 = vsel %vm523, %v516, %v520
    %v525 = vand.u32 2147483647, %v515
    %vm526 = vcmp.eq.f32.partialorder %v525, 8.507059e+37
    %v527 = vand.u32 %v515, 2147483648
    %v528 = vor.u32 1.1754944e-38, %v527
    %v529 = vsel %vm526, %v528, %v524
    %v530 = vmul.f32 %v512, %v529
    %v531 = vpack.c.bf16 %v530, %v530
    %532 = vrot.lane.b32.xlu0 %v387, 32
    %v533 = vpop.permute.xlu0 %532
    %v535 = vsel %vm282, %v531, 0
    %v538 = vsel %vm311, %v533, 0
    %540 = vmatpush.bf16.msra.mxu0 0
    %541 = vmatpush.bf16.msra.mxu0 0
    %542 = vmatpush.bf16.msra.mxu0 0
    %543 = vmatpush.bf16.msra.mxu0 0
    %544 = vmatpush.bf16.msra.mxu0 0
    %545 = vmatpush.bf16.msra.mxu0 0
    %546 = vmatpush.bf16.msra.mxu0 0
    %547 = vmatpush.bf16.msra.mxu0 %v538
    %548 = vmatmul.bf16.gmra.mxu0 %v535
    %v549 = vpop.f32.mrf.mxu0
    %v550 = vadd.f32 0.0, %v549
    %v551 = vpop.f32.mrf.mxu0
    %552 = vdwg.mxu0
    %554 = vrot.lane.b32.xlu0 %v406, 32
    %v555 = vpop.permute.xlu0 %554
    %558 = vrot.lane.b32.xlu0 %v478, 64
    %v559 = vpop.permute.xlu0 %558
    %562 = vrot.lane.b32.xlu0 %v550, 96
    %v563 = vpop.permute.xlu0 %562
    %v565 = vsel %vm258, %v325, %v555
    %vm566 = vcmask 523264
    %v567 = vsel %vm566, %v565, %v559
    %vm568 = vcmask 785408
    %v569 = vsel %vm568, %v567, %v563
    %s570 = scalar_lea.vmem %s2, 2
    %v571 = vld [vmem:[%s570] sm:$0x3]
    %v573 = vsel %vm258, %v246, 0
    %v576 = vsel %vm258, %v248, 0
    %578 = vmatpush.bf16.xpose.msra.mxu0 0
    %579 = vmatpush.bf16.xpose.msra.mxu0 0
    %580 = vmatpush.bf16.xpose.msra.mxu0 0
    %581 = vmatpush.bf16.xpose.msra.mxu0 0
    %582 = vmatpush.bf16.xpose.msra.mxu0 0
    %583 = vmatpush.bf16.xpose.msra.mxu0 0
    %584 = vmatpush.bf16.xpose.msra.mxu0 0
    %585 = vmatpush.bf16.xpose.msra.mxu0 %v576
    %586 = vmatmul.bf16.gmra.mxu0 %v573
    %v587 = vpop.f32.mrf.mxu0
    %v588 = vadd.f32 0.0, %v587
    %v589 = vpop.f32.mrf.mxu0
    %590 = vdwg.mxu0
    %v591 = vmul.f32 %v588, 0.17677669
    %v592 = vperm.slane %v571, 0
    %v593 = vadd.f32 %v591, %v592
    %v594 = vadd.f32 %v593, %v256
    %v595 = vsel %vm282, %v594, -inf
    %596 = vmax.xlane.f32.xlu0 %v595
    %v597 = vpop.xlane.xlu0 %596
    %v598 = vsub.f32 %v594, %v597
    %v599 = vmul.f32 %v598, 1.442695
    %v600 = vpow.pop %v599
    %v601 = vsel %vm282, %v600, 0.0
    %602 = vadd.xlane.f32.xlu0 %v601
    %v603 = vpop.xlane.xlu0 %602
    %v604 = vrcp.pop %v603
    %v605 = vmul.f32 %v603, %v604
    %v606 = vsub.f32 1.0, %v605
    %v607 = vmul.f32 %v604, %v606
    %v608 = vadd.f32 %v604, %v607
    %vm609 = vweird.f32 %v603
    %vm610 = vweird.f32 %v604
    %vm611 = vmor %vm609, %vm610
    %v612 = vsel %vm611, %v604, %v608
    %v613 = vand.u32 2147483647, %v603
    %vm614 = vcmp.eq.f32.partialorder %v613, 8.507059e+37
    %v615 = vand.u32 %v603, 2147483648
    %v616 = vor.u32 1.1754944e-38, %v615
    %v617 = vsel %vm614, %v616, %v612
    %v618 = vmul.f32 %v600, %v617
    %v619 = vpack.c.bf16 %v618, %v618
    %v621 = vsel %vm282, %v619, 0
    %v624 = vsel %vm311, %v250, 0
    %626 = vmatpush.bf16.msra.mxu0 0
    %627 = vmatpush.bf16.msra.mxu0 0
    %628 = vmatpush.bf16.msra.mxu0 0
    %629 = vmatpush.bf16.msra.mxu0 0
    %630 = vmatpush.bf16.msra.mxu0 0
    %631 = vmatpush.bf16.msra.mxu0 0
    %632 = vmatpush.bf16.msra.mxu0 0
    %633 = vmatpush.bf16.msra.mxu0 %v624
    %634 = vmatmul.bf16.gmra.mxu0 %v621
    %v635 = vpop.f32.mrf.mxu0
    %v636 = vadd.f32 0.0, %v635
    %v637 = vpop.f32.mrf.mxu0
    %638 = vdwg.mxu0
    %v640 = vunpack.c.l.b16 %v246
    %v641 = vpack.c.b16 %v640, %v640
    %642 = vrot.lane.b32.xlu0 %v641, 96
    %v643 = vpop.permute.xlu0 %642
    %v645 = vunpack.c.l.b16 %v248
    %v646 = vpack.c.b16 %v645, %v645
    %647 = vrot.lane.b32.xlu0 %v646, 96
    %v648 = vpop.permute.xlu0 %647
    %v650 = vsel %vm258, %v643, 0
    %v653 = vsel %vm258, %v648, 0
    %655 = vmatpush.bf16.xpose.msra.mxu0 0
    %656 = vmatpush.bf16.xpose.msra.mxu0 0
    %657 = vmatpush.bf16.xpose.msra.mxu0 0
    %658 = vmatpush.bf16.xpose.msra.mxu0 0
    %659 = vmatpush.bf16.xpose.msra.mxu0 0
    %660 = vmatpush.bf16.xpose.msra.mxu0 0
    %661 = vmatpush.bf16.xpose.msra.mxu0 0
    %662 = vmatpush.bf16.xpose.msra.mxu0 %v653
    %663 = vmatmul.bf16.gmra.mxu0 %v650
    %v664 = vpop.f32.mrf.mxu0
    %v665 = vadd.f32 0.0, %v664
    %v666 = vpop.f32.mrf.mxu0
    %667 = vdwg.mxu0
    %v668 = vmul.f32 %v665, 0.17677669
    %v669 = vadd.f32 %v668, %v592
    %v670 = vadd.f32 %v669, %v256
    %v671 = vsel %vm282, %v670, -inf
    %672 = vmax.xlane.f32.xlu0 %v671
    %v673 = vpop.xlane.xlu0 %672
    %v674 = vsub.f32 %v670, %v673
    %v675 = vmul.f32 %v674, 1.442695
    %v676 = vpow.pop %v675
    %v677 = vsel %vm282, %v676, 0.0
    %678 = vadd.xlane.f32.xlu0 %v677
    %v679 = vpop.xlane.xlu0 %678
    %v680 = vrcp.pop %v679
    %v681 = vmul.f32 %v679, %v680
    %v682 = vsub.f32 1.0, %v681
    %v683 = vmul.f32 %v680, %v682
    %v684 = vadd.f32 %v680, %v683
    %vm685 = vweird.f32 %v679
    %vm686 = vweird.f32 %v680
    %vm687 = vmor %vm685, %vm686
    %v688 = vsel %vm687, %v680, %v684
    %v689 = vand.u32 2147483647, %v679
    %vm690 = vcmp.eq.f32.partialorder %v689, 8.507059e+37
    %v691 = vand.u32 %v679, 2147483648
    %v692 = vor.u32 1.1754944e-38, %v691
    %v693 = vsel %vm690, %v692, %v688
    %v694 = vmul.f32 %v676, %v693
    %v695 = vpack.c.bf16 %v694, %v694
    %v697 = vunpack.c.l.b16 %v250
    %v698 = vpack.c.b16 %v697, %v697
    %699 = vrot.lane.b32.xlu0 %v698, 96
    %v700 = vpop.permute.xlu0 %699
    %v702 = vsel %vm282, %v695, 0
    %v705 = vsel %vm311, %v700, 0
    %707 = vmatpush.bf16.msra.mxu0 0
    %708 = vmatpush.bf16.msra.mxu0 0
    %709 = vmatpush.bf16.msra.mxu0 0
    %710 = vmatpush.bf16.msra.mxu0 0
    %711 = vmatpush.bf16.msra.mxu0 0
    %712 = vmatpush.bf16.msra.mxu0 0
    %713 = vmatpush.bf16.msra.mxu0 0
    %714 = vmatpush.bf16.msra.mxu0 %v705
    %715 = vmatmul.bf16.gmra.mxu0 %v702
    %v716 = vpop.f32.mrf.mxu0
    %v717 = vadd.f32 0.0, %v716
    %v718 = vpop.f32.mrf.mxu0
    %719 = vdwg.mxu0
    %720 = vrot.lane.b32.xlu0 %v641, 64
    %v721 = vpop.permute.xlu0 %720
    %722 = vrot.lane.b32.xlu0 %v646, 64
    %v723 = vpop.permute.xlu0 %722
    %v725 = vsel %vm258, %v721, 0
    %v728 = vsel %vm258, %v723, 0
    %730 = vmatpush.bf16.xpose.msra.mxu0 0
    %731 = vmatpush.bf16.xpose.msra.mxu0 0
    %732 = vmatpush.bf16.xpose.msra.mxu0 0
    %733 = vmatpush.bf16.xpose.msra.mxu0 0
    %734 = vmatpush.bf16.xpose.msra.mxu0 0
    %735 = vmatpush.bf16.xpose.msra.mxu0 0
    %736 = vmatpush.bf16.xpose.msra.mxu0 0
    %737 = vmatpush.bf16.xpose.msra.mxu0 %v728
    %738 = vmatmul.bf16.gmra.mxu0 %v725
    %v739 = vpop.f32.mrf.mxu0
    %v740 = vadd.f32 0.0, %v739
    %v741 = vpop.f32.mrf.mxu0
    %742 = vdwg.mxu0
    %v743 = vmul.f32 %v740, 0.17677669
    %v744 = vadd.f32 %v743, %v592
    %v745 = vadd.f32 %v744, %v256
    %v746 = vsel %vm282, %v745, -inf
    %747 = vmax.xlane.f32.xlu0 %v746
    %v748 = vpop.xlane.xlu0 %747
    %v749 = vsub.f32 %v745, %v748
    %v750 = vmul.f32 %v749, 1.442695
    %v751 = vpow.pop %v750
    %v752 = vsel %vm282, %v751, 0.0
    %753 = vadd.xlane.f32.xlu0 %v752
    %v754 = vpop.xlane.xlu0 %753
    %v755 = vrcp.pop %v754
    %v756 = vmul.f32 %v754, %v755
    %v757 = vsub.f32 1.0, %v756
    %v758 = vmul.f32 %v755, %v757
    %v759 = vadd.f32 %v755, %v758
    %vm760 = vweird.f32 %v754
    %vm761 = vweird.f32 %v755
    %vm762 = vmor %vm760, %vm761
    %v763 = vsel %vm762, %v755, %v759
    %v764 = vand.u32 2147483647, %v754
    %vm765 = vcmp.eq.f32.partialorder %v764, 8.507059e+37
    %v766 = vand.u32 %v754, 2147483648
    %v767 = vor.u32 1.1754944e-38, %v766
    %v768 = vsel %vm765, %v767, %v763
    %v769 = vmul.f32 %v751, %v768
    %v770 = vpack.c.bf16 %v769, %v769
    %771 = vrot.lane.b32.xlu0 %v698, 64
    %v772 = vpop.permute.xlu0 %771
    %v774 = vsel %vm282, %v770, 0
    %v777 = vsel %vm311, %v772, 0
    %779 = vmatpush.bf16.msra.mxu0 0
    %780 = vmatpush.bf16.msra.mxu0 0
    %781 = vmatpush.bf16.msra.mxu0 0
    %782 = vmatpush.bf16.msra.mxu0 0
    %783 = vmatpush.bf16.msra.mxu0 0
    %784 = vmatpush.bf16.msra.mxu0 0
    %785 = vmatpush.bf16.msra.mxu0 0
    %786 = vmatpush.bf16.msra.mxu0 %v777
    %787 = vmatmul.bf16.gmra.mxu0 %v774
    %v788 = vpop.f32.mrf.mxu0
    %v789 = vadd.f32 0.0, %v788
    %v790 = vpop.f32.mrf.mxu0
    %791 = vdwg.mxu0
    %792 = vrot.lane.b32.xlu0 %v641, 32
    %v793 = vpop.permute.xlu0 %792
    %794 = vrot.lane.b32.xlu0 %v646, 32
    %v795 = vpop.permute.xlu0 %794
    %v797 = vsel %vm258, %v793, 0
    %v800 = vsel %vm258, %v795, 0
    %802 = vmatpush.bf16.xpose.msra.mxu0 0
    %803 = vmatpush.bf16.xpose.msra.mxu0 0
    %804 = vmatpush.bf16.xpose.msra.mxu0 0
    %805 = vmatpush.bf16.xpose.msra.mxu0 0
    %806 = vmatpush.bf16.xpose.msra.mxu0 0
    %807 = vmatpush.bf16.xpose.msra.mxu0 0
    %808 = vmatpush.bf16.xpose.msra.mxu0 0
    %809 = vmatpush.bf16.xpose.msra.mxu0 %v800
    %810 = vmatmul.bf16.gmra.mxu0 %v797
    %v811 = vpop.f32.mrf.mxu0
    %v812 = vadd.f32 0.0, %v811
    %v813 = vpop.f32.mrf.mxu0
    %814 = vdwg.mxu0
    %v815 = vmul.f32 %v812, 0.17677669
    %v816 = vadd.f32 %v815, %v592
    %v817 = vadd.f32 %v816, %v256
    %v818 = vsel %vm282, %v817, -inf
    %819 = vmax.xlane.f32.xlu0 %v818
    %v820 = vpop.xlane.xlu0 %819
    %v821 = vsub.f32 %v817, %v820
    %v822 = vmul.f32 %v821, 1.442695
    %v823 = vpow.pop %v822
    %v824 = vsel %vm282, %v823, 0.0
    %825 = vadd.xlane.f32.xlu0 %v824
    %v826 = vpop.xlane.xlu0 %825
    %v827 = vrcp.pop %v826
    %v828 = vmul.f32 %v826, %v827
    %v829 = vsub.f32 1.0, %v828
    %v830 = vmul.f32 %v827, %v829
    %v831 = vadd.f32 %v827, %v830
    %vm832 = vweird.f32 %v826
    %vm833 = vweird.f32 %v827
    %vm834 = vmor %vm832, %vm833
    %v835 = vsel %vm834, %v827, %v831
    %v836 = vand.u32 2147483647, %v826
    %vm837 = vcmp.eq.f32.partialorder %v836, 8.507059e+37
    %v838 = vand.u32 %v826, 2147483648
    %v839 = vor.u32 1.1754944e-38, %v838
    %v840 = vsel %vm837, %v839, %v835
    %v841 = vmul.f32 %v823, %v840
    %v842 = vpack.c.bf16 %v841, %v841
    %843 = vrot.lane.b32.xlu0 %v698, 32
    %v844 = vpop.permute.xlu0 %843
    %v846 = vsel %vm282, %v842, 0
    %v849 = vsel %vm311, %v844, 0
    %851 = vmatpush.bf16.msra.mxu0 0
    %852 = vmatpush.bf16.msra.mxu0 0
    %853 = vmatpush.bf16.msra.mxu0 0
    %854 = vmatpush.bf16.msra.mxu0 0
    %855 = vmatpush.bf16.msra.mxu0 0
    %856 = vmatpush.bf16.msra.mxu0 0
    %857 = vmatpush.bf16.msra.mxu0 0
    %858 = vmatpush.bf16.msra.mxu0 %v849
    %859 = vmatmul.bf16.gmra.mxu0 %v846
    %v860 = vpop.f32.mrf.mxu0
    %v861 = vadd.f32 0.0, %v860
    %v862 = vpop.f32.mrf.mxu0
    %863 = vdwg.mxu0
    %865 = vrot.lane.b32.xlu0 %v717, 32
    %v866 = vpop.permute.xlu0 %865
    %869 = vrot.lane.b32.xlu0 %v789, 64
    %v870 = vpop.permute.xlu0 %869
    %873 = vrot.lane.b32.xlu0 %v861, 96
    %v874 = vpop.permute.xlu0 %873
    %v876 = vsel %vm258, %v636, %v866
    %v877 = vsel %vm566, %v876, %v870
    %v878 = vsel %vm568, %v877, %v874
    %v879 = vpack.c.bf16 %v878, %v569
    %v880 = vld [vmem:[%s3 + $0xc] sm:$0xf]
    %v881 = vld [vmem:[%s3 + $0x34] sm:$0xf]
    %v882 = vld [vmem:[%s3 + $0x5c] sm:$0xf]
    %v883 = vld [vmem:[%s3 + $0x84] sm:$0xf]
    %v884 = vld [vmem:[%s3 + $0xac] sm:$0xf]
    %v885 = vld [vmem:[%s3 + $0xd4] sm:$0xf]
    %v886 = vld [vmem:[%s3 + $0xfc] sm:$0xf]
    %v887 = vld [vmem:[%s3 + $0x124] sm:$0xf]
    %v888 = vld [vmem:[%s3 + $0x14c] sm:$0xf]
    %v889 = vld [vmem:[%s3 + $0x174] sm:$0xf]
    %v890 = vld [vmem:[%s3 + $0x19c] sm:$0xf]
    %v891 = vld [vmem:[%s3 + $0x1c4] sm:$0xf]
    %v892 = vld [vmem:[%s3 + $0x1ec] sm:$0xf]
    %v893 = vld [vmem:[%s3 + $0x214] sm:$0xf]
    %v894 = vld [vmem:[%s3 + $0x23c] sm:$0xf]
    %v895 = vld [vmem:[%s3 + $0x264] sm:$0xf]
    %v896 = vld [vmem:[%s5 + $0x3] sm:$0x1]
    %v898 = vperm.slane %v896, 0
    %v916 = vunpack.c.l.b16 %v880
    %v917 = vunpack.c.l.b16 %v881
    %v918 = vunpack.c.l.b16 %v882
    %v919 = vunpack.c.l.b16 %v883
    %v920 = vunpack.c.l.b16 %v884
    %v921 = vunpack.c.l.b16 %v885
    %v922 = vunpack.c.l.b16 %v886
    %v923 = vunpack.c.l.b16 %v887
    %v924 = vunpack.c.l.b16 %v888
    %v925 = vunpack.c.l.b16 %v889
    %v926 = vunpack.c.l.b16 %v890
    %v927 = vunpack.c.l.b16 %v891
    %v928 = vunpack.c.l.b16 %v892
    %v929 = vunpack.c.l.b16 %v893
    %v930 = vunpack.c.l.b16 %v894
    %v931 = vunpack.c.l.b16 %v895
    %v932 = vpack.c.b16 %v917, %v916
    %v933 = vpack.c.b16 %v919, %v918
    %v934 = vpack.c.b16 %v921, %v920
    %v935 = vpack.c.b16 %v923, %v922
    %v936 = vpack.c.b16 %v925, %v924
    %v937 = vpack.c.b16 %v927, %v926
    %v938 = vpack.c.b16 %v929, %v928
    %v939 = vpack.c.b16 %v931, %v930
    %948 = vmatpush.bf16.msra.mxu0 %v939
    %949 = vmatpush.bf16.msra.mxu0 %v938
    %950 = vmatpush.bf16.msra.mxu0 %v937
    %951 = vmatpush.bf16.msra.mxu0 %v936
    %952 = vmatpush.bf16.msra.mxu0 %v935
    %953 = vmatpush.bf16.msra.mxu0 %v934
    %954 = vmatpush.bf16.msra.mxu0 %v933
    %955 = vmatpush.bf16.msra.mxu0 %v932
    %956 = vmatmul.bf16.gmra.mxu0 %v879
    %v957 = vpop.f32.mrf.mxu0
    %v958 = vadd.f32 %v898, %v957
    %v959 = vpop.f32.mrf.mxu0
    %v960 = vadd.f32 %v898, %v959
    %961 = vdwg.mxu0
    %v962 = vadd.f32 %v28, %v958
    %v963 = vadd.f32 %v29, %v960
    %v964 = vld [vmem:[%s6] sm:$0x1]
    %v965 = vld [vmem:[%s6 + $0x1] sm:$0x1]
    %966 = vadd.xlane.f32.xlu0 %v962
    %v967 = vpop.xlane.xlu0 %966
    %968 = vadd.xlane.f32.xlu0 %v963
    %v969 = vpop.xlane.xlu0 %968
    %v970 = vrcp.pop 128.0
    %v971 = vmul.f32 128.0, %v970
    %v972 = vsub.f32 1.0, %v971
    %v973 = vmul.f32 %v970, %v972
    %v974 = vadd.f32 %v970, %v973
    %vm975 = vweird.f32 %v970
    %v976 = vsel %vm975, %v970, %v974
    %v977 = vmul.f32 %v967, %v976
    %v978 = vmul.f32 %v969, %v976
    %v979 = vsub.f32 %v962, %v977
    %v980 = vsub.f32 %v963, %v978
    %v981 = vmul.f32 %v979, %v979
    %v982 = vmul.f32 %v980, %v980
    %983 = vadd.xlane.f32.xlu0 %v981
    %v984 = vpop.xlane.xlu0 %983
    %985 = vadd.xlane.f32.xlu0 %v982
    %v986 = vpop.xlane.xlu0 %985
    %v987 = vmul.f32 %v984, %v976
    %v988 = vmul.f32 %v986, %v976
    %v989 = vadd.f32 %v987, 1e-05
    %v990 = vadd.f32 %v988, 1e-05
    %v991 = vrsqrt.pop %v989
    %v992 = vmul.f32 %v991, %v989
    %v993 = vmul.f32 %v992, %v991
    %v994 = vmul.f32 0.5, %v993
    %v995 = vsub.f32 1.5, %v994
    %v996 = vmul.f32 %v991, %v995
    %vm997 = vweird.f32 %v989
    %vm998 = vweird.f32 %v991
    %vm999 = vmor %vm997, %vm998
    %v1000 = vsel %vm999, %v991, %v996
    %v1001 = vrsqrt.pop %v990
    %v1002 = vmul.f32 %v1001, %v990
    %v1003 = vmul.f32 %v1002, %v1001
    %v1004 = vmul.f32 0.5, %v1003
    %v1005 = vsub.f32 1.5, %v1004
    %v1006 = vmul.f32 %v1001, %v1005
    %vm1007 = vweird.f32 %v990
    %vm1008 = vweird.f32 %v1001
    %vm1009 = vmor %vm1007, %vm1008
    %v1010 = vsel %vm1009, %v1001, %v1006
    %v1011 = vmul.f32 %v979, %v1000
    %v1012 = vmul.f32 %v980, %v1010
    %v1013 = vperm.slane %v964, 0
    %v1014 = vmul.f32 %v1011, %v1013
    %v1015 = vmul.f32 %v1012, %v1013
    %v1016 = vperm.slane %v965, 0
    %v1017 = vadd.f32 %v1014, %v1016
    %v1018 = vadd.f32 %v1015, %v1016
    %v1019 = vpack.c.bf16 %v1018, %v1017
    %v1020 = vld [vmem:[%s3 + $0x10] sm:$0xf]
    %v1021 = vld [vmem:[%s3 + $0x38] sm:$0xf]
    %v1022 = vld [vmem:[%s3 + $0x60] sm:$0xf]
    %v1023 = vld [vmem:[%s3 + $0x88] sm:$0xf]
    %v1024 = vld [vmem:[%s3 + $0xb0] sm:$0xf]
    %v1025 = vld [vmem:[%s3 + $0xd8] sm:$0xf]
    %v1026 = vld [vmem:[%s3 + $0x100] sm:$0xf]
    %v1027 = vld [vmem:[%s3 + $0x128] sm:$0xf]
    %v1028 = vld [vmem:[%s3 + $0x150] sm:$0xf]
    %v1029 = vld [vmem:[%s3 + $0x178] sm:$0xf]
    %v1030 = vld [vmem:[%s3 + $0x1a0] sm:$0xf]
    %v1031 = vld [vmem:[%s3 + $0x1c8] sm:$0xf]
    %v1032 = vld [vmem:[%s3 + $0x1f0] sm:$0xf]
    %v1033 = vld [vmem:[%s3 + $0x218] sm:$0xf]
    %v1034 = vld [vmem:[%s3 + $0x240] sm:$0xf]
    %v1035 = vld [vmem:[%s3 + $0x268] sm:$0xf]
    %v1036 = vld [vmem:[%s5 + $0x4] sm:$0x1]
    %v1038 = vperm.slane %v1036, 0
    %v1056 = vunpack.c.l.b16 %v1020
    %v1057 = vunpack.c.l.b16 %v1021
    %v1058 = vunpack.c.l.b16 %v1022
    %v1059 = vunpack.c.l.b16 %v1023
    %v1060 = vunpack.c.l.b16 %v1024
    %v1061 = vunpack.c.l.b16 %v1025
    %v1062 = vunpack.c.l.b16 %v1026
    %v1063 = vunpack.c.l.b16 %v1027
    %v1064 = vunpack.c.l.b16 %v1028
    %v1065 = vunpack.c.l.b16 %v1029
    %v1066 = vunpack.c.l.b16 %v1030
    %v1067 = vunpack.c.l.b16 %v1031
    %v1068 = vunpack.c.l.b16 %v1032
    %v1069 = vunpack.c.l.b16 %v1033
    %v1070 = vunpack.c.l.b16 %v1034
    %v1071 = vunpack.c.l.b16 %v1035
    %v1072 = vpack.c.b16 %v1057, %v1056
    %v1073 = vpack.c.b16 %v1059, %v1058
    %v1074 = vpack.c.b16 %v1061, %v1060
    %v1075 = vpack.c.b16 %v1063, %v1062
    %v1076 = vpack.c.b16 %v1065, %v1064
    %v1077 = vpack.c.b16 %v1067, %v1066
    %v1078 = vpack.c.b16 %v1069, %v1068
    %v1079 = vpack.c.b16 %v1071, %v1070
    %1088 = vmatpush.bf16.msra.mxu0 %v1079
    %1089 = vmatpush.bf16.msra.mxu0 %v1078
    %1090 = vmatpush.bf16.msra.mxu0 %v1077
    %1091 = vmatpush.bf16.msra.mxu0 %v1076
    %1092 = vmatpush.bf16.msra.mxu0 %v1075
    %1093 = vmatpush.bf16.msra.mxu0 %v1074
    %1094 = vmatpush.bf16.msra.mxu0 %v1073
    %1095 = vmatpush.bf16.msra.mxu0 %v1072
    %1096 = vmatmul.bf16.gmra.mxu0 %v1019
    %v1097 = vpop.f32.mrf.mxu0
    %v1098 = vadd.f32 %v1038, %v1097
    %v1099 = vpop.f32.mrf.mxu0
    %v1100 = vadd.f32 %v1038, %v1099
    %1101 = vdwg.mxu0
    %v1102 = vpack.c.bf16 %v31, %v30
    %v1103 = vpack.c.bf16 %v33, %v32
    %v1104 = vld [vmem:[%s3 + $0x14] sm:$0xff]
    %v1105 = vld [vmem:[%s3 + $0x3c] sm:$0xff]
    %v1106 = vld [vmem:[%s3 + $0x64] sm:$0xff]
    %v1107 = vld [vmem:[%s3 + $0x8c] sm:$0xff]
    %v1108 = vld [vmem:[%s3 + $0xb4] sm:$0xff]
    %v1109 = vld [vmem:[%s3 + $0xdc] sm:$0xff]
    %v1110 = vld [vmem:[%s3 + $0x104] sm:$0xff]
    %v1111 = vld [vmem:[%s3 + $0x12c] sm:$0xff]
    %v1112 = vld [vmem:[%s3 + $0x154] sm:$0xff]
    %v1113 = vld [vmem:[%s3 + $0x17c] sm:$0xff]
    %v1114 = vld [vmem:[%s3 + $0x1a4] sm:$0xff]
    %v1115 = vld [vmem:[%s3 + $0x1cc] sm:$0xff]
    %v1116 = vld [vmem:[%s3 + $0x1f4] sm:$0xff]
    %v1117 = vld [vmem:[%s3 + $0x21c] sm:$0xff]
    %v1118 = vld [vmem:[%s3 + $0x244] sm:$0xff]
    %v1119 = vld [vmem:[%s3 + $0x26c] sm:$0xff]
    %v1120 = vld [vmem:[%s5 + $0x5] sm:$0x3]
    %v1122 = vperm.slane %v1120, 0
    %v1123 = vperm.slane %v1120, 1
    %v1142 = vunpack.c.l.b16 %v1104
    %v1143 = vunpack.c.h.b16 %v1104
    %v1144 = vunpack.c.l.b16 %v1105
    %v1145 = vunpack.c.h.b16 %v1105
    %v1146 = vunpack.c.l.b16 %v1106
    %v1147 = vunpack.c.h.b16 %v1106
    %v1148 = vunpack.c.l.b16 %v1107
    %v1149 = vunpack.c.h.b16 %v1107
    %v1150 = vunpack.c.l.b16 %v1108
    %v1151 = vunpack.c.h.b16 %v1108
    %v1152 = vunpack.c.l.b16 %v1109
    %v1153 = vunpack.c.h.b16 %v1109
    %v1154 = vunpack.c.l.b16 %v1110
    %v1155 = vunpack.c.h.b16 %v1110
    %v1156 = vunpack.c.l.b16 %v1111
    %v1157 = vunpack.c.h.b16 %v1111
    %v1158 = vunpack.c.l.b16 %v1112
    %v1159 = vunpack.c.h.b16 %v1112
    %v1160 = vunpack.c.l.b16 %v1113
    %v1161 = vunpack.c.h.b16 %v1113
    %v1162 = vunpack.c.l.b16 %v1114
    %v1163 = vunpack.c.h.b16 %v1114
    %v1164 = vunpack.c.l.b16 %v1115
    %v1165 = vunpack.c.h.b16 %v1115
    %v1166 = vunpack.c.l.b16 %v1116
    %v1167 = vunpack.c.h.b16 %v1116
    %v1168 = vunpack.c.l.b16 %v1117
    %v1169 = vunpack.c.h.b16 %v1117
    %v1170 = vunpack.c.l.b16 %v1118
    %v1171 = vunpack.c.h.b16 %v1118
    %v1172 = vunpack.c.l.b16 %v1119
    %v1173 = vunpack.c.h.b16 %v1119
    %v1174 = vpack.c.b16 %v1144, %v1142
    %v1175 = vpack.c.b16 %v1145, %v1143
    %v1176 = vpack.c.b16 %v1148, %v1146
    %v1177 = vpack.c.b16 %v1149, %v1147
    %v1178 = vpack.c.b16 %v1152, %v1150
    %v1179 = vpack.c.b16 %v1153, %v1151
    %v1180 = vpack.c.b16 %v1156, %v1154
    %v1181 = vpack.c.b16 %v1157, %v1155
    %v1182 = vpack.c.b16 %v1160, %v1158
    %v1183 = vpack.c.b16 %v1161, %v1159
    %v1184 = vpack.c.b16 %v1164, %v1162
    %v1185 = vpack.c.b16 %v1165, %v1163
    %v1186 = vpack.c.b16 %v1168, %v1166
    %v1187 = vpack.c.b16 %v1169, %v1167
    %v1188 = vpack.c.b16 %v1172, %v1170
    %v1189 = vpack.c.b16 %v1173, %v1171
    %1206 = vmatpush.bf16.msra.mxu0 %v1188
    %1207 = vmatpush.bf16.msra.mxu0 %v1186
    %1208 = vmatpush.bf16.msra.mxu0 %v1184
    %1209 = vmatpush.bf16.msra.mxu0 %v1182
    %1210 = vmatpush.bf16.msra.mxu0 %v1180
    %1211 = vmatpush.bf16.msra.mxu0 %v1178
    %1212 = vmatpush.bf16.msra.mxu0 %v1176
    %1213 = vmatpush.bf16.msra.mxu0 %v1174
    %1214 = vmatmul.bf16.gmra.mxu0 %v1102
    %v1215 = vpop.f32.mrf.mxu0
    %v1216 = vadd.f32 %v1122, %v1215
    %v1217 = vpop.f32.mrf.mxu0
    %v1218 = vadd.f32 %v1122, %v1217
    %1219 = vmatmul.bf16.gmra.mxu0 %v1103
    %v1220 = vpop.f32.mrf.mxu0
    %v1221 = vadd.f32 %v1122, %v1220
    %v1222 = vpop.f32.mrf.mxu0
    %v1223 = vadd.f32 %v1122, %v1222
    %1224 = vdwg.mxu0
    %1225 = vmatpush.bf16.msra.mxu0 %v1189
    %1226 = vmatpush.bf16.msra.mxu0 %v1187
    %1227 = vmatpush.bf16.msra.mxu0 %v1185
    %1228 = vmatpush.bf16.msra.mxu0 %v1183
    %1229 = vmatpush.bf16.msra.mxu0 %v1181
    %1230 = vmatpush.bf16.msra.mxu0 %v1179
    %1231 = vmatpush.bf16.msra.mxu0 %v1177
    %1232 = vmatpush.bf16.msra.mxu0 %v1175
    %1233 = vmatmul.bf16.gmra.mxu0 %v1102
    %v1234 = vpop.f32.mrf.mxu0
    %v1235 = vadd.f32 %v1123, %v1234
    %v1236 = vpop.f32.mrf.mxu0
    %v1237 = vadd.f32 %v1123, %v1236
    %1238 = vmatmul.bf16.gmra.mxu0 %v1103
    %v1239 = vpop.f32.mrf.mxu0
    %v1240 = vadd.f32 %v1123, %v1239
    %v1241 = vpop.f32.mrf.mxu0
    %v1242 = vadd.f32 %v1123, %v1241
    %1243 = vdwg.mxu0
    %v1244 = vpack.c.bf16 %v1098, %v1098
    %v1245 = vpack.c.bf16 %v1100, %v1100
    %v1246 = vpack.c.bf16 %v1216, %v1216
    %v1247 = vpack.c.bf16 %v1218, %v1218
    %v1248 = vpack.c.bf16 %v1221, %v1221
    %v1249 = vpack.c.bf16 %v1223, %v1223
    %v1250 = vpack.c.bf16 %v1235, %v1235
    %v1251 = vpack.c.bf16 %v1237, %v1237
    %v1252 = vpack.c.bf16 %v1240, %v1240
    %v1253 = vpack.c.bf16 %v1242, %v1242
    %v1256 = vunpack.c.l.b16 %v1246
    %v1257 = vunpack.c.l.b16 %v1247
    %v1258 = vpack.c.b16 %v1257, %v1256
    %v1260 = vsel %vm258, %v1244, 0
    %v1263 = vsel %vm258, %v1258, 0
    %1265 = vmatpush.bf16.xpose.msra.mxu0 0
    %1266 = vmatpush.bf16.xpose.msra.mxu0 0
    %1267 = vmatpush.bf16.xpose.msra.mxu0 0
    %1268 = vmatpush.bf16.xpose.msra.mxu0 0
    %1269 = vmatpush.bf16.xpose.msra.mxu0 0
    %1270 = vmatpush.bf16.xpose.msra.mxu0 0
    %1271 = vmatpush.bf16.xpose.msra.mxu0 0
    %1272 = vmatpush.bf16.xpose.msra.mxu0 %v1263
    %1273 = vmatmul.bf16.gmra.mxu0 %v1260
    %v1274 = vpop.f32.mrf.mxu0
    %v1275 = vadd.f32 0.0, %v1274
    %v1276 = vpop.f32.mrf.mxu0
    %1277 = vdwg.mxu0
    %v1278 = vmul.f32 %v1275, 0.17677669
    %v1279 = vperm.slane %v257, 1
    %v1280 = vadd.f32 %v1278, %v1279
    %vm1281 = vcmask 130048
    %v1282 = vsel %vm1281, %v1280, -inf
    %1283 = vmax.xlane.f32.xlu0 %v1282
    %v1284 = vpop.xlane.xlu0 %1283
    %v1285 = vsub.f32 %v1280, %v1284
    %v1286 = vmul.f32 %v1285, 1.442695
    %v1287 = vpow.pop %v1286
    %v1288 = vsel %vm1281, %v1287, 0.0
    %1289 = vadd.xlane.f32.xlu0 %v1288
    %v1290 = vpop.xlane.xlu0 %1289
    %v1291 = vrcp.pop %v1290
    %v1292 = vmul.f32 %v1290, %v1291
    %v1293 = vsub.f32 1.0, %v1292
    %v1294 = vmul.f32 %v1291, %v1293
    %v1295 = vadd.f32 %v1291, %v1294
    %vm1296 = vweird.f32 %v1290
    %vm1297 = vweird.f32 %v1291
    %vm1298 = vmor %vm1296, %vm1297
    %v1299 = vsel %vm1298, %v1291, %v1295
    %v1300 = vand.u32 2147483647, %v1290
    %vm1301 = vcmp.eq.f32.partialorder %v1300, 8.507059e+37
    %v1302 = vand.u32 %v1290, 2147483648
    %v1303 = vor.u32 1.1754944e-38, %v1302
    %v1304 = vsel %vm1301, %v1303, %v1299
    %v1305 = vmul.f32 %v1287, %v1304
    %v1306 = vpack.c.bf16 %v1305, %v1305
    %v1309 = vunpack.c.l.b16 %v1250
    %v1310 = vunpack.c.l.b16 %v1251
    %v1311 = vpack.c.b16 %v1310, %v1309
    %v1314 = vsel %vm1281, %v1306, 0
    %1316 = vmatpush.bf16.msra.mxu0 0
    %1317 = vmatpush.bf16.msra.mxu0 0
    %1318 = vmatpush.bf16.msra.mxu0 0
    %1319 = vmatpush.bf16.msra.mxu0 0
    %1320 = vmatpush.bf16.msra.mxu0 0
    %1321 = vmatpush.bf16.msra.mxu0 0
    %1322 = vmatpush.bf16.msra.mxu0 0
    %1323 = vmatpush.bf16.msra.mxu0 %v1311
    %1324 = vmatmul.bf16.gmra.mxu0 %v1314
    %v1325 = vpop.f32.mrf.mxu0
    %v1326 = vadd.f32 0.0, %v1325
    %v1327 = vpop.f32.mrf.mxu0
    %1328 = vdwg.mxu0
    %v1330 = vunpack.c.l.b16 %v1244
    %v1331 = vpack.c.b16 %v1330, %v1330
    %1332 = vrot.lane.b32.xlu0 %v1331, 96
    %v1333 = vpop.permute.xlu0 %1332
    %1334 = vrot.lane.b32.xlu0 %v1258, 96
    %v1335 = vpop.permute.xlu0 %1334
    %v1337 = vsel %vm258, %v1333, 0
    %v1340 = vsel %vm258, %v1335, 0
    %1342 = vmatpush.bf16.xpose.msra.mxu0 0
    %1343 = vmatpush.bf16.xpose.msra.mxu0 0
    %1344 = vmatpush.bf16.xpose.msra.mxu0 0
    %1345 = vmatpush.bf16.xpose.msra.mxu0 0
    %1346 = vmatpush.bf16.xpose.msra.mxu0 0
    %1347 = vmatpush.bf16.xpose.msra.mxu0 0
    %1348 = vmatpush.bf16.xpose.msra.mxu0 0
    %1349 = vmatpush.bf16.xpose.msra.mxu0 %v1340
    %1350 = vmatmul.bf16.gmra.mxu0 %v1337
    %v1351 = vpop.f32.mrf.mxu0
    %v1352 = vadd.f32 0.0, %v1351
    %v1353 = vpop.f32.mrf.mxu0
    %1354 = vdwg.mxu0
    %v1355 = vmul.f32 %v1352, 0.17677669
    %v1356 = vadd.f32 %v1355, %v1279
    %v1357 = vsel %vm1281, %v1356, -inf
    %1358 = vmax.xlane.f32.xlu0 %v1357
    %v1359 = vpop.xlane.xlu0 %1358
    %v1360 = vsub.f32 %v1356, %v1359
    %v1361 = vmul.f32 %v1360, 1.442695
    %v1362 = vpow.pop %v1361
    %v1363 = vsel %vm1281, %v1362, 0.0
    %1364 = vadd.xlane.f32.xlu0 %v1363
    %v1365 = vpop.xlane.xlu0 %1364
    %v1366 = vrcp.pop %v1365
    %v1367 = vmul.f32 %v1365, %v1366
    %v1368 = vsub.f32 1.0, %v1367
    %v1369 = vmul.f32 %v1366, %v1368
    %v1370 = vadd.f32 %v1366, %v1369
    %vm1371 = vweird.f32 %v1365
    %vm1372 = vweird.f32 %v1366
    %vm1373 = vmor %vm1371, %vm1372
    %v1374 = vsel %vm1373, %v1366, %v1370
    %v1375 = vand.u32 2147483647, %v1365
    %vm1376 = vcmp.eq.f32.partialorder %v1375, 8.507059e+37
    %v1377 = vand.u32 %v1365, 2147483648
    %v1378 = vor.u32 1.1754944e-38, %v1377
    %v1379 = vsel %vm1376, %v1378, %v1374
    %v1380 = vmul.f32 %v1362, %v1379
    %v1381 = vpack.c.bf16 %v1380, %v1380
    %1382 = vrot.lane.b32.xlu0 %v1311, 96
    %v1383 = vpop.permute.xlu0 %1382
    %v1386 = vsel %vm1281, %v1381, 0
    %1388 = vmatpush.bf16.msra.mxu0 0
    %1389 = vmatpush.bf16.msra.mxu0 0
    %1390 = vmatpush.bf16.msra.mxu0 0
    %1391 = vmatpush.bf16.msra.mxu0 0
    %1392 = vmatpush.bf16.msra.mxu0 0
    %1393 = vmatpush.bf16.msra.mxu0 0
    %1394 = vmatpush.bf16.msra.mxu0 0
    %1395 = vmatpush.bf16.msra.mxu0 %v1383
    %1396 = vmatmul.bf16.gmra.mxu0 %v1386
    %v1397 = vpop.f32.mrf.mxu0
    %v1398 = vadd.f32 0.0, %v1397
    %v1399 = vpop.f32.mrf.mxu0
    %1400 = vdwg.mxu0
    %1401 = vrot.lane.b32.xlu0 %v1331, 64
    %v1402 = vpop.permute.xlu0 %1401
    %1403 = vrot.lane.b32.xlu0 %v1258, 64
    %v1404 = vpop.permute.xlu0 %1403
    %v1406 = vsel %vm258, %v1402, 0
    %v1409 = vsel %vm258, %v1404, 0
    %1411 = vmatpush.bf16.xpose.msra.mxu0 0
    %1412 = vmatpush.bf16.xpose.msra.mxu0 0
    %1413 = vmatpush.bf16.xpose.msra.mxu0 0
    %1414 = vmatpush.bf16.xpose.msra.mxu0 0
    %1415 = vmatpush.bf16.xpose.msra.mxu0 0
    %1416 = vmatpush.bf16.xpose.msra.mxu0 0
    %1417 = vmatpush.bf16.xpose.msra.mxu0 0
    %1418 = vmatpush.bf16.xpose.msra.mxu0 %v1409
    %1419 = vmatmul.bf16.gmra.mxu0 %v1406
    %v1420 = vpop.f32.mrf.mxu0
    %v1421 = vadd.f32 0.0, %v1420
    %v1422 = vpop.f32.mrf.mxu0
    %1423 = vdwg.mxu0
    %v1424 = vmul.f32 %v1421, 0.17677669
    %v1425 = vadd.f32 %v1424, %v1279
    %v1426 = vsel %vm1281, %v1425, -inf
    %1427 = vmax.xlane.f32.xlu0 %v1426
    %v1428 = vpop.xlane.xlu0 %1427
    %v1429 = vsub.f32 %v1425, %v1428
    %v1430 = vmul.f32 %v1429, 1.442695
    %v1431 = vpow.pop %v1430
    %v1432 = vsel %vm1281, %v1431, 0.0
    %1433 = vadd.xlane.f32.xlu0 %v1432
    %v1434 = vpop.xlane.xlu0 %1433
    %v1435 = vrcp.pop %v1434
    %v1436 = vmul.f32 %v1434, %v1435
    %v1437 = vsub.f32 1.0, %v1436
    %v1438 = vmul.f32 %v1435, %v1437
    %v1439 = vadd.f32 %v1435, %v1438
    %vm1440 = vweird.f32 %v1434
    %vm1441 = vweird.f32 %v1435
    %vm1442 = vmor %vm1440, %vm1441
    %v1443 = vsel %vm1442, %v1435, %v1439
    %v1444 = vand.u32 2147483647, %v1434
    %vm1445 = vcmp.eq.f32.partialorder %v1444, 8.507059e+37
    %v1446 = vand.u32 %v1434, 2147483648
    %v1447 = vor.u32 1.1754944e-38, %v1446
    %v1448 = vsel %vm1445, %v1447, %v1443
    %v1449 = vmul.f32 %v1431, %v1448
    %v1450 = vpack.c.bf16 %v1449, %v1449
    %1451 = vrot.lane.b32.xlu0 %v1311, 64
    %v1452 = vpop.permute.xlu0 %1451
    %v1455 = vsel %vm1281, %v1450, 0
    %1457 = vmatpush.bf16.msra.mxu0 0
    %1458 = vmatpush.bf16.msra.mxu0 0
    %1459 = vmatpush.bf16.msra.mxu0 0
    %1460 = vmatpush.bf16.msra.mxu0 0
    %1461 = vmatpush.bf16.msra.mxu0 0
    %1462 = vmatpush.bf16.msra.mxu0 0
    %1463 = vmatpush.bf16.msra.mxu0 0
    %1464 = vmatpush.bf16.msra.mxu0 %v1452
    %1465 = vmatmul.bf16.gmra.mxu0 %v1455
    %v1466 = vpop.f32.mrf.mxu0
    %v1467 = vadd.f32 0.0, %v1466
    %v1468 = vpop.f32.mrf.mxu0
    %1469 = vdwg.mxu0
    %1470 = vrot.lane.b32.xlu0 %v1331, 32
    %v1471 = vpop.permute.xlu0 %1470
    %1472 = vrot.lane.b32.xlu0 %v1258, 32
    %v1473 = vpop.permute.xlu0 %1472
    %v1475 = vsel %vm258, %v1471, 0
    %v1478 = vsel %vm258, %v1473, 0
    %1480 = vmatpush.bf16.xpose.msra.mxu0 0
    %1481 = vmatpush.bf16.xpose.msra.mxu0 0
    %1482 = vmatpush.bf16.xpose.msra.mxu0 0
    %1483 = vmatpush.bf16.xpose.msra.mxu0 0
    %1484 = vmatpush.bf16.xpose.msra.mxu0 0
    %1485 = vmatpush.bf16.xpose.msra.mxu0 0
    %1486 = vmatpush.bf16.xpose.msra.mxu0 0
    %1487 = vmatpush.bf16.xpose.msra.mxu0 %v1478
    %1488 = vmatmul.bf16.gmra.mxu0 %v1475
    %v1489 = vpop.f32.mrf.mxu0
    %v1490 = vadd.f32 0.0, %v1489
    %v1491 = vpop.f32.mrf.mxu0
    %1492 = vdwg.mxu0
    %v1493 = vmul.f32 %v1490, 0.17677669
    %v1494 = vadd.f32 %v1493, %v1279
    %v1495 = vsel %vm1281, %v1494, -inf
    %1496 = vmax.xlane.f32.xlu0 %v1495
    %v1497 = vpop.xlane.xlu0 %1496
    %v1498 = vsub.f32 %v1494, %v1497
    %v1499 = vmul.f32 %v1498, 1.442695
    %v1500 = vpow.pop %v1499
    %v1501 = vsel %vm1281, %v1500, 0.0
    %1502 = vadd.xlane.f32.xlu0 %v1501
    %v1503 = vpop.xlane.xlu0 %1502
    %v1504 = vrcp.pop %v1503
    %v1505 = vmul.f32 %v1503, %v1504
    %v1506 = vsub.f32 1.0, %v1505
    %v1507 = vmul.f32 %v1504, %v1506
    %v1508 = vadd.f32 %v1504, %v1507
    %vm1509 = vweird.f32 %v1503
    %vm1510 = vweird.f32 %v1504
    %vm1511 = vmor %vm1509, %vm1510
    %v1512 = vsel %vm1511, %v1504, %v1508
    %v1513 = vand.u32 2147483647, %v1503
    %vm1514 = vcmp.eq.f32.partialorder %v1513, 8.507059e+37
    %v1515 = vand.u32 %v1503, 2147483648
    %v1516 = vor.u32 1.1754944e-38, %v1515
    %v1517 = vsel %vm1514, %v1516, %v1512
    %v1518 = vmul.f32 %v1500, %v1517
    %v1519 = vpack.c.bf16 %v1518, %v1518
    %1520 = vrot.lane.b32.xlu0 %v1311, 32
    %v1521 = vpop.permute.xlu0 %1520
    %v1524 = vsel %vm1281, %v1519, 0
    %1526 = vmatpush.bf16.msra.mxu0 0
    %1527 = vmatpush.bf16.msra.mxu0 0
    %1528 = vmatpush.bf16.msra.mxu0 0
    %1529 = vmatpush.bf16.msra.mxu0 0
    %1530 = vmatpush.bf16.msra.mxu0 0
    %1531 = vmatpush.bf16.msra.mxu0 0
    %1532 = vmatpush.bf16.msra.mxu0 0
    %1533 = vmatpush.bf16.msra.mxu0 %v1521
    %1534 = vmatmul.bf16.gmra.mxu0 %v1524
    %v1535 = vpop.f32.mrf.mxu0
    %v1536 = vadd.f32 0.0, %v1535
    %v1537 = vpop.f32.mrf.mxu0
    %1538 = vdwg.mxu0
    %1540 = vrot.lane.b32.xlu0 %v1398, 32
    %v1541 = vpop.permute.xlu0 %1540
    %1544 = vrot.lane.b32.xlu0 %v1467, 64
    %v1545 = vpop.permute.xlu0 %1544
    %1548 = vrot.lane.b32.xlu0 %v1536, 96
    %v1549 = vpop.permute.xlu0 %1548
    %v1551 = vsel %vm258, %v1326, %v1541
    %v1552 = vsel %vm566, %v1551, %v1545
    %v1553 = vsel %vm568, %v1552, %v1549
    %v1556 = vunpack.c.l.b16 %v1248
    %v1557 = vunpack.c.l.b16 %v1249
    %v1558 = vpack.c.b16 %v1557, %v1556
    %v1560 = vsel %vm258, %v1245, 0
    %v1563 = vsel %vm258, %v1558, 0
    %1565 = vmatpush.bf16.xpose.msra.mxu0 0
    %1566 = vmatpush.bf16.xpose.msra.mxu0 0
    %1567 = vmatpush.bf16.xpose.msra.mxu0 0
    %1568 = vmatpush.bf16.xpose.msra.mxu0 0
    %1569 = vmatpush.bf16.xpose.msra.mxu0 0
    %1570 = vmatpush.bf16.xpose.msra.mxu0 0
    %1571 = vmatpush.bf16.xpose.msra.mxu0 0
    %1572 = vmatpush.bf16.xpose.msra.mxu0 %v1563
    %1573 = vmatmul.bf16.gmra.mxu0 %v1560
    %v1574 = vpop.f32.mrf.mxu0
    %v1575 = vadd.f32 0.0, %v1574
    %v1576 = vpop.f32.mrf.mxu0
    %1577 = vdwg.mxu0
    %v1578 = vmul.f32 %v1575, 0.17677669
    %v1579 = vperm.slane %v571, 1
    %v1580 = vadd.f32 %v1578, %v1579
    %v1581 = vsel %vm1281, %v1580, -inf
    %1582 = vmax.xlane.f32.xlu0 %v1581
    %v1583 = vpop.xlane.xlu0 %1582
    %v1584 = vsub.f32 %v1580, %v1583
    %v1585 = vmul.f32 %v1584, 1.442695
    %v1586 = vpow.pop %v1585
    %v1587 = vsel %vm1281, %v1586, 0.0
    %1588 = vadd.xlane.f32.xlu0 %v1587
    %v1589 = vpop.xlane.xlu0 %1588
    %v1590 = vrcp.pop %v1589
    %v1591 = vmul.f32 %v1589, %v1590
    %v1592 = vsub.f32 1.0, %v1591
    %v1593 = vmul.f32 %v1590, %v1592
    %v1594 = vadd.f32 %v1590, %v1593
    %vm1595 = vweird.f32 %v1589
    %vm1596 = vweird.f32 %v1590
    %vm1597 = vmor %vm1595, %vm1596
    %v1598 = vsel %vm1597, %v1590, %v1594
    %v1599 = vand.u32 2147483647, %v1589
    %vm1600 = vcmp.eq.f32.partialorder %v1599, 8.507059e+37
    %v1601 = vand.u32 %v1589, 2147483648
    %v1602 = vor.u32 1.1754944e-38, %v1601
    %v1603 = vsel %vm1600, %v1602, %v1598
    %v1604 = vmul.f32 %v1586, %v1603
    %v1605 = vpack.c.bf16 %v1604, %v1604
    %v1608 = vunpack.c.l.b16 %v1252
    %v1609 = vunpack.c.l.b16 %v1253
    %v1610 = vpack.c.b16 %v1609, %v1608
    %v1613 = vsel %vm1281, %v1605, 0
    %1615 = vmatpush.bf16.msra.mxu0 0
    %1616 = vmatpush.bf16.msra.mxu0 0
    %1617 = vmatpush.bf16.msra.mxu0 0
    %1618 = vmatpush.bf16.msra.mxu0 0
    %1619 = vmatpush.bf16.msra.mxu0 0
    %1620 = vmatpush.bf16.msra.mxu0 0
    %1621 = vmatpush.bf16.msra.mxu0 0
    %1622 = vmatpush.bf16.msra.mxu0 %v1610
    %1623 = vmatmul.bf16.gmra.mxu0 %v1613
    %v1624 = vpop.f32.mrf.mxu0
    %v1625 = vadd.f32 0.0, %v1624
    %v1626 = vpop.f32.mrf.mxu0
    %1627 = vdwg.mxu0
    %v1629 = vunpack.c.l.b16 %v1245
    %v1630 = vpack.c.b16 %v1629, %v1629
    %1631 = vrot.lane.b32.xlu0 %v1630, 96
    %v1632 = vpop.permute.xlu0 %1631
    %1633 = vrot.lane.b32.xlu0 %v1558, 96
    %v1634 = vpop.permute.xlu0 %1633
    %v1636 = vsel %vm258, %v1632, 0
    %v1639 = vsel %vm258, %v1634, 0
    %1641 = vmatpush.bf16.xpose.msra.mxu0 0
    %1642 = vmatpush.bf16.xpose.msra.mxu0 0
    %1643 = vmatpush.bf16.xpose.msra.mxu0 0
    %1644 = vmatpush.bf16.xpose.msra.mxu0 0
    %1645 = vmatpush.bf16.xpose.msra.mxu0 0
    %1646 = vmatpush.bf16.xpose.msra.mxu0 0
    %1647 = vmatpush.bf16.xpose.msra.mxu0 0
    %1648 = vmatpush.bf16.xpose.msra.mxu0 %v1639
    %1649 = vmatmul.bf16.gmra.mxu0 %v1636
    %v1650 = vpop.f32.mrf.mxu0
    %v1651 = vadd.f32 0.0, %v1650
    %v1652 = vpop.f32.mrf.mxu0
    %1653 = vdwg.mxu0
    %v1654 = vmul.f32 %v1651, 0.17677669
    %v1655 = vadd.f32 %v1654, %v1579
    %v1656 = vsel %vm1281, %v1655, -inf
    %1657 = vmax.xlane.f32.xlu0 %v1656
    %v1658 = vpop.xlane.xlu0 %1657
    %v1659 = vsub.f32 %v1655, %v1658
    %v1660 = vmul.f32 %v1659, 1.442695
    %v1661 = vpow.pop %v1660
    %v1662 = vsel %vm1281, %v1661, 0.0
    %1663 = vadd.xlane.f32.xlu0 %v1662
    %v1664 = vpop.xlane.xlu0 %1663
    %v1665 = vrcp.pop %v1664
    %v1666 = vmul.f32 %v1664, %v1665
    %v1667 = vsub.f32 1.0, %v1666
    %v1668 = vmul.f32 %v1665, %v1667
    %v1669 = vadd.f32 %v1665, %v1668
    %vm1670 = vweird.f32 %v1664
    %vm1671 = vweird.f32 %v1665
    %vm1672 = vmor %vm1670, %vm1671
    %v1673 = vsel %vm1672, %v1665, %v1669
    %v1674 = vand.u32 2147483647, %v1664
    %vm1675 = vcmp.eq.f32.partialorder %v1674, 8.507059e+37
    %v1676 = vand.u32 %v1664, 2147483648
    %v1677 = vor.u32 1.1754944e-38, %v1676
    %v1678 = vsel %vm1675, %v1677, %v1673
    %v1679 = vmul.f32 %v1661, %v1678
    %v1680 = vpack.c.bf16 %v1679, %v1679
    %1681 = vrot.lane.b32.xlu0 %v1610, 96
    %v1682 = vpop.permute.xlu0 %1681
    %v1685 = vsel %vm1281, %v1680, 0
    %1687 = vmatpush.bf16.msra.mxu0 0
    %1688 = vmatpush.bf16.msra.mxu0 0
    %1689 = vmatpush.bf16.msra.mxu0 0
    %1690 = vmatpush.bf16.msra.mxu0 0
    %1691 = vmatpush.bf16.msra.mxu0 0
    %1692 = vmatpush.bf16.msra.mxu0 0
    %1693 = vmatpush.bf16.msra.mxu0 0
    %1694 = vmatpush.bf16.msra.mxu0 %v1682
    %1695 = vmatmul.bf16.gmra.mxu0 %v1685
    %v1696 = vpop.f32.mrf.mxu0
    %v1697 = vadd.f32 0.0, %v1696
    %v1698 = vpop.f32.mrf.mxu0
    %1699 = vdwg.mxu0
    %1700 = vrot.lane.b32.xlu0 %v1630, 64
    %v1701 = vpop.permute.xlu0 %1700
    %1702 = vrot.lane.b32.xlu0 %v1558, 64
    %v1703 = vpop.permute.xlu0 %1702
    %v1705 = vsel %vm258, %v1701, 0
    %v1708 = vsel %vm258, %v1703, 0
    %1710 = vmatpush.bf16.xpose.msra.mxu0 0
    %1711 = vmatpush.bf16.xpose.msra.mxu0 0
    %1712 = vmatpush.bf16.xpose.msra.mxu0 0
    %1713 = vmatpush.bf16.xpose.msra.mxu0 0
    %1714 = vmatpush.bf16.xpose.msra.mxu0 0
    %1715 = vmatpush.bf16.xpose.msra.mxu0 0
    %1716 = vmatpush.bf16.xpose.msra.mxu0 0
    %1717 = vmatpush.bf16.xpose.msra.mxu0 %v1708
    %1718 = vmatmul.bf16.gmra.mxu0 %v1705
    %v1719 = vpop.f32.mrf.mxu0
    %v1720 = vadd.f32 0.0, %v1719
    %v1721 = vpop.f32.mrf.mxu0
    %1722 = vdwg.mxu0
    %v1723 = vmul.f32 %v1720, 0.17677669
    %v1724 = vadd.f32 %v1723, %v1579
    %v1725 = vsel %vm1281, %v1724, -inf
    %1726 = vmax.xlane.f32.xlu0 %v1725
    %v1727 = vpop.xlane.xlu0 %1726
    %v1728 = vsub.f32 %v1724, %v1727
    %v1729 = vmul.f32 %v1728, 1.442695
    %v1730 = vpow.pop %v1729
    %v1731 = vsel %vm1281, %v1730, 0.0
    %1732 = vadd.xlane.f32.xlu0 %v1731
    %v1733 = vpop.xlane.xlu0 %1732
    %v1734 = vrcp.pop %v1733
    %v1735 = vmul.f32 %v1733, %v1734
    %v1736 = vsub.f32 1.0, %v1735
    %v1737 = vmul.f32 %v1734, %v1736
    %v1738 = vadd.f32 %v1734, %v1737
    %vm1739 = vweird.f32 %v1733
    %vm1740 = vweird.f32 %v1734
    %vm1741 = vmor %vm1739, %vm1740
    %v1742 = vsel %vm1741, %v1734, %v1738
    %v1743 = vand.u32 2147483647, %v1733
    %vm1744 = vcmp.eq.f32.partialorder %v1743, 8.507059e+37
    %v1745 = vand.u32 %v1733, 2147483648
    %v1746 = vor.u32 1.1754944e-38, %v1745
    %v1747 = vsel %vm1744, %v1746, %v1742
    %v1748 = vmul.f32 %v1730, %v1747
    %v1749 = vpack.c.bf16 %v1748, %v1748
    %1750 = vrot.lane.b32.xlu0 %v1610, 64
    %v1751 = vpop.permute.xlu0 %1750
    %v1754 = vsel %vm1281, %v1749, 0
    %1756 = vmatpush.bf16.msra.mxu0 0
    %1757 = vmatpush.bf16.msra.mxu0 0
    %1758 = vmatpush.bf16.msra.mxu0 0
    %1759 = vmatpush.bf16.msra.mxu0 0
    %1760 = vmatpush.bf16.msra.mxu0 0
    %1761 = vmatpush.bf16.msra.mxu0 0
    %1762 = vmatpush.bf16.msra.mxu0 0
    %1763 = vmatpush.bf16.msra.mxu0 %v1751
    %1764 = vmatmul.bf16.gmra.mxu0 %v1754
    %v1765 = vpop.f32.mrf.mxu0
    %v1766 = vadd.f32 0.0, %v1765
    %v1767 = vpop.f32.mrf.mxu0
    %1768 = vdwg.mxu0
    %1769 = vrot.lane.b32.xlu0 %v1630, 32
    %v1770 = vpop.permute.xlu0 %1769
    %1771 = vrot.lane.b32.xlu0 %v1558, 32
    %v1772 = vpop.permute.xlu0 %1771
    %v1774 = vsel %vm258, %v1770, 0
    %v1777 = vsel %vm258, %v1772, 0
    %1779 = vmatpush.bf16.xpose.msra.mxu0 0
    %1780 = vmatpush.bf16.xpose.msra.mxu0 0
    %1781 = vmatpush.bf16.xpose.msra.mxu0 0
    %1782 = vmatpush.bf16.xpose.msra.mxu0 0
    %1783 = vmatpush.bf16.xpose.msra.mxu0 0
    %1784 = vmatpush.bf16.xpose.msra.mxu0 0
    %1785 = vmatpush.bf16.xpose.msra.mxu0 0
    %1786 = vmatpush.bf16.xpose.msra.mxu0 %v1777
    %1787 = vmatmul.bf16.gmra.mxu0 %v1774
    %v1788 = vpop.f32.mrf.mxu0
    %v1789 = vadd.f32 0.0, %v1788
    %v1790 = vpop.f32.mrf.mxu0
    %1791 = vdwg.mxu0
    %v1792 = vmul.f32 %v1789, 0.17677669
    %v1793 = vadd.f32 %v1792, %v1579
    %v1794 = vsel %vm1281, %v1793, -inf
    %1795 = vmax.xlane.f32.xlu0 %v1794
    %v1796 = vpop.xlane.xlu0 %1795
    %v1797 = vsub.f32 %v1793, %v1796
    %v1798 = vmul.f32 %v1797, 1.442695
    %v1799 = vpow.pop %v1798
    %v1800 = vsel %vm1281, %v1799, 0.0
    %1801 = vadd.xlane.f32.xlu0 %v1800
    %v1802 = vpop.xlane.xlu0 %1801
    %v1803 = vrcp.pop %v1802
    %v1804 = vmul.f32 %v1802, %v1803
    %v1805 = vsub.f32 1.0, %v1804
    %v1806 = vmul.f32 %v1803, %v1805
    %v1807 = vadd.f32 %v1803, %v1806
    %vm1808 = vweird.f32 %v1802
    %vm1809 = vweird.f32 %v1803
    %vm1810 = vmor %vm1808, %vm1809
    %v1811 = vsel %vm1810, %v1803, %v1807
    %v1812 = vand.u32 2147483647, %v1802
    %vm1813 = vcmp.eq.f32.partialorder %v1812, 8.507059e+37
    %v1814 = vand.u32 %v1802, 2147483648
    %v1815 = vor.u32 1.1754944e-38, %v1814
    %v1816 = vsel %vm1813, %v1815, %v1811
    %v1817 = vmul.f32 %v1799, %v1816
    %v1818 = vpack.c.bf16 %v1817, %v1817
    %1819 = vrot.lane.b32.xlu0 %v1610, 32
    %v1820 = vpop.permute.xlu0 %1819
    %v1823 = vsel %vm1281, %v1818, 0
    %1825 = vmatpush.bf16.msra.mxu0 0
    %1826 = vmatpush.bf16.msra.mxu0 0
    %1827 = vmatpush.bf16.msra.mxu0 0
    %1828 = vmatpush.bf16.msra.mxu0 0
    %1829 = vmatpush.bf16.msra.mxu0 0
    %1830 = vmatpush.bf16.msra.mxu0 0
    %1831 = vmatpush.bf16.msra.mxu0 0
    %1832 = vmatpush.bf16.msra.mxu0 %v1820
    %1833 = vmatmul.bf16.gmra.mxu0 %v1823
    %v1834 = vpop.f32.mrf.mxu0
    %v1835 = vadd.f32 0.0, %v1834
    %v1836 = vpop.f32.mrf.mxu0
    %1837 = vdwg.mxu0
    %1839 = vrot.lane.b32.xlu0 %v1697, 32
    %v1840 = vpop.permute.xlu0 %1839
    %1843 = vrot.lane.b32.xlu0 %v1766, 64
    %v1844 = vpop.permute.xlu0 %1843
    %1847 = vrot.lane.b32.xlu0 %v1835, 96
    %v1848 = vpop.permute.xlu0 %1847
    %v1850 = vsel %vm258, %v1625, %v1840
    %v1851 = vsel %vm566, %v1850, %v1844
    %v1852 = vsel %vm568, %v1851, %v1848
    %v1853 = vpack.c.bf16 %v1852, %v1553
    %v1854 = vld [vmem:[%s3 + $0x1c] sm:$0xf]
    %v1855 = vld [vmem:[%s3 + $0x44] sm:$0xf]
    %v1856 = vld [vmem:[%s3 + $0x6c] sm:$0xf]
    %v1857 = vld [vmem:[%s3 + $0x94] sm:$0xf]
    %v1858 = vld [vmem:[%s3 + $0xbc] sm:$0xf]
    %v1859 = vld [vmem:[%s3 + $0xe4] sm:$0xf]
    %v1860 = vld [vmem:[%s3 + $0x10c] sm:$0xf]
    %v1861 = vld [vmem:[%s3 + $0x134] sm:$0xf]
    %v1862 = vld [vmem:[%s3 + $0x15c] sm:$0xf]
    %v1863 = vld [vmem:[%s3 + $0x184] sm:$0xf]
    %v1864 = vld [vmem:[%s3 + $0x1ac] sm:$0xf]
    %v1865 = vld [vmem:[%s3 + $0x1d4] sm:$0xf]
    %v1866 = vld [vmem:[%s3 + $0x1fc] sm:$0xf]
    %v1867 = vld [vmem:[%s3 + $0x224] sm:$0xf]
    %v1868 = vld [vmem:[%s3 + $0x24c] sm:$0xf]
    %v1869 = vld [vmem:[%s3 + $0x274] sm:$0xf]
    %v1870 = vld [vmem:[%s5 + $0x7] sm:$0x1]
    %v1872 = vperm.slane %v1870, 0
    %v1890 = vunpack.c.l.b16 %v1854
    %v1891 = vunpack.c.l.b16 %v1855
    %v1892 = vunpack.c.l.b16 %v1856
    %v1893 = vunpack.c.l.b16 %v1857
    %v1894 = vunpack.c.l.b16 %v1858
    %v1895 = vunpack.c.l.b16 %v1859
    %v1896 = vunpack.c.l.b16 %v1860
    %v1897 = vunpack.c.l.b16 %v1861
    %v1898 = vunpack.c.l.b16 %v1862
    %v1899 = vunpack.c.l.b16 %v1863
    %v1900 = vunpack.c.l.b16 %v1864
    %v1901 = vunpack.c.l.b16 %v1865
    %v1902 = vunpack.c.l.b16 %v1866
    %v1903 = vunpack.c.l.b16 %v1867
    %v1904 = vunpack.c.l.b16 %v1868
    %v1905 = vunpack.c.l.b16 %v1869
    %v1906 = vpack.c.b16 %v1891, %v1890
    %v1907 = vpack.c.b16 %v1893, %v1892
    %v1908 = vpack.c.b16 %v1895, %v1894
    %v1909 = vpack.c.b16 %v1897, %v1896
    %v1910 = vpack.c.b16 %v1899, %v1898
    %v1911 = vpack.c.b16 %v1901, %v1900
    %v1912 = vpack.c.b16 %v1903, %v1902
    %v1913 = vpack.c.b16 %v1905, %v1904
    %1922 = vmatpush.bf16.msra.mxu0 %v1913
    %1923 = vmatpush.bf16.msra.mxu0 %v1912
    %1924 = vmatpush.bf16.msra.mxu0 %v1911
    %1925 = vmatpush.bf16.msra.mxu0 %v1910
    %1926 = vmatpush.bf16.msra.mxu0 %v1909
    %1927 = vmatpush.bf16.msra.mxu0 %v1908
    %1928 = vmatpush.bf16.msra.mxu0 %v1907
    %1929 = vmatpush.bf16.msra.mxu0 %v1906
    %1930 = vmatmul.bf16.gmra.mxu0 %v1853
    %v1931 = vpop.f32.mrf.mxu0
    %v1932 = vadd.f32 %v1872, %v1931
    %v1933 = vpop.f32.mrf.mxu0
    %v1934 = vadd.f32 %v1872, %v1933
    %1935 = vdwg.mxu0
    %v1936 = vadd.f32 %v1017, %v1932
    %v1937 = vadd.f32 %v1018, %v1934
    %v1938 = vld [vmem:[%s6 + $0x2] sm:$0x1]
    %v1939 = vld [vmem:[%s6 + $0x3] sm:$0x1]
    %1940 = vadd.xlane.f32.xlu0 %v1936
    %v1941 = vpop.xlane.xlu0 %1940
    %1942 = vadd.xlane.f32.xlu0 %v1937
    %v1943 = vpop.xlane.xlu0 %1942
    %v1944 = vmul.f32 %v1941, %v976
    %v1945 = vmul.f32 %v1943, %v976
    %v1946 = vsub.f32 %v1936, %v1944
    %v1947 = vsub.f32 %v1937, %v1945
    %v1948 = vmul.f32 %v1946, %v1946
    %v1949 = vmul.f32 %v1947, %v1947
    %1950 = vadd.xlane.f32.xlu0 %v1948
    %v1951 = vpop.xlane.xlu0 %1950
    %1952 = vadd.xlane.f32.xlu0 %v1949
    %v1953 = vpop.xlane.xlu0 %1952
    %v1954 = vmul.f32 %v1951, %v976
    %v1955 = vmul.f32 %v1953, %v976
    %v1956 = vadd.f32 %v1954, 1e-05
    %v1957 = vadd.f32 %v1955, 1e-05
    %v1958 = vrsqrt.pop %v1956
    %v1959 = vmul.f32 %v1958, %v1956
    %v1960 = vmul.f32 %v1959, %v1958
    %v1961 = vmul.f32 0.5, %v1960
    %v1962 = vsub.f32 1.5, %v1961
    %v1963 = vmul.f32 %v1958, %v1962
    %vm1964 = vweird.f32 %v1956
    %vm1965 = vweird.f32 %v1958
    %vm1966 = vmor %vm1964, %vm1965
    %v1967 = vsel %vm1966, %v1958, %v1963
    %v1968 = vrsqrt.pop %v1957
    %v1969 = vmul.f32 %v1968, %v1957
    %v1970 = vmul.f32 %v1969, %v1968
    %v1971 = vmul.f32 0.5, %v1970
    %v1972 = vsub.f32 1.5, %v1971
    %v1973 = vmul.f32 %v1968, %v1972
    %vm1974 = vweird.f32 %v1957
    %vm1975 = vweird.f32 %v1968
    %vm1976 = vmor %vm1974, %vm1975
    %v1977 = vsel %vm1976, %v1968, %v1973
    %v1978 = vmul.f32 %v1946, %v1967
    %v1979 = vmul.f32 %v1947, %v1977
    %v1980 = vperm.slane %v1938, 0
    %v1981 = vmul.f32 %v1978, %v1980
    %v1982 = vmul.f32 %v1979, %v1980
    %v1983 = vperm.slane %v1939, 0
    %v1984 = vadd.f32 %v1981, %v1983
    %v1985 = vadd.f32 %v1982, %v1983
    %v1986 = vpack.c.bf16 %v1985, %v1984
    %v1987 = vld [vmem:[%s3 + $0x20] sm:$0xff]
    %v1988 = vld [vmem:[%s3 + $0x48] sm:$0xff]
    %v1989 = vld [vmem:[%s3 + $0x70] sm:$0xff]
    %v1990 = vld [vmem:[%s3 + $0x98] sm:$0xff]
    %v1991 = vld [vmem:[%s3 + $0xc0] sm:$0xff]
    %v1992 = vld [vmem:[%s3 + $0xe8] sm:$0xff]
    %v1993 = vld [vmem:[%s3 + $0x110] sm:$0xff]
    %v1994 = vld [vmem:[%s3 + $0x138] sm:$0xff]
    %v1995 = vld [vmem:[%s3 + $0x160] sm:$0xff]
    %v1996 = vld [vmem:[%s3 + $0x188] sm:$0xff]
    %v1997 = vld [vmem:[%s3 + $0x1b0] sm:$0xff]
    %v1998 = vld [vmem:[%s3 + $0x1d8] sm:$0xff]
    %v1999 = vld [vmem:[%s3 + $0x200] sm:$0xff]
    %v2000 = vld [vmem:[%s3 + $0x228] sm:$0xff]
    %v2001 = vld [vmem:[%s3 + $0x250] sm:$0xff]
    %v2002 = vld [vmem:[%s3 + $0x278] sm:$0xff]
    %v2003 = vld [vmem:[%s5 + $0x8] sm:$0x3]
    %v2005 = vperm.slane %v2003, 0
    %v2006 = vperm.slane %v2003, 1
    %v2025 = vunpack.c.l.b16 %v1987
    %v2026 = vunpack.c.h.b16 %v1987
    %v2027 = vunpack.c.l.b16 %v1988
    %v2028 = vunpack.c.h.b16 %v1988
    %v2029 = vunpack.c.l.b16 %v1989
    %v2030 = vunpack.c.h.b16 %v1989
    %v2031 = vunpack.c.l.b16 %v1990
    %v2032 = vunpack.c.h.b16 %v1990
    %v2033 = vunpack.c.l.b16 %v1991
    %v2034 = vunpack.c.h.b16 %v1991
    %v2035 = vunpack.c.l.b16 %v1992
    %v2036 = vunpack.c.h.b16 %v1992
    %v2037 = vunpack.c.l.b16 %v1993
    %v2038 = vunpack.c.h.b16 %v1993
    %v2039 = vunpack.c.l.b16 %v1994
    %v2040 = vunpack.c.h.b16 %v1994
    %v2041 = vunpack.c.l.b16 %v1995
    %v2042 = vunpack.c.h.b16 %v1995
    %v2043 = vunpack.c.l.b16 %v1996
    %v2044 = vunpack.c.h.b16 %v1996
    %v2045 = vunpack.c.l.b16 %v1997
    %v2046 = vunpack.c.h.b16 %v1997
    %v2047 = vunpack.c.l.b16 %v1998
    %v2048 = vunpack.c.h.b16 %v1998
    %v2049 = vunpack.c.l.b16 %v1999
    %v2050 = vunpack.c.h.b16 %v1999
    %v2051 = vunpack.c.l.b16 %v2000
    %v2052 = vunpack.c.h.b16 %v2000
    %v2053 = vunpack.c.l.b16 %v2001
    %v2054 = vunpack.c.h.b16 %v2001
    %v2055 = vunpack.c.l.b16 %v2002
    %v2056 = vunpack.c.h.b16 %v2002
    %v2057 = vpack.c.b16 %v2027, %v2025
    %v2058 = vpack.c.b16 %v2028, %v2026
    %v2059 = vpack.c.b16 %v2031, %v2029
    %v2060 = vpack.c.b16 %v2032, %v2030
    %v2061 = vpack.c.b16 %v2035, %v2033
    %v2062 = vpack.c.b16 %v2036, %v2034
    %v2063 = vpack.c.b16 %v2039, %v2037
    %v2064 = vpack.c.b16 %v2040, %v2038
    %v2065 = vpack.c.b16 %v2043, %v2041
    %v2066 = vpack.c.b16 %v2044, %v2042
    %v2067 = vpack.c.b16 %v2047, %v2045
    %v2068 = vpack.c.b16 %v2048, %v2046
    %v2069 = vpack.c.b16 %v2051, %v2049
    %v2070 = vpack.c.b16 %v2052, %v2050
    %v2071 = vpack.c.b16 %v2055, %v2053
    %v2072 = vpack.c.b16 %v2056, %v2054
    %2089 = vmatpush.bf16.msra.mxu0 %v2071
    %2090 = vmatpush.bf16.msra.mxu0 %v2069
    %2091 = vmatpush.bf16.msra.mxu0 %v2067
    %2092 = vmatpush.bf16.msra.mxu0 %v2065
    %2093 = vmatpush.bf16.msra.mxu0 %v2063
    %2094 = vmatpush.bf16.msra.mxu0 %v2061
    %2095 = vmatpush.bf16.msra.mxu0 %v2059
    %2096 = vmatpush.bf16.msra.mxu0 %v2057
    %2097 = vmatmul.bf16.gmra.mxu0 %v1986
    %v2098 = vpop.f32.mrf.mxu0
    %v2099 = vadd.f32 %v2005, %v2098
    %v2100 = vpop.f32.mrf.mxu0
    %v2101 = vadd.f32 %v2005, %v2100
    %2102 = vdwg.mxu0
    %2103 = vmatpush.bf16.msra.mxu0 %v2072
    %2104 = vmatpush.bf16.msra.mxu0 %v2070
    %2105 = vmatpush.bf16.msra.mxu0 %v2068
    %2106 = vmatpush.bf16.msra.mxu0 %v2066
    %2107 = vmatpush.bf16.msra.mxu0 %v2064
    %2108 = vmatpush.bf16.msra.mxu0 %v2062
    %2109 = vmatpush.bf16.msra.mxu0 %v2060
    %2110 = vmatpush.bf16.msra.mxu0 %v2058
    %2111 = vmatmul.bf16.gmra.mxu0 %v1986
    %v2112 = vpop.f32.mrf.mxu0
    %v2113 = vadd.f32 %v2006, %v2112
    %v2114 = vpop.f32.mrf.mxu0
    %v2115 = vadd.f32 %v2006, %v2114
    %2116 = vdwg.mxu0
    %v2117 = vmax.f32 %v2099, 0.0
    %v2118 = vmax.f32 %v2113, 0.0
    %v2119 = vmax.f32 %v2101, 0.0
    %v2120 = vmax.f32 %v2115, 0.0
    %v2121 = vpack.c.bf16 %v2119, %v2117
    %v2122 = vpack.c.bf16 %v2120, %v2118
    %v2123 = vld [vmem:[%s4] sm:$0xf]
    %v2124 = vld [vmem:[%s4 + $0x4] sm:$0xf]
    %v2125 = vld [vmem:[%s4 + $0x8] sm:$0xf]
    %v2126 = vld [vmem:[%s4 + $0xc] sm:$0xf]
    %v2127 = vld [vmem:[%s4 + $0x10] sm:$0xf]
    %v2128 = vld [vmem:[%s4 + $0x14] sm:$0xf]
    %v2129 = vld [vmem:[%s4 + $0x18] sm:$0xf]
    %v2130 = vld [vmem:[%s4 + $0x1c] sm:$0xf]
    %v2131 = vld [vmem:[%s4 + $0x20] sm:$0xf]
    %v2132 = vld [vmem:[%s4 + $0x24] sm:$0xf]
    %v2133 = vld [vmem:[%s4 + $0x28] sm:$0xf]
    %v2134 = vld [vmem:[%s4 + $0x2c] sm:$0xf]
    %v2135 = vld [vmem:[%s4 + $0x30] sm:$0xf]
    %v2136 = vld [vmem:[%s4 + $0x34] sm:$0xf]
    %v2137 = vld [vmem:[%s4 + $0x38] sm:$0xf]
    %v2138 = vld [vmem:[%s4 + $0x3c] sm:$0xf]
    %v2139 = vld [vmem:[%s4 + $0x40] sm:$0xf]
    %v2140 = vld [vmem:[%s4 + $0x44] sm:$0xf]
    %v2141 = vld [vmem:[%s4 + $0x48] sm:$0xf]
    %v2142 = vld [vmem:[%s4 + $0x4c] sm:$0xf]
    %v2143 = vld [vmem:[%s4 + $0x50] sm:$0xf]
    %v2144 = vld [vmem:[%s4 + $0x54] sm:$0xf]
    %v2145 = vld [vmem:[%s4 + $0x58] sm:$0xf]
    %v2146 = vld [vmem:[%s4 + $0x5c] sm:$0xf]
    %v2147 = vld [vmem:[%s4 + $0x60] sm:$0xf]
    %v2148 = vld [vmem:[%s4 + $0x64] sm:$0xf]
    %v2149 = vld [vmem:[%s4 + $0x68] sm:$0xf]
    %v2150 = vld [vmem:[%s4 + $0x6c] sm:$0xf]
    %v2151 = vld [vmem:[%s4 + $0x70] sm:$0xf]
    %v2152 = vld [vmem:[%s4 + $0x74] sm:$0xf]
    %v2153 = vld [vmem:[%s4 + $0x78] sm:$0xf]
    %v2154 = vld [vmem:[%s4 + $0x7c] sm:$0xf]
    %v2155 = vld [vmem:[%s5 + $0xa] sm:$0x1]
    %v2157 = vperm.slane %v2155, 0
    %v2191 = vunpack.c.l.b16 %v2123
    %v2192 = vunpack.c.l.b16 %v2124
    %v2193 = vunpack.c.l.b16 %v2125
    %v2194 = vunpack.c.l.b16 %v2126
    %v2195 = vunpack.c.l.b16 %v2127
    %v2196 = vunpack.c.l.b16 %v2128
    %v2197 = vunpack.c.l.b16 %v2129
    %v2198 = vunpack.c.l.b16 %v2130
    %v2199 = vunpack.c.l.b16 %v2131
    %v2200 = vunpack.c.l.b16 %v2132
    %v2201 = vunpack.c.l.b16 %v2133
    %v2202 = vunpack.c.l.b16 %v2134
    %v2203 = vunpack.c.l.b16 %v2135
    %v2204 = vunpack.c.l.b16 %v2136
    %v2205 = vunpack.c.l.b16 %v2137
    %v2206 = vunpack.c.l.b16 %v2138
    %v2207 = vunpack.c.l.b16 %v2139
    %v2208 = vunpack.c.l.b16 %v2140
    %v2209 = vunpack.c.l.b16 %v2141
    %v2210 = vunpack.c.l.b16 %v2142
    %v2211 = vunpack.c.l.b16 %v2143
    %v2212 = vunpack.c.l.b16 %v2144
    %v2213 = vunpack.c.l.b16 %v2145
    %v2214 = vunpack.c.l.b16 %v2146
    %v2215 = vunpack.c.l.b16 %v2147
    %v2216 = vunpack.c.l.b16 %v2148
    %v2217 = vunpack.c.l.b16 %v2149
    %v2218 = vunpack.c.l.b16 %v2150
    %v2219 = vunpack.c.l.b16 %v2151
    %v2220 = vunpack.c.l.b16 %v2152
    %v2221 = vunpack.c.l.b16 %v2153
    %v2222 = vunpack.c.l.b16 %v2154
    %v2223 = vpack.c.b16 %v2192, %v2191
    %v2224 = vpack.c.b16 %v2194, %v2193
    %v2225 = vpack.c.b16 %v2196, %v2195
    %v2226 = vpack.c.b16 %v2198, %v2197
    %v2227 = vpack.c.b16 %v2200, %v2199
    %v2228 = vpack.c.b16 %v2202, %v2201
    %v2229 = vpack.c.b16 %v2204, %v2203
    %v2230 = vpack.c.b16 %v2206, %v2205
    %v2231 = vpack.c.b16 %v2208, %v2207
    %v2232 = vpack.c.b16 %v2210, %v2209
    %v2233 = vpack.c.b16 %v2212, %v2211
    %v2234 = vpack.c.b16 %v2214, %v2213
    %v2235 = vpack.c.b16 %v2216, %v2215
    %v2236 = vpack.c.b16 %v2218, %v2217
    %v2237 = vpack.c.b16 %v2220, %v2219
    %v2238 = vpack.c.b16 %v2222, %v2221
    %2255 = vmatpush.bf16.msra.mxu0 %v2230
    %2256 = vmatpush.bf16.msra.mxu0 %v2229
    %2257 = vmatpush.bf16.msra.mxu0 %v2228
    %2258 = vmatpush.bf16.msra.mxu0 %v2227
    %2259 = vmatpush.bf16.msra.mxu0 %v2226
    %2260 = vmatpush.bf16.msra.mxu0 %v2225
    %2261 = vmatpush.bf16.msra.mxu0 %v2224
    %2262 = vmatpush.bf16.msra.mxu0 %v2223
    %2263 = vmatmul.bf16.gmra.mxu0 %v2121
    %v2264 = vpop.f32.mrf.mxu0
    %v2265 = vadd.f32 %v2157, %v2264
    %v2266 = vpop.f32.mrf.mxu0
    %v2267 = vadd.f32 %v2157, %v2266
    %2268 = vdwg.mxu0
    %2269 = vmatpush.bf16.msra.mxu0 %v2238
    %2270 = vmatpush.bf16.msra.mxu0 %v2237
    %2271 = vmatpush.bf16.msra.mxu0 %v2236
    %2272 = vmatpush.bf16.msra.mxu0 %v2235
    %2273 = vmatpush.bf16.msra.mxu0 %v2234
    %2274 = vmatpush.bf16.msra.mxu0 %v2233
    %2275 = vmatpush.bf16.msra.mxu0 %v2232
    %2276 = vmatpush.bf16.msra.mxu0 %v2231
    %2277 = vmatmul.bf16.gmra.mxu0 %v2122
    %v2278 = vpop.f32.mrf.mxu0
    %v2279 = vadd.f32 %v2265, %v2278
    %v2280 = vpop.f32.mrf.mxu0
    %v2281 = vadd.f32 %v2267, %v2280
    %2282 = vdwg.mxu0
    %v2283 = vadd.f32 %v1984, %v2279
    %v2284 = vadd.f32 %v1985, %v2281
    %v2285 = vld [vmem:[%s6 + $0x4] sm:$0x1]
    %v2286 = vld [vmem:[%s6 + $0x5] sm:$0x1]
    %2287 = vadd.xlane.f32.xlu0 %v2283
    %v2288 = vpop.xlane.xlu0 %2287
    %2289 = vadd.xlane.f32.xlu0 %v2284
    %v2290 = vpop.xlane.xlu0 %2289
    %v2291 = vmul.f32 %v2288, %v976
    %v2292 = vmul.f32 %v2290, %v976
    %v2293 = vsub.f32 %v2283, %v2291
    %v2294 = vsub.f32 %v2284, %v2292
    %v2295 = vmul.f32 %v2293, %v2293
    %v2296 = vmul.f32 %v2294, %v2294
    %2297 = vadd.xlane.f32.xlu0 %v2295
    %v2298 = vpop.xlane.xlu0 %2297
    %2299 = vadd.xlane.f32.xlu0 %v2296
    %v2300 = vpop.xlane.xlu0 %2299
    %v2301 = vmul.f32 %v2298, %v976
    %v2302 = vmul.f32 %v2300, %v976
    %v2303 = vadd.f32 %v2301, 1e-05
    %v2304 = vadd.f32 %v2302, 1e-05
    %v2305 = vrsqrt.pop %v2303
    %v2306 = vmul.f32 %v2305, %v2303
    %v2307 = vmul.f32 %v2306, %v2305
    %v2308 = vmul.f32 0.5, %v2307
    %v2309 = vsub.f32 1.5, %v2308
    %v2310 = vmul.f32 %v2305, %v2309
    %vm2311 = vweird.f32 %v2303
    %vm2312 = vweird.f32 %v2305
    %vm2313 = vmor %vm2311, %vm2312
    %v2314 = vsel %vm2313, %v2305, %v2310
    %v2315 = vrsqrt.pop %v2304
    %v2316 = vmul.f32 %v2315, %v2304
    %v2317 = vmul.f32 %v2316, %v2315
    %v2318 = vmul.f32 0.5, %v2317
    %v2319 = vsub.f32 1.5, %v2318
    %v2320 = vmul.f32 %v2315, %v2319
    %vm2321 = vweird.f32 %v2304
    %vm2322 = vweird.f32 %v2315
    %vm2323 = vmor %vm2321, %vm2322
    %v2324 = vsel %vm2323, %v2315, %v2320
    %v2325 = vmul.f32 %v2293, %v2314
    %v2326 = vmul.f32 %v2294, %v2324
    %v2327 = vperm.slane %v2285, 0
    %v2328 = vmul.f32 %v2325, %v2327
    %v2329 = vmul.f32 %v2326, %v2327
    %v2330 = vperm.slane %v2286, 0
    %v2331 = vadd.f32 %v2328, %v2330
    %v2332 = vadd.f32 %v2329, %v2330
    %2333 = vst [vmem:[#allocation2] sm:$0xff] %v2331
    %2334 = vst [vmem:[#allocation2 + $0x8] sm:$0xff] %v2332
    // Predicated region
    $region30: #{decoder_layer_forward.1} parent=1 // pred_check
      _
    $region31: #{decoder_layer_forward.1} parent=1 // pred_check_branch
      %2336 = sbr.rel (0) target = $region33
    $region32: #{decoder_layer_forward.1} parent=1 // pred_region
      %2338 = vsyncadd [#allocation3], 0
      %s2339 = sshll.u32 [#allocation2], 4
      %s2340 = int_to_ptr.vmem [resolvable:$true] %s2339
      %s2341 = sshll.u32 %s7, 4
      %s2342 = int_to_ptr.hbm [resolvable:$true] %s2341
      %2347 = dma.vmem_to_hbm [thread:$0]  %s2340, 256, %s2342, [#allocation3], 128, 128, 8
    $region33: #{decoder_layer_forward.1} parent=1 // pred_fallthru
      _
    // Predicated region
    $region34: #{decoder_layer_forward.1} parent=1 // pred_check
      _
    $region35: #{decoder_layer_forward.1} parent=1 // pred_check_branch
      %2349 = sbr.rel (0) target = $region37
    $region36: #{decoder_layer_forward.1} parent=1 // pred_region
      %2351 = dma.done [#allocation3], 256
    $region37: #{decoder_layer_forward.1} parent=1 // pred_fallthru
      _
    %2352 = vsyncpa [#allocation3], 1

</llo_original>
